<compile_context>
chip_gen: v7x
topology: tpu7x:2x2x1
jax: 0.10.0
libtpu: 0.0.40
codegen_flags: <defaults>
</compile_context>

<pallas_src>
import jax
import jax.numpy as jnp
from jax.experimental import pallas as pl
from jax.experimental.pallas import tpu as pltpu

EPS = 1e-5


def _vmem():
    return pl.BlockSpec(memory_space=pltpu.MemorySpace.VMEM)


def _smem():
    return pl.BlockSpec(memory_space=pltpu.MemorySpace.SMEM)


def decoder_kernel(x_ref, sc_ref, base_ref, p1_ref, g1_ref, be1_ref,
                   w2_ref, b2_ref, g2_ref, be2_ref, w9_ref,
                   o_ref, y1_scr, y2_scr):
    B, ch_in = x_ref.shape
    L = o_ref.shape[1]                       # B * 256 (16x16 zero-padded grid / batch)
    f32 = jnp.float32

    # Interior mask of the padded 16x16 grid: rows/cols 1..14 hold the real 14x14 grid.
    lane = jax.lax.broadcasted_iota(jnp.int32, (1, L), 1)
    p16 = lane & 255
    row_i = p16 >> 4
    col_i = p16 & 15
    interior = (row_i >= 1) & (row_i <= 14) & (col_i >= 1) & (col_i <= 14)

    # ---------- stage 1: (fc + ConvTranspose1) folded -> ReLU -> BN1 stats ----------
    s1 = jnp.zeros((64, 1), f32)
    q1 = jnp.zeros((64, 1), f32)
    for b in range(B):
        y = base_ref[...]                                     # (64, 256)
        for k in range(ch_in):
            y = y + x_ref[b, k] * p1_ref[k]                   # ch_in VPU FMAs
        y = jnp.maximum(y, 0.0)                               # ReLU (border stays 0)
        y1_scr[:, pl.ds(b * 256, 256)] = y
        s1 = s1 + jnp.sum(y, axis=1, keepdims=True)
        q1 = q1 + jnp.sum(y * y, axis=1, keepdims=True)

    n1 = float(B * 14 * 14)
    mean1 = s1 * (1.0 / n1)
    var1 = q1 * (1.0 / n1) - mean1 * mean1
    a1 = jax.lax.rsqrt(var1 + EPS) * g1_ref[...]
    c1 = be1_ref[...] - mean1 * a1
    y1_scr[...] = y1_scr[...] * a1 + c1                       # BN1 applied in place

    # ---------- stage 2: ConvTranspose2 = 4 dense (64,64)@(64,L) dots -> ReLU -> BN2 --
    s2 = jnp.zeros((64, 1), f32)
    q2 = jnp.zeros((64, 1), f32)
    for g in range(4):                                        # g = ki2*2 + kj2
        blk = jnp.dot(w2_ref[g], y1_scr[...],
                      preferred_element_type=f32) + b2_ref[...]
        blk = jnp.where(interior, jnp.maximum(blk, 0.0), 0.0)
        y2_scr[pl.ds(g * 64, 64), :] = blk
        s2 = s2 + jnp.sum(blk, axis=1, keepdims=True)
        q2 = q2 + jnp.sum(blk * blk, axis=1, keepdims=True)

    n2 = float(B * 28 * 28)
    mean2 = s2 * (1.0 / n2)
    var2 = q2 * (1.0 / n2) - mean2 * mean2
    a2 = jax.lax.rsqrt(var2 + EPS) * g2_ref[...]
    c2 = be2_ref[...] - mean2 * a2

    # ---------- stage 3: 3x3 conv on the 28x28 image in grouped/parity form ----------
    # Output pixel (2i+a, 2j+bb) with tap (di,dj) reads tap-group (ki,kj) at 14x14
    # offset (si,sj); channel contraction is one (9,64)@(64,L) MXU dot per group and
    # the stencil is lane rolls on the padded 16x16 grid.
    accs = [None, None, None, None]                           # parity p = a*2 + bb
    for g in range(4):
        ki, kj = g >> 1, g & 1
        y2bn = jnp.where(interior,
                         y2_scr[pl.ds(g * 64, 64), :] * a2 + c2, 0.0)
        t = jnp.dot(w9_ref[...], y2bn, preferred_element_type=f32)   # (9, L)
        for di in range(3):
            a = (ki + di + 1) % 2
            si = (a + di - 1) // 2
            for dj in range(3):
                bb = (kj + dj + 1) % 2
                sj = (bb + dj - 1) // 2
                off = si * 16 + sj                            # lane offset in the grid
                tap = di * 3 + dj
                row = t[tap:tap + 1, :]
                if off != 0:
                    # out[l] = row[l + off]  (np.roll convention, non-negative shift)
                    row = pltpu.roll(row, (-off) % L, axis=1)
                pidx = a * 2 + bb
                accs[pidx] = row if accs[pidx] is None else accs[pidx] + row

    # ---------- stage 4: conv bias + ReLU -> BN3 (1 channel) -> sigmoid -> store ------
    zsum = 0.0
    zsq = 0.0
    zs = []
    for pidx in range(4):
        z = jnp.maximum(accs[pidx] + sc_ref[0], 0.0)
        zs.append(z)
        zm = jnp.where(interior, z, 0.0)
        zsum = zsum + jnp.sum(zm)
        zsq = zsq + jnp.sum(zm * zm)

    n3 = float(B * 28 * 28)
    mean3 = zsum * (1.0 / n3)
    var3 = zsq * (1.0 / n3) - mean3 * mean3
    a3 = jax.lax.rsqrt(var3 + EPS) * sc_ref[1]
    c3 = sc_ref[2] - mean3 * a3
    outs = [1.0 / (1.0 + jnp.exp(-(z * a3 + c3))) for z in zs]
    o_ref[...] = jnp.concatenate(outs, axis=0)                # (4, L) lane-dense store


# ------------------------------- full decoder -------------------------------
def decoder_forward(x, params):
    B, ch_in = x.shape
    f32 = jnp.float32

    # --- x-independent weight prep (tiny, outside the hot path) ---
    # fc + ConvTranspose1 are affine in x: y1_pre[b] = base + sum_k x[b,k] * p1[k],
    # laid out as (cout=64 sublanes, zero-padded 16x16 grid of the 14x14 image on lanes).
    fcw = params["fc_w"].reshape(64, 7, 7, ch_in).astype(f32)      # (cin, i, j, k)
    fcb = params["fc_b"].reshape(64, 7, 7).astype(f32)
    w1 = params["ct1_w"].astype(f32)                               # (cin, cout, 2, 2)
    p1 = jnp.einsum("cijk,copq->koipjq", fcw, w1).reshape(ch_in, 64, 14, 14)
    base = (jnp.einsum("cij,copq->oipjq", fcb, w1).reshape(64, 14, 14)
            + params["ct1_b"].astype(f32)[:, None, None])
    p1 = jnp.pad(p1, ((0, 0), (0, 0), (1, 1), (1, 1))).reshape(ch_in, 64, 256)
    base = jnp.pad(base, ((0, 0), (1, 1), (1, 1))).reshape(64, 256)

    # ConvTranspose2 as 4 dense per-tap (cout, cin) weights (no zero block-diagonal).
    # (These and w9 could be cast to bfloat16 for v5e MXU/DMA headroom at larger sizes;
    #  kept f32 so the self-check stays within 2e-4 of the f32 reference.)
    w2g = jnp.transpose(params["ct2_w"], (2, 3, 1, 0)).reshape(4, 64, 64).astype(f32)
    b2v = params["ct2_b"].reshape(64, 1).astype(f32)
    g1v = params["bn1_g"].reshape(64, 1).astype(f32)
    be1v = params["bn1_b"].reshape(64, 1).astype(f32)
    g2v = params["bn2_g"].reshape(64, 1).astype(f32)
    be2v = params["bn2_b"].reshape(64, 1).astype(f32)

    w9 = jnp.transpose(params["c3_w"][0], (1, 2, 0)).reshape(9, 64).astype(f32)
    sc = jnp.array([params["c3_b"][0], params["bn3_g"][0], params["bn3_b"][0]], f32)

    out4 = pl.pallas_call(
        decoder_kernel,
        out_shape=jax.ShapeDtypeStruct((4, B * 256), f32),
        in_specs=[_smem(), _smem()] + [_vmem()] * 9,
        out_specs=_vmem(),
        scratch_shapes=[pltpu.VMEM((64, B * 256), f32),     # y1 (post-ReLU / post-BN1)
                        pltpu.VMEM((256, B * 256), f32)],   # y2 grouped (post-ReLU)
        compiler_params=pltpu.CompilerParams(vmem_limit_bytes=32 * 1024 * 1024),
    )(x.astype(f32), sc, base, p1, g1v, be1v, w2g, b2v, g2v, be2v, w9)

    # (4, B*256) parity rows -> (B, 1, 28, 28): tiny output-side interleave only.
    o = out4.reshape(4, B, 16, 16)[:, :, 1:15, 1:15]
    o = o.reshape(2, 2, B, 14, 14).transpose(2, 3, 0, 4, 1).reshape(B, 1, 28, 28)
    return o


# ----------------------------- pure-JAX reference -----------------------------
def decoder_reference(x, p):
    B = x.shape[0]
    h = x @ p["fc_w"].T + p["fc_b"]
    h = h.reshape(B, 64, 7, 7)

    def deconv_ref(x4, w, b, g, be):
        t = jnp.einsum("bcij,cokl->boikjl", x4, w)  # (B,O,H,2,W,2)
        Bn, O, H, _, W, _ = t.shape
        y = t.reshape(Bn, O, 2 * H, 2 * W) + b[None, :, None, None]
        y = jnp.maximum(y, 0.0)
        m = y.mean(axis=(0, 2, 3), keepdims=True)
        v = ((y - m) ** 2).mean(axis=(0, 2, 3), keepdims=True)
        return (y - m) * jax.lax.rsqrt(v + EPS) * g[None, :, None, None] + be[None, :, None, None]

    h = deconv_ref(h, p["ct1_w"], p["ct1_b"], p["bn1_g"], p["bn1_b"])
    h = deconv_ref(h, p["ct2_w"], p["ct2_b"], p["bn2_g"], p["bn2_b"])
    y = jax.lax.conv_general_dilated(
        h, p["c3_w"], window_strides=(1, 1), padding=((1, 1), (1, 1)),
        dimension_numbers=("NCHW", "OIHW", "NCHW"))
    y = y + p["c3_b"][None, :, None, None]
    y = jnp.maximum(y, 0.0)
    m = y.mean(axis=(0, 2, 3), keepdims=True)
    v = ((y - m) ** 2).mean(axis=(0, 2, 3), keepdims=True)
    y = (y - m) * jax.lax.rsqrt(v + EPS) * p["bn3_g"][None, :, None, None] \
        + p["bn3_b"][None, :, None, None]
    return jax.nn.sigmoid(y)


# ------------------------------- params / main -------------------------------
def init_params(key, ch_in=2):
    ks = jax.random.split(key, 8)

    def u(k, shape, fan_in):
        bound = 1.0 / (fan_in ** 0.5)
        return jax.random.uniform(k, shape, jnp.float32, -bound, bound)

    return {
        "fc_w": u(ks[0], (7 * 7 * 64, ch_in), ch_in),
        "fc_b": u(ks[1], (7 * 7 * 64,), ch_in),
        "ct1_w": u(ks[2], (64, 64, 2, 2), 64 * 2 * 2),
        "ct1_b": u(ks[3], (64,), 64 * 2 * 2),
        "bn1_g": jnp.ones((64,), jnp.float32),
        "bn1_b": jnp.zeros((64,), jnp.float32),
        "ct2_w": u(ks[4], (64, 64, 2, 2), 64 * 2 * 2),
        "ct2_b": u(ks[5], (64,), 64 * 2 * 2),
        "bn2_g": jnp.ones((64,), jnp.float32),
        "bn2_b": jnp.zeros((64,), jnp.float32),
        "c3_w": u(ks[6], (1, 64, 3, 3), 64 * 3 * 3),
        "c3_b": u(ks[7], (1,), 64 * 3 * 3),
        "bn3_g": jnp.ones((1,), jnp.float32),
        "bn3_b": jnp.zeros((1,), jnp.float32),
    }


if __name__ == "__main__":
    key = jax.random.PRNGKey(0)
    kx, kp = jax.random.split(key)
    params = init_params(kp, ch_in=2)
    x = jax.random.normal(kx, (2, 2), jnp.float32)  # (batch=2, ch_in=2)

    out = jax.jit(decoder_forward)(x, params)
    out = jax.block_until_ready(out)
    assert out.shape == (2, 1, 28, 28), out.shape

    ref = jax.block_until_ready(decoder_reference(x, params))
    err = float(jnp.max(jnp.abs(out - ref)))
    assert err < 2e-4, f"mismatch vs reference: {err}"

    print("KERNEL_OK")
</pallas_src>

<mosaic_0001>
module attributes {stable_mosaic.version = 11 : i64} {
  func.func @decoder_kernel(%arg0: memref<2x2xf32, #tpu.memory_space<smem>>, %arg1: memref<3xf32, #tpu.memory_space<smem>>, %arg2: memref<64x256xf32, #tpu.memory_space<vmem>>, %arg3: memref<2x64x256xf32, #tpu.memory_space<vmem>>, %arg4: memref<64x1xf32, #tpu.memory_space<vmem>>, %arg5: memref<64x1xf32, #tpu.memory_space<vmem>>, %arg6: memref<4x64x64xf32, #tpu.memory_space<vmem>>, %arg7: memref<64x1xf32, #tpu.memory_space<vmem>>, %arg8: memref<64x1xf32, #tpu.memory_space<vmem>>, %arg9: memref<64x1xf32, #tpu.memory_space<vmem>>, %arg10: memref<9x64xf32, #tpu.memory_space<vmem>>, %arg11: memref<4x512xf32, #tpu.memory_space<vmem>>, %arg12: memref<64x512xf32, #tpu.memory_space<vmem>>, %arg13: memref<256x512xf32, #tpu.memory_space<vmem>>) attributes {dimension_semantics = [], scalar_prefetch = 0 : i64, scratch_operands = 2 : i64, tpu.core_type = #tpu.core_type<tc>} {
    %0 = tpu.iota {dimensions = array<i32: 1>} : vector<1x512xi32>
    %c255_i32 = arith.constant 255 : i32
    %1 = vector.broadcast %c255_i32 : i32 to vector<1x512xi32>
    %2 = arith.andi %0, %1 : vector<1x512xi32>
    %c4_i32 = arith.constant 4 : i32
    %3 = vector.broadcast %c4_i32 : i32 to vector<1x512xi32>
    %4 = arith.shrsi %2, %3 : vector<1x512xi32>
    %c15_i32 = arith.constant 15 : i32
    %5 = vector.broadcast %c15_i32 : i32 to vector<1x512xi32>
    %6 = arith.andi %2, %5 : vector<1x512xi32>
    %c1_i32 = arith.constant 1 : i32
    %7 = vector.broadcast %c1_i32 : i32 to vector<1x512xi32>
    %8 = arith.cmpi sge, %4, %7 : vector<1x512xi32>
    %c14_i32 = arith.constant 14 : i32
    %9 = vector.broadcast %c14_i32 : i32 to vector<1x512xi32>
    %10 = arith.cmpi sle, %4, %9 : vector<1x512xi32>
    %11 = arith.andi %8, %10 : vector<1x512xi1>
    %c1_i32_0 = arith.constant 1 : i32
    %12 = vector.broadcast %c1_i32_0 : i32 to vector<1x512xi32>
    %13 = arith.cmpi sge, %6, %12 : vector<1x512xi32>
    %14 = arith.andi %11, %13 : vector<1x512xi1>
    %c14_i32_1 = arith.constant 14 : i32
    %15 = vector.broadcast %c14_i32_1 : i32 to vector<1x512xi32>
    %16 = arith.cmpi sle, %6, %15 : vector<1x512xi32>
    %17 = arith.andi %14, %16 : vector<1x512xi1>
    %cst = arith.constant 0.000000e+00 : f32
    %18 = vector.broadcast %cst : f32 to vector<64x1xf32>
    %cst_2 = arith.constant 0.000000e+00 : f32
    %19 = vector.broadcast %cst_2 : f32 to vector<64x1xf32>
    %c0 = arith.constant 0 : index
    %c0_3 = arith.constant 0 : index
    %20 = vector.load %arg2[%c0, %c0_3] : memref<64x256xf32, #tpu.memory_space<vmem>>, vector<64x256xf32>
    %c0_4 = arith.constant 0 : index
    %c0_5 = arith.constant 0 : index
    %21 = memref.load %arg0[%c0_4, %c0_5] : memref<2x2xf32, #tpu.memory_space<smem>>
    %c0_6 = arith.constant 0 : index
    %c0_7 = arith.constant 0 : index
    %c0_8 = arith.constant 0 : index
    %22 = vector.load %arg3[%c0_6, %c0_7, %c0_8] : memref<2x64x256xf32, #tpu.memory_space<vmem>>, vector<1x64x256xf32>
    %23 = vector.shape_cast %22 : vector<1x64x256xf32> to vector<64x256xf32>
    %24 = vector.broadcast %21 : f32 to vector<64x256xf32>
    %25 = arith.mulf %24, %23 : vector<64x256xf32>
    %26 = arith.addf %20, %25 : vector<64x256xf32>
    %c0_9 = arith.constant 0 : index
    %c1 = arith.constant 1 : index
    %27 = memref.load %arg0[%c0_9, %c1] : memref<2x2xf32, #tpu.memory_space<smem>>
    %c1_10 = arith.constant 1 : index
    %c0_11 = arith.constant 0 : index
    %c0_12 = arith.constant 0 : index
    %28 = vector.load %arg3[%c1_10, %c0_11, %c0_12] : memref<2x64x256xf32, #tpu.memory_space<vmem>>, vector<1x64x256xf32>
    %29 = vector.shape_cast %28 : vector<1x64x256xf32> to vector<64x256xf32>
    %30 = vector.broadcast %27 : f32 to vector<64x256xf32>
    %31 = arith.mulf %30, %29 : vector<64x256xf32>
    %32 = arith.addf %26, %31 : vector<64x256xf32>
    %cst_13 = arith.constant 0.000000e+00 : f32
    %33 = vector.broadcast %cst_13 : f32 to vector<64x256xf32>
    %34 = arith.maximumf %32, %33 : vector<64x256xf32>
    %c0_14 = arith.constant 0 : index
    %c0_15 = arith.constant 0 : index
    %35 = vector.load %arg12[%c0_14, %c0_15] : memref<64x512xf32, #tpu.memory_space<vmem>>, vector<64x256xf32>
    tpu.vector_store %arg12[%c0_14, %c0_15], %34 {strides = array<i32>} : memref<64x512xf32, #tpu.memory_space<vmem>>, vector<64x256xf32>,
    %cst_16 = arith.constant dense<0.000000e+00> : vector<64xf32>
    %36 = vector.multi_reduction <add>, %34, %cst_16 [1] : vector<64x256xf32> to vector<64xf32>
    %37 = vector.shape_cast %36 : vector<64xf32> to vector<64x1xf32>
    %38 = arith.addf %18, %37 : vector<64x1xf32>
    %39 = arith.mulf %34, %34 : vector<64x256xf32>
    %cst_17 = arith.constant dense<0.000000e+00> : vector<64xf32>
    %40 = vector.multi_reduction <add>, %39, %cst_17 [1] : vector<64x256xf32> to vector<64xf32>
    %41 = vector.shape_cast %40 : vector<64xf32> to vector<64x1xf32>
    %42 = arith.addf %19, %41 : vector<64x1xf32>
    %c0_18 = arith.constant 0 : index
    %c0_19 = arith.constant 0 : index
    %43 = vector.load %arg2[%c0_18, %c0_19] : memref<64x256xf32, #tpu.memory_space<vmem>>, vector<64x256xf32>
    %c1_20 = arith.constant 1 : index
    %c0_21 = arith.constant 0 : index
    %44 = memref.load %arg0[%c1_20, %c0_21] : memref<2x2xf32, #tpu.memory_space<smem>>
    %c0_22 = arith.constant 0 : index
    %c0_23 = arith.constant 0 : index
    %c0_24 = arith.constant 0 : index
    %45 = vector.load %arg3[%c0_22, %c0_23, %c0_24] : memref<2x64x256xf32, #tpu.memory_space<vmem>>, vector<1x64x256xf32>
    %46 = vector.shape_cast %45 : vector<1x64x256xf32> to vector<64x256xf32>
    %47 = vector.broadcast %44 : f32 to vector<64x256xf32>
    %48 = arith.mulf %47, %46 : vector<64x256xf32>
    %49 = arith.addf %43, %48 : vector<64x256xf32>
    %c1_25 = arith.constant 1 : index
    %c1_26 = arith.constant 1 : index
    %50 = memref.load %arg0[%c1_25, %c1_26] : memref<2x2xf32, #tpu.memory_space<smem>>
    %c1_27 = arith.constant 1 : index
    %c0_28 = arith.constant 0 : index
    %c0_29 = arith.constant 0 : index
    %51 = vector.load %arg3[%c1_27, %c0_28, %c0_29] : memref<2x64x256xf32, #tpu.memory_space<vmem>>, vector<1x64x256xf32>
    %52 = vector.shape_cast %51 : vector<1x64x256xf32> to vector<64x256xf32>
    %53 = vector.broadcast %50 : f32 to vector<64x256xf32>
    %54 = arith.mulf %53, %52 : vector<64x256xf32>
    %55 = arith.addf %49, %54 : vector<64x256xf32>
    %cst_30 = arith.constant 0.000000e+00 : f32
    %56 = vector.broadcast %cst_30 : f32 to vector<64x256xf32>
    %57 = arith.maximumf %55, %56 : vector<64x256xf32>
    %c0_31 = arith.constant 0 : index
    %c256 = arith.constant 256 : index
    %58 = vector.load %arg12[%c0_31, %c256] : memref<64x512xf32, #tpu.memory_space<vmem>>, vector<64x256xf32>
    tpu.vector_store %arg12[%c0_31, %c256], %57 {strides = array<i32>} : memref<64x512xf32, #tpu.memory_space<vmem>>, vector<64x256xf32>,
    %cst_32 = arith.constant dense<0.000000e+00> : vector<64xf32>
    %59 = vector.multi_reduction <add>, %57, %cst_32 [1] : vector<64x256xf32> to vector<64xf32>
    %60 = vector.shape_cast %59 : vector<64xf32> to vector<64x1xf32>
    %61 = arith.addf %38, %60 : vector<64x1xf32>
    %62 = arith.mulf %57, %57 : vector<64x256xf32>
    %cst_33 = arith.constant dense<0.000000e+00> : vector<64xf32>
    %63 = vector.multi_reduction <add>, %62, %cst_33 [1] : vector<64x256xf32> to vector<64xf32>
    %64 = vector.shape_cast %63 : vector<64xf32> to vector<64x1xf32>
    %65 = arith.addf %42, %64 : vector<64x1xf32>
    %cst_34 = arith.constant 0.00255102036 : f32
    %66 = vector.broadcast %cst_34 : f32 to vector<64x1xf32>
    %67 = arith.mulf %61, %66 : vector<64x1xf32>
    %cst_35 = arith.constant 0.00255102036 : f32
    %68 = vector.broadcast %cst_35 : f32 to vector<64x1xf32>
    %69 = arith.mulf %65, %68 : vector<64x1xf32>
    %70 = arith.mulf %67, %67 : vector<64x1xf32>
    %71 = arith.subf %69, %70 : vector<64x1xf32>
    %cst_36 = arith.constant 9.99999974E-6 : f32
    %72 = vector.broadcast %cst_36 : f32 to vector<64x1xf32>
    %73 = arith.addf %71, %72 : vector<64x1xf32>
    %74 = math.rsqrt %73 : vector<64x1xf32>
    %c0_37 = arith.constant 0 : index
    %c0_38 = arith.constant 0 : index
    %75 = vector.load %arg4[%c0_37, %c0_38] : memref<64x1xf32, #tpu.memory_space<vmem>>, vector<64x1xf32>
    %76 = arith.mulf %74, %75 : vector<64x1xf32>
    %c0_39 = arith.constant 0 : index
    %c0_40 = arith.constant 0 : index
    %77 = vector.load %arg5[%c0_39, %c0_40] : memref<64x1xf32, #tpu.memory_space<vmem>>, vector<64x1xf32>
    %78 = arith.mulf %67, %76 : vector<64x1xf32>
    %79 = arith.subf %77, %78 : vector<64x1xf32>
    %c0_41 = arith.constant 0 : index
    %c0_42 = arith.constant 0 : index
    %80 = vector.load %arg12[%c0_41, %c0_42] : memref<64x512xf32, #tpu.memory_space<vmem>>, vector<64x512xf32>
    %81 = vector.broadcast %76 : vector<64x1xf32> to vector<64x512xf32>
    %82 = arith.mulf %80, %81 : vector<64x512xf32>
    %83 = vector.broadcast %79 : vector<64x1xf32> to vector<64x512xf32>
    %84 = arith.addf %82, %83 : vector<64x512xf32>
    %c0_43 = arith.constant 0 : index
    %c0_44 = arith.constant 0 : index
    %85 = vector.load %arg12[%c0_43, %c0_44] : memref<64x512xf32, #tpu.memory_space<vmem>>, vector<64x512xf32>
    tpu.vector_store %arg12[%c0_43, %c0_44], %84 {strides = array<i32>} : memref<64x512xf32, #tpu.memory_space<vmem>>, vector<64x512xf32>,
    %cst_45 = arith.constant 0.000000e+00 : f32
    %86 = vector.broadcast %cst_45 : f32 to vector<64x1xf32>
    %cst_46 = arith.constant 0.000000e+00 : f32
    %87 = vector.broadcast %cst_46 : f32 to vector<64x1xf32>
    %c0_47 = arith.constant 0 : index
    %c0_48 = arith.constant 0 : index
    %c0_49 = arith.constant 0 : index
    %88 = vector.load %arg6[%c0_47, %c0_48, %c0_49] : memref<4x64x64xf32, #tpu.memory_space<vmem>>, vector<1x64x64xf32>
    %89 = vector.shape_cast %88 : vector<1x64x64xf32> to vector<64x64xf32>
    %c0_50 = arith.constant 0 : index
    %c0_51 = arith.constant 0 : index
    %90 = vector.load %arg12[%c0_50, %c0_51] : memref<64x512xf32, #tpu.memory_space<vmem>>, vector<64x512xf32>
    %cst_52 = arith.constant dense<0.000000e+00> : vector<64x512xf32>
    %91 = tpu.matmul %89, %90, %cst_52 {dimension_numbers = #tpu.dot_dimension_numbers<[1], [0], [0], [1], [0, 0, 1, 1], [], []>} : vector<64x64xf32>, vector<64x512xf32>, vector<64x512xf32> -> vector<64x512xf32>
    %c0_53 = arith.constant 0 : index
    %c0_54 = arith.constant 0 : index
    %92 = vector.load %arg7[%c0_53, %c0_54] : memref<64x1xf32, #tpu.memory_space<vmem>>, vector<64x1xf32>
    %93 = vector.broadcast %92 : vector<64x1xf32> to vector<64x512xf32>
    %94 = arith.addf %91, %93 : vector<64x512xf32>
    %cst_55 = arith.constant 0.000000e+00 : f32
    %95 = vector.broadcast %cst_55 : f32 to vector<64x512xf32>
    %96 = arith.maximumf %94, %95 : vector<64x512xf32>
    %cst_56 = arith.constant 0.000000e+00 : f32
    %97 = vector.shape_cast %17 : vector<1x512xi1> to vector<1x512xi1>
    %98 = vector.broadcast %97 : vector<1x512xi1> to vector<64x512xi1>
    %99 = vector.broadcast %cst_56 : f32 to vector<64x512xf32>
    %100 = arith.select %98, %96, %99 : vector<64x512xi1>, vector<64x512xf32>
    %c0_57 = arith.constant 0 : index
    %c0_58 = arith.constant 0 : index
    %101 = vector.load %arg13[%c0_57, %c0_58] : memref<256x512xf32, #tpu.memory_space<vmem>>, vector<64x512xf32>
    tpu.vector_store %arg13[%c0_57, %c0_58], %100 {strides = array<i32>} : memref<256x512xf32, #tpu.memory_space<vmem>>, vector<64x512xf32>,
    %cst_59 = arith.constant dense<0.000000e+00> : vector<64xf32>
    %102 = vector.multi_reduction <add>, %100, %cst_59 [1] : vector<64x512xf32> to vector<64xf32>
    %103 = vector.shape_cast %102 : vector<64xf32> to vector<64x1xf32>
    %104 = arith.addf %86, %103 : vector<64x1xf32>
    %105 = arith.mulf %100, %100 : vector<64x512xf32>
    %cst_60 = arith.constant dense<0.000000e+00> : vector<64xf32>
    %106 = vector.multi_reduction <add>, %105, %cst_60 [1] : vector<64x512xf32> to vector<64xf32>
    %107 = vector.shape_cast %106 : vector<64xf32> to vector<64x1xf32>
    %108 = arith.addf %87, %107 : vector<64x1xf32>
    %c1_61 = arith.constant 1 : index
    %c0_62 = arith.constant 0 : index
    %c0_63 = arith.constant 0 : index
    %109 = vector.load %arg6[%c1_61, %c0_62, %c0_63] : memref<4x64x64xf32, #tpu.memory_space<vmem>>, vector<1x64x64xf32>
    %110 = vector.shape_cast %109 : vector<1x64x64xf32> to vector<64x64xf32>
    %c0_64 = arith.constant 0 : index
    %c0_65 = arith.constant 0 : index
    %111 = vector.load %arg12[%c0_64, %c0_65] : memref<64x512xf32, #tpu.memory_space<vmem>>, vector<64x512xf32>
    %cst_66 = arith.constant dense<0.000000e+00> : vector<64x512xf32>
    %112 = tpu.matmul %110, %111, %cst_66 {dimension_numbers = #tpu.dot_dimension_numbers<[1], [0], [0], [1], [0, 0, 1, 1], [], []>} : vector<64x64xf32>, vector<64x512xf32>, vector<64x512xf32> -> vector<64x512xf32>
    %c0_67 = arith.constant 0 : index
    %c0_68 = arith.constant 0 : index
    %113 = vector.load %arg7[%c0_67, %c0_68] : memref<64x1xf32, #tpu.memory_space<vmem>>, vector<64x1xf32>
    %114 = vector.broadcast %113 : vector<64x1xf32> to vector<64x512xf32>
    %115 = arith.addf %112, %114 : vector<64x512xf32>
    %cst_69 = arith.constant 0.000000e+00 : f32
    %116 = vector.broadcast %cst_69 : f32 to vector<64x512xf32>
    %117 = arith.maximumf %115, %116 : vector<64x512xf32>
    %cst_70 = arith.constant 0.000000e+00 : f32
    %118 = vector.shape_cast %17 : vector<1x512xi1> to vector<1x512xi1>
    %119 = vector.broadcast %118 : vector<1x512xi1> to vector<64x512xi1>
    %120 = vector.broadcast %cst_70 : f32 to vector<64x512xf32>
    %121 = arith.select %119, %117, %120 : vector<64x512xi1>, vector<64x512xf32>
    %c64 = arith.constant 64 : index
    %c0_71 = arith.constant 0 : index
    %122 = vector.load %arg13[%c64, %c0_71] : memref<256x512xf32, #tpu.memory_space<vmem>>, vector<64x512xf32>
    tpu.vector_store %arg13[%c64, %c0_71], %121 {strides = array<i32>} : memref<256x512xf32, #tpu.memory_space<vmem>>, vector<64x512xf32>,
    %cst_72 = arith.constant dense<0.000000e+00> : vector<64xf32>
    %123 = vector.multi_reduction <add>, %121, %cst_72 [1] : vector<64x512xf32> to vector<64xf32>
    %124 = vector.shape_cast %123 : vector<64xf32> to vector<64x1xf32>
    %125 = arith.addf %104, %124 : vector<64x1xf32>
    %126 = arith.mulf %121, %121 : vector<64x512xf32>
    %cst_73 = arith.constant dense<0.000000e+00> : vector<64xf32>
    %127 = vector.multi_reduction <add>, %126, %cst_73 [1] : vector<64x512xf32> to vector<64xf32>
    %128 = vector.shape_cast %127 : vector<64xf32> to vector<64x1xf32>
    %129 = arith.addf %108, %128 : vector<64x1xf32>
    %c2 = arith.constant 2 : index
    %c0_74 = arith.constant 0 : index
    %c0_75 = arith.constant 0 : index
    %130 = vector.load %arg6[%c2, %c0_74, %c0_75] : memref<4x64x64xf32, #tpu.memory_space<vmem>>, vector<1x64x64xf32>
    %131 = vector.shape_cast %130 : vector<1x64x64xf32> to vector<64x64xf32>
    %c0_76 = arith.constant 0 : index
    %c0_77 = arith.constant 0 : index
    %132 = vector.load %arg12[%c0_76, %c0_77] : memref<64x512xf32, #tpu.memory_space<vmem>>, vector<64x512xf32>
    %cst_78 = arith.constant dense<0.000000e+00> : vector<64x512xf32>
    %133 = tpu.matmul %131, %132, %cst_78 {dimension_numbers = #tpu.dot_dimension_numbers<[1], [0], [0], [1], [0, 0, 1, 1], [], []>} : vector<64x64xf32>, vector<64x512xf32>, vector<64x512xf32> -> vector<64x512xf32>
    %c0_79 = arith.constant 0 : index
    %c0_80 = arith.constant 0 : index
    %134 = vector.load %arg7[%c0_79, %c0_80] : memref<64x1xf32, #tpu.memory_space<vmem>>, vector<64x1xf32>
    %135 = vector.broadcast %134 : vector<64x1xf32> to vector<64x512xf32>
    %136 = arith.addf %133, %135 : vector<64x512xf32>
    %cst_81 = arith.constant 0.000000e+00 : f32
    %137 = vector.broadcast %cst_81 : f32 to vector<64x512xf32>
    %138 = arith.maximumf %136, %137 : vector<64x512xf32>
    %cst_82 = arith.constant 0.000000e+00 : f32
    %139 = vector.shape_cast %17 : vector<1x512xi1> to vector<1x512xi1>
    %140 = vector.broadcast %139 : vector<1x512xi1> to vector<64x512xi1>
    %141 = vector.broadcast %cst_82 : f32 to vector<64x512xf32>
    %142 = arith.select %140, %138, %141 : vector<64x512xi1>, vector<64x512xf32>
    %c128 = arith.constant 128 : index
    %c0_83 = arith.constant 0 : index
    %143 = vector.load %arg13[%c128, %c0_83] : memref<256x512xf32, #tpu.memory_space<vmem>>, vector<64x512xf32>
    tpu.vector_store %arg13[%c128, %c0_83], %142 {strides = array<i32>} : memref<256x512xf32, #tpu.memory_space<vmem>>, vector<64x512xf32>,
    %cst_84 = arith.constant dense<0.000000e+00> : vector<64xf32>
    %144 = vector.multi_reduction <add>, %142, %cst_84 [1] : vector<64x512xf32> to vector<64xf32>
    %145 = vector.shape_cast %144 : vector<64xf32> to vector<64x1xf32>
    %146 = arith.addf %125, %145 : vector<64x1xf32>
    %147 = arith.mulf %142, %142 : vector<64x512xf32>
    %cst_85 = arith.constant dense<0.000000e+00> : vector<64xf32>
    %148 = vector.multi_reduction <add>, %147, %cst_85 [1] : vector<64x512xf32> to vector<64xf32>
    %149 = vector.shape_cast %148 : vector<64xf32> to vector<64x1xf32>
    %150 = arith.addf %129, %149 : vector<64x1xf32>
    %c3 = arith.constant 3 : index
    %c0_86 = arith.constant 0 : index
    %c0_87 = arith.constant 0 : index
    %151 = vector.load %arg6[%c3, %c0_86, %c0_87] : memref<4x64x64xf32, #tpu.memory_space<vmem>>, vector<1x64x64xf32>
    %152 = vector.shape_cast %151 : vector<1x64x64xf32> to vector<64x64xf32>
    %c0_88 = arith.constant 0 : index
    %c0_89 = arith.constant 0 : index
    %153 = vector.load %arg12[%c0_88, %c0_89] : memref<64x512xf32, #tpu.memory_space<vmem>>, vector<64x512xf32>
    %cst_90 = arith.constant dense<0.000000e+00> : vector<64x512xf32>
    %154 = tpu.matmul %152, %153, %cst_90 {dimension_numbers = #tpu.dot_dimension_numbers<[1], [0], [0], [1], [0, 0, 1, 1], [], []>} : vector<64x64xf32>, vector<64x512xf32>, vector<64x512xf32> -> vector<64x512xf32>
    %c0_91 = arith.constant 0 : index
    %c0_92 = arith.constant 0 : index
    %155 = vector.load %arg7[%c0_91, %c0_92] : memref<64x1xf32, #tpu.memory_space<vmem>>, vector<64x1xf32>
    %156 = vector.broadcast %155 : vector<64x1xf32> to vector<64x512xf32>
    %157 = arith.addf %154, %156 : vector<64x512xf32>
    %cst_93 = arith.constant 0.000000e+00 : f32
    %158 = vector.broadcast %cst_93 : f32 to vector<64x512xf32>
    %159 = arith.maximumf %157, %158 : vector<64x512xf32>
    %cst_94 = arith.constant 0.000000e+00 : f32
    %160 = vector.shape_cast %17 : vector<1x512xi1> to vector<1x512xi1>
    %161 = vector.broadcast %160 : vector<1x512xi1> to vector<64x512xi1>
    %162 = vector.broadcast %cst_94 : f32 to vector<64x512xf32>
    %163 = arith.select %161, %159, %162 : vector<64x512xi1>, vector<64x512xf32>
    %c192 = arith.constant 192 : index
    %c0_95 = arith.constant 0 : index
    %164 = vector.load %arg13[%c192, %c0_95] : memref<256x512xf32, #tpu.memory_space<vmem>>, vector<64x512xf32>
    tpu.vector_store %arg13[%c192, %c0_95], %163 {strides = array<i32>} : memref<256x512xf32, #tpu.memory_space<vmem>>, vector<64x512xf32>,
    %cst_96 = arith.constant dense<0.000000e+00> : vector<64xf32>
    %165 = vector.multi_reduction <add>, %163, %cst_96 [1] : vector<64x512xf32> to vector<64xf32>
    %166 = vector.shape_cast %165 : vector<64xf32> to vector<64x1xf32>
    %167 = arith.addf %146, %166 : vector<64x1xf32>
    %168 = arith.mulf %163, %163 : vector<64x512xf32>
    %cst_97 = arith.constant dense<0.000000e+00> : vector<64xf32>
    %169 = vector.multi_reduction <add>, %168, %cst_97 [1] : vector<64x512xf32> to vector<64xf32>
    %170 = vector.shape_cast %169 : vector<64xf32> to vector<64x1xf32>
    %171 = arith.addf %150, %170 : vector<64x1xf32>
    %cst_98 = arith.constant 6.37755089E-4 : f32
    %172 = vector.broadcast %cst_98 : f32 to vector<64x1xf32>
    %173 = arith.mulf %167, %172 : vector<64x1xf32>
    %cst_99 = arith.constant 6.37755089E-4 : f32
    %174 = vector.broadcast %cst_99 : f32 to vector<64x1xf32>
    %175 = arith.mulf %171, %174 : vector<64x1xf32>
    %176 = arith.mulf %173, %173 : vector<64x1xf32>
    %177 = arith.subf %175, %176 : vector<64x1xf32>
    %cst_100 = arith.constant 9.99999974E-6 : f32
    %178 = vector.broadcast %cst_100 : f32 to vector<64x1xf32>
    %179 = arith.addf %177, %178 : vector<64x1xf32>
    %180 = math.rsqrt %179 : vector<64x1xf32>
    %c0_101 = arith.constant 0 : index
    %c0_102 = arith.constant 0 : index
    %181 = vector.load %arg8[%c0_101, %c0_102] : memref<64x1xf32, #tpu.memory_space<vmem>>, vector<64x1xf32>
    %182 = arith.mulf %180, %181 : vector<64x1xf32>
    %c0_103 = arith.constant 0 : index
    %c0_104 = arith.constant 0 : index
    %183 = vector.load %arg9[%c0_103, %c0_104] : memref<64x1xf32, #tpu.memory_space<vmem>>, vector<64x1xf32>
    %184 = arith.mulf %173, %182 : vector<64x1xf32>
    %185 = arith.subf %183, %184 : vector<64x1xf32>
    %c0_105 = arith.constant 0 : index
    %c0_106 = arith.constant 0 : index
    %186 = vector.load %arg13[%c0_105, %c0_106] : memref<256x512xf32, #tpu.memory_space<vmem>>, vector<64x512xf32>
    %187 = vector.broadcast %182 : vector<64x1xf32> to vector<64x512xf32>
    %188 = arith.mulf %186, %187 : vector<64x512xf32>
    %189 = vector.broadcast %185 : vector<64x1xf32> to vector<64x512xf32>
    %190 = arith.addf %188, %189 : vector<64x512xf32>
    %cst_107 = arith.constant 0.000000e+00 : f32
    %191 = vector.shape_cast %17 : vector<1x512xi1> to vector<1x512xi1>
    %192 = vector.broadcast %191 : vector<1x512xi1> to vector<64x512xi1>
    %193 = vector.broadcast %cst_107 : f32 to vector<64x512xf32>
    %194 = arith.select %192, %190, %193 : vector<64x512xi1>, vector<64x512xf32>
    %c0_108 = arith.constant 0 : index
    %c0_109 = arith.constant 0 : index
    %195 = vector.load %arg10[%c0_108, %c0_109] : memref<9x64xf32, #tpu.memory_space<vmem>>, vector<9x64xf32>
    %cst_110 = arith.constant dense<0.000000e+00> : vector<9x512xf32>
    %196 = tpu.matmul %195, %194, %cst_110 {dimension_numbers = #tpu.dot_dimension_numbers<[1], [0], [0], [1], [0, 0, 1, 1], [], []>} : vector<9x64xf32>, vector<64x512xf32>, vector<9x512xf32> -> vector<9x512xf32>
    %197 = vector.extract_strided_slice %196 {offsets = [0, 0], sizes = [1, 512], strides = [1, 1]} : vector<9x512xf32> to vector<1x512xf32>
    %198 = vector.extract_strided_slice %196 {offsets = [1, 0], sizes = [1, 512], strides = [1, 1]} : vector<9x512xf32> to vector<1x512xf32>
    %199 = vector.extract_strided_slice %196 {offsets = [2, 0], sizes = [1, 512], strides = [1, 1]} : vector<9x512xf32> to vector<1x512xf32>
    %c511_i32 = arith.constant 511 : i32
    %200 = tpu.dynamic_rotate %199 by %c511_i32 dim 1 : vector<1x512xf32>, i32 -> vector<1x512xf32>
    %201 = arith.addf %197, %200 : vector<1x512xf32>
    %202 = vector.extract_strided_slice %196 {offsets = [3, 0], sizes = [1, 512], strides = [1, 1]} : vector<9x512xf32> to vector<1x512xf32>
    %203 = vector.extract_strided_slice %196 {offsets = [4, 0], sizes = [1, 512], strides = [1, 1]} : vector<9x512xf32> to vector<1x512xf32>
    %204 = vector.extract_strided_slice %196 {offsets = [5, 0], sizes = [1, 512], strides = [1, 1]} : vector<9x512xf32> to vector<1x512xf32>
    %c511_i32_111 = arith.constant 511 : i32
    %205 = tpu.dynamic_rotate %204 by %c511_i32_111 dim 1 : vector<1x512xf32>, i32 -> vector<1x512xf32>
    %206 = arith.addf %202, %205 : vector<1x512xf32>
    %207 = vector.extract_strided_slice %196 {offsets = [6, 0], sizes = [1, 512], strides = [1, 1]} : vector<9x512xf32> to vector<1x512xf32>
    %c496_i32 = arith.constant 496 : i32
    %208 = tpu.dynamic_rotate %207 by %c496_i32 dim 1 : vector<1x512xf32>, i32 -> vector<1x512xf32>
    %209 = arith.addf %201, %208 : vector<1x512xf32>
    %210 = vector.extract_strided_slice %196 {offsets = [7, 0], sizes = [1, 512], strides = [1, 1]} : vector<9x512xf32> to vector<1x512xf32>
    %c496_i32_112 = arith.constant 496 : i32
    %211 = tpu.dynamic_rotate %210 by %c496_i32_112 dim 1 : vector<1x512xf32>, i32 -> vector<1x512xf32>
    %212 = arith.addf %198, %211 : vector<1x512xf32>
    %213 = vector.extract_strided_slice %196 {offsets = [8, 0], sizes = [1, 512], strides = [1, 1]} : vector<9x512xf32> to vector<1x512xf32>
    %c495_i32 = arith.constant 495 : i32
    %214 = tpu.dynamic_rotate %213 by %c495_i32 dim 1 : vector<1x512xf32>, i32 -> vector<1x512xf32>
    %215 = arith.addf %209, %214 : vector<1x512xf32>
    %c64_113 = arith.constant 64 : index
    %c0_114 = arith.constant 0 : index
    %216 = vector.load %arg13[%c64_113, %c0_114] : memref<256x512xf32, #tpu.memory_space<vmem>>, vector<64x512xf32>
    %217 = vector.broadcast %182 : vector<64x1xf32> to vector<64x512xf32>
    %218 = arith.mulf %216, %217 : vector<64x512xf32>
    %219 = vector.broadcast %185 : vector<64x1xf32> to vector<64x512xf32>
    %220 = arith.addf %218, %219 : vector<64x512xf32>
    %cst_115 = arith.constant 0.000000e+00 : f32
    %221 = vector.shape_cast %17 : vector<1x512xi1> to vector<1x512xi1>
    %222 = vector.broadcast %221 : vector<1x512xi1> to vector<64x512xi1>
    %223 = vector.broadcast %cst_115 : f32 to vector<64x512xf32>
    %224 = arith.select %222, %220, %223 : vector<64x512xi1>, vector<64x512xf32>
    %c0_116 = arith.constant 0 : index
    %c0_117 = arith.constant 0 : index
    %225 = vector.load %arg10[%c0_116, %c0_117] : memref<9x64xf32, #tpu.memory_space<vmem>>, vector<9x64xf32>
    %cst_118 = arith.constant dense<0.000000e+00> : vector<9x512xf32>
    %226 = tpu.matmul %225, %224, %cst_118 {dimension_numbers = #tpu.dot_dimension_numbers<[1], [0], [0], [1], [0, 0, 1, 1], [], []>} : vector<9x64xf32>, vector<64x512xf32>, vector<9x512xf32> -> vector<9x512xf32>
    %227 = vector.extract_strided_slice %226 {offsets = [0, 0], sizes = [1, 512], strides = [1, 1]} : vector<9x512xf32> to vector<1x512xf32>
    %c1_i32_119 = arith.constant 1 : i32
    %228 = tpu.dynamic_rotate %227 by %c1_i32_119 dim 1 : vector<1x512xf32>, i32 -> vector<1x512xf32>
    %229 = arith.addf %212, %228 : vector<1x512xf32>
    %230 = vector.extract_strided_slice %226 {offsets = [1, 0], sizes = [1, 512], strides = [1, 1]} : vector<9x512xf32> to vector<1x512xf32>
    %231 = arith.addf %215, %230 : vector<1x512xf32>
    %232 = vector.extract_strided_slice %226 {offsets = [2, 0], sizes = [1, 512], strides = [1, 1]} : vector<9x512xf32> to vector<1x512xf32>
    %233 = arith.addf %229, %232 : vector<1x512xf32>
    %234 = vector.extract_strided_slice %226 {offsets = [3, 0], sizes = [1, 512], strides = [1, 1]} : vector<9x512xf32> to vector<1x512xf32>
    %c1_i32_120 = arith.constant 1 : i32
    %235 = tpu.dynamic_rotate %234 by %c1_i32_120 dim 1 : vector<1x512xf32>, i32 -> vector<1x512xf32>
    %236 = arith.addf %203, %235 : vector<1x512xf32>
    %237 = vector.extract_strided_slice %226 {offsets = [4, 0], sizes = [1, 512], strides = [1, 1]} : vector<9x512xf32> to vector<1x512xf32>
    %238 = arith.addf %206, %237 : vector<1x512xf32>
    %239 = vector.extract_strided_slice %226 {offsets = [5, 0], sizes = [1, 512], strides = [1, 1]} : vector<9x512xf32> to vector<1x512xf32>
    %240 = arith.addf %236, %239 : vector<1x512xf32>
    %241 = vector.extract_strided_slice %226 {offsets = [6, 0], sizes = [1, 512], strides = [1, 1]} : vector<9x512xf32> to vector<1x512xf32>
    %c497_i32 = arith.constant 497 : i32
    %242 = tpu.dynamic_rotate %241 by %c497_i32 dim 1 : vector<1x512xf32>, i32 -> vector<1x512xf32>
    %243 = arith.addf %233, %242 : vector<1x512xf32>
    %244 = vector.extract_strided_slice %226 {offsets = [7, 0], sizes = [1, 512], strides = [1, 1]} : vector<9x512xf32> to vector<1x512xf32>
    %c496_i32_121 = arith.constant 496 : i32
    %245 = tpu.dynamic_rotate %244 by %c496_i32_121 dim 1 : vector<1x512xf32>, i32 -> vector<1x512xf32>
    %246 = arith.addf %231, %245 : vector<1x512xf32>
    %247 = vector.extract_strided_slice %226 {offsets = [8, 0], sizes = [1, 512], strides = [1, 1]} : vector<9x512xf32> to vector<1x512xf32>
    %c496_i32_122 = arith.constant 496 : i32
    %248 = tpu.dynamic_rotate %247 by %c496_i32_122 dim 1 : vector<1x512xf32>, i32 -> vector<1x512xf32>
    %249 = arith.addf %243, %248 : vector<1x512xf32>
    %c128_123 = arith.constant 128 : index
    %c0_124 = arith.constant 0 : index
    %250 = vector.load %arg13[%c128_123, %c0_124] : memref<256x512xf32, #tpu.memory_space<vmem>>, vector<64x512xf32>
    %251 = vector.broadcast %182 : vector<64x1xf32> to vector<64x512xf32>
    %252 = arith.mulf %250, %251 : vector<64x512xf32>
    %253 = vector.broadcast %185 : vector<64x1xf32> to vector<64x512xf32>
    %254 = arith.addf %252, %253 : vector<64x512xf32>
    %cst_125 = arith.constant 0.000000e+00 : f32
    %255 = vector.shape_cast %17 : vector<1x512xi1> to vector<1x512xi1>
    %256 = vector.broadcast %255 : vector<1x512xi1> to vector<64x512xi1>
    %257 = vector.broadcast %cst_125 : f32 to vector<64x512xf32>
    %258 = arith.select %256, %254, %257 : vector<64x512xi1>, vector<64x512xf32>
    %c0_126 = arith.constant 0 : index
    %c0_127 = arith.constant 0 : index
    %259 = vector.load %arg10[%c0_126, %c0_127] : memref<9x64xf32, #tpu.memory_space<vmem>>, vector<9x64xf32>
    %cst_128 = arith.constant dense<0.000000e+00> : vector<9x512xf32>
    %260 = tpu.matmul %259, %258, %cst_128 {dimension_numbers = #tpu.dot_dimension_numbers<[1], [0], [0], [1], [0, 0, 1, 1], [], []>} : vector<9x64xf32>, vector<64x512xf32>, vector<9x512xf32> -> vector<9x512xf32>
    %261 = vector.extract_strided_slice %260 {offsets = [0, 0], sizes = [1, 512], strides = [1, 1]} : vector<9x512xf32> to vector<1x512xf32>
    %c16_i32 = arith.constant 16 : i32
    %262 = tpu.dynamic_rotate %261 by %c16_i32 dim 1 : vector<1x512xf32>, i32 -> vector<1x512xf32>
    %263 = arith.addf %238, %262 : vector<1x512xf32>
    %264 = vector.extract_strided_slice %260 {offsets = [1, 0], sizes = [1, 512], strides = [1, 1]} : vector<9x512xf32> to vector<1x512xf32>
    %c16_i32_129 = arith.constant 16 : i32
    %265 = tpu.dynamic_rotate %264 by %c16_i32_129 dim 1 : vector<1x512xf32>, i32 -> vector<1x512xf32>
    %266 = arith.addf %240, %265 : vector<1x512xf32>
    %267 = vector.extract_strided_slice %260 {offsets = [2, 0], sizes = [1, 512], strides = [1, 1]} : vector<9x512xf32> to vector<1x512xf32>
    %c15_i32_130 = arith.constant 15 : i32
    %268 = tpu.dynamic_rotate %267 by %c15_i32_130 dim 1 : vector<1x512xf32>, i32 -> vector<1x512xf32>
    %269 = arith.addf %263, %268 : vector<1x512xf32>
    %270 = vector.extract_strided_slice %260 {offsets = [3, 0], sizes = [1, 512], strides = [1, 1]} : vector<9x512xf32> to vector<1x512xf32>
    %271 = arith.addf %246, %270 : vector<1x512xf32>
    %272 = vector.extract_strided_slice %260 {offsets = [4, 0], sizes = [1, 512], strides = [1, 1]} : vector<9x512xf32> to vector<1x512xf32>
    %273 = arith.addf %249, %272 : vector<1x512xf32>
    %274 = vector.extract_strided_slice %260 {offsets = [5, 0], sizes = [1, 512], strides = [1, 1]} : vector<9x512xf32> to vector<1x512xf32>
    %c511_i32_131 = arith.constant 511 : i32
    %275 = tpu.dynamic_rotate %274 by %c511_i32_131 dim 1 : vector<1x512xf32>, i32 -> vector<1x512xf32>
    %276 = arith.addf %271, %275 : vector<1x512xf32>
    %277 = vector.extract_strided_slice %260 {offsets = [6, 0], sizes = [1, 512], strides = [1, 1]} : vector<9x512xf32> to vector<1x512xf32>
    %278 = arith.addf %269, %277 : vector<1x512xf32>
    %279 = vector.extract_strided_slice %260 {offsets = [7, 0], sizes = [1, 512], strides = [1, 1]} : vector<9x512xf32> to vector<1x512xf32>
    %280 = arith.addf %266, %279 : vector<1x512xf32>
    %281 = vector.extract_strided_slice %260 {offsets = [8, 0], sizes = [1, 512], strides = [1, 1]} : vector<9x512xf32> to vector<1x512xf32>
    %c511_i32_132 = arith.constant 511 : i32
    %282 = tpu.dynamic_rotate %281 by %c511_i32_132 dim 1 : vector<1x512xf32>, i32 -> vector<1x512xf32>
    %283 = arith.addf %278, %282 : vector<1x512xf32>
    %c192_133 = arith.constant 192 : index
    %c0_134 = arith.constant 0 : index
    %284 = vector.load %arg13[%c192_133, %c0_134] : memref<256x512xf32, #tpu.memory_space<vmem>>, vector<64x512xf32>
    %285 = vector.broadcast %182 : vector<64x1xf32> to vector<64x512xf32>
    %286 = arith.mulf %284, %285 : vector<64x512xf32>
    %287 = vector.broadcast %185 : vector<64x1xf32> to vector<64x512xf32>
    %288 = arith.addf %286, %287 : vector<64x512xf32>
    %cst_135 = arith.constant 0.000000e+00 : f32
    %289 = vector.shape_cast %17 : vector<1x512xi1> to vector<1x512xi1>
    %290 = vector.broadcast %289 : vector<1x512xi1> to vector<64x512xi1>
    %291 = vector.broadcast %cst_135 : f32 to vector<64x512xf32>
    %292 = arith.select %290, %288, %291 : vector<64x512xi1>, vector<64x512xf32>
    %c0_136 = arith.constant 0 : index
    %c0_137 = arith.constant 0 : index
    %293 = vector.load %arg10[%c0_136, %c0_137] : memref<9x64xf32, #tpu.memory_space<vmem>>, vector<9x64xf32>
    %cst_138 = arith.constant dense<0.000000e+00> : vector<9x512xf32>
    %294 = tpu.matmul %293, %292, %cst_138 {dimension_numbers = #tpu.dot_dimension_numbers<[1], [0], [0], [1], [0, 0, 1, 1], [], []>} : vector<9x64xf32>, vector<64x512xf32>, vector<9x512xf32> -> vector<9x512xf32>
    %295 = vector.extract_strided_slice %294 {offsets = [0, 0], sizes = [1, 512], strides = [1, 1]} : vector<9x512xf32> to vector<1x512xf32>
    %c17_i32 = arith.constant 17 : i32
    %296 = tpu.dynamic_rotate %295 by %c17_i32 dim 1 : vector<1x512xf32>, i32 -> vector<1x512xf32>
    %297 = arith.addf %280, %296 : vector<1x512xf32>
    %298 = vector.extract_strided_slice %294 {offsets = [1, 0], sizes = [1, 512], strides = [1, 1]} : vector<9x512xf32> to vector<1x512xf32>
    %c16_i32_139 = arith.constant 16 : i32
    %299 = tpu.dynamic_rotate %298 by %c16_i32_139 dim 1 : vector<1x512xf32>, i32 -> vector<1x512xf32>
    %300 = arith.addf %283, %299 : vector<1x512xf32>
    %301 = vector.extract_strided_slice %294 {offsets = [2, 0], sizes = [1, 512], strides = [1, 1]} : vector<9x512xf32> to vector<1x512xf32>
    %c16_i32_140 = arith.constant 16 : i32
    %302 = tpu.dynamic_rotate %301 by %c16_i32_140 dim 1 : vector<1x512xf32>, i32 -> vector<1x512xf32>
    %303 = arith.addf %297, %302 : vector<1x512xf32>
    %304 = vector.extract_strided_slice %294 {offsets = [3, 0], sizes = [1, 512], strides = [1, 1]} : vector<9x512xf32> to vector<1x512xf32>
    %c1_i32_141 = arith.constant 1 : i32
    %305 = tpu.dynamic_rotate %304 by %c1_i32_141 dim 1 : vector<1x512xf32>, i32 -> vector<1x512xf32>
    %306 = arith.addf %273, %305 : vector<1x512xf32>
    %307 = vector.extract_strided_slice %294 {offsets = [4, 0], sizes = [1, 512], strides = [1, 1]} : vector<9x512xf32> to vector<1x512xf32>
    %308 = arith.addf %276, %307 : vector<1x512xf32>
    %309 = vector.extract_strided_slice %294 {offsets = [5, 0], sizes = [1, 512], strides = [1, 1]} : vector<9x512xf32> to vector<1x512xf32>
    %310 = arith.addf %306, %309 : vector<1x512xf32>
    %311 = vector.extract_strided_slice %294 {offsets = [6, 0], sizes = [1, 512], strides = [1, 1]} : vector<9x512xf32> to vector<1x512xf32>
    %c1_i32_142 = arith.constant 1 : i32
    %312 = tpu.dynamic_rotate %311 by %c1_i32_142 dim 1 : vector<1x512xf32>, i32 -> vector<1x512xf32>
    %313 = arith.addf %303, %312 : vector<1x512xf32>
    %314 = vector.extract_strided_slice %294 {offsets = [7, 0], sizes = [1, 512], strides = [1, 1]} : vector<9x512xf32> to vector<1x512xf32>
    %315 = arith.addf %300, %314 : vector<1x512xf32>
    %316 = vector.extract_strided_slice %294 {offsets = [8, 0], sizes = [1, 512], strides = [1, 1]} : vector<9x512xf32> to vector<1x512xf32>
    %317 = arith.addf %313, %316 : vector<1x512xf32>
    %c0_143 = arith.constant 0 : index
    %318 = memref.load %arg1[%c0_143] : memref<3xf32, #tpu.memory_space<smem>>
    %319 = vector.broadcast %318 : f32 to vector<1x512xf32>
    %320 = arith.addf %317, %319 : vector<1x512xf32>
    %cst_144 = arith.constant 0.000000e+00 : f32
    %321 = vector.broadcast %cst_144 : f32 to vector<1x512xf32>
    %322 = arith.maximumf %320, %321 : vector<1x512xf32>
    %cst_145 = arith.constant 0.000000e+00 : f32
    %323 = vector.broadcast %cst_145 : f32 to vector<1x512xf32>
    %324 = arith.select %17, %322, %323 : vector<1x512xi1>, vector<1x512xf32>
    %325 = vector.shape_cast %324 : vector<1x512xf32> to vector<1x1x512xf32>
    %cst_146 = arith.constant dense<0.000000e+00> : vector<1xf32>
    %326 = vector.multi_reduction <add>, %325, %cst_146 [1, 2] : vector<1x1x512xf32> to vector<1xf32>
    %327 = vector.shape_cast %326 : vector<1xf32> to vector<1x1x1xf32>
    %328 = vector.extract %327[0, 0, 0] : f32 from vector<1x1x1xf32>
    %cst_147 = arith.constant 0.000000e+00 : f32
    %329 = arith.addf %cst_147, %328 : f32
    %330 = arith.mulf %324, %324 : vector<1x512xf32>
    %331 = vector.shape_cast %330 : vector<1x512xf32> to vector<1x1x512xf32>
    %cst_148 = arith.constant dense<0.000000e+00> : vector<1xf32>
    %332 = vector.multi_reduction <add>, %331, %cst_148 [1, 2] : vector<1x1x512xf32> to vector<1xf32>
    %333 = vector.shape_cast %332 : vector<1xf32> to vector<1x1x1xf32>
    %334 = vector.extract %333[0, 0, 0] : f32 from vector<1x1x1xf32>
    %cst_149 = arith.constant 0.000000e+00 : f32
    %335 = arith.addf %cst_149, %334 : f32
    %c0_150 = arith.constant 0 : index
    %336 = memref.load %arg1[%c0_150] : memref<3xf32, #tpu.memory_space<smem>>
    %337 = vector.broadcast %336 : f32 to vector<1x512xf32>
    %338 = arith.addf %315, %337 : vector<1x512xf32>
    %cst_151 = arith.constant 0.000000e+00 : f32
    %339 = vector.broadcast %cst_151 : f32 to vector<1x512xf32>
    %340 = arith.maximumf %338, %339 : vector<1x512xf32>
    %cst_152 = arith.constant 0.000000e+00 : f32
    %341 = vector.broadcast %cst_152 : f32 to vector<1x512xf32>
    %342 = arith.select %17, %340, %341 : vector<1x512xi1>, vector<1x512xf32>
    %343 = vector.shape_cast %342 : vector<1x512xf32> to vector<1x1x512xf32>
    %cst_153 = arith.constant dense<0.000000e+00> : vector<1xf32>
    %344 = vector.multi_reduction <add>, %343, %cst_153 [1, 2] : vector<1x1x512xf32> to vector<1xf32>
    %345 = vector.shape_cast %344 : vector<1xf32> to vector<1x1x1xf32>
    %346 = vector.extract %345[0, 0, 0] : f32 from vector<1x1x1xf32>
    %347 = arith.addf %329, %346 : f32
    %348 = arith.mulf %342, %342 : vector<1x512xf32>
    %349 = vector.shape_cast %348 : vector<1x512xf32> to vector<1x1x512xf32>
    %cst_154 = arith.constant dense<0.000000e+00> : vector<1xf32>
    %350 = vector.multi_reduction <add>, %349, %cst_154 [1, 2] : vector<1x1x512xf32> to vector<1xf32>
    %351 = vector.shape_cast %350 : vector<1xf32> to vector<1x1x1xf32>
    %352 = vector.extract %351[0, 0, 0] : f32 from vector<1x1x1xf32>
    %353 = arith.addf %335, %352 : f32
    %c0_155 = arith.constant 0 : index
    %354 = memref.load %arg1[%c0_155] : memref<3xf32, #tpu.memory_space<smem>>
    %355 = vector.broadcast %354 : f32 to vector<1x512xf32>
    %356 = arith.addf %310, %355 : vector<1x512xf32>
    %cst_156 = arith.constant 0.000000e+00 : f32
    %357 = vector.broadcast %cst_156 : f32 to vector<1x512xf32>
    %358 = arith.maximumf %356, %357 : vector<1x512xf32>
    %cst_157 = arith.constant 0.000000e+00 : f32
    %359 = vector.broadcast %cst_157 : f32 to vector<1x512xf32>
    %360 = arith.select %17, %358, %359 : vector<1x512xi1>, vector<1x512xf32>
    %361 = vector.shape_cast %360 : vector<1x512xf32> to vector<1x1x512xf32>
    %cst_158 = arith.constant dense<0.000000e+00> : vector<1xf32>
    %362 = vector.multi_reduction <add>, %361, %cst_158 [1, 2] : vector<1x1x512xf32> to vector<1xf32>
    %363 = vector.shape_cast %362 : vector<1xf32> to vector<1x1x1xf32>
    %364 = vector.extract %363[0, 0, 0] : f32 from vector<1x1x1xf32>
    %365 = arith.addf %347, %364 : f32
    %366 = arith.mulf %360, %360 : vector<1x512xf32>
    %367 = vector.shape_cast %366 : vector<1x512xf32> to vector<1x1x512xf32>
    %cst_159 = arith.constant dense<0.000000e+00> : vector<1xf32>
    %368 = vector.multi_reduction <add>, %367, %cst_159 [1, 2] : vector<1x1x512xf32> to vector<1xf32>
    %369 = vector.shape_cast %368 : vector<1xf32> to vector<1x1x1xf32>
    %370 = vector.extract %369[0, 0, 0] : f32 from vector<1x1x1xf32>
    %371 = arith.addf %353, %370 : f32
    %c0_160 = arith.constant 0 : index
    %372 = memref.load %arg1[%c0_160] : memref<3xf32, #tpu.memory_space<smem>>
    %373 = vector.broadcast %372 : f32 to vector<1x512xf32>
    %374 = arith.addf %308, %373 : vector<1x512xf32>
    %cst_161 = arith.constant 0.000000e+00 : f32
    %375 = vector.broadcast %cst_161 : f32 to vector<1x512xf32>
    %376 = arith.maximumf %374, %375 : vector<1x512xf32>
    %cst_162 = arith.constant 0.000000e+00 : f32
    %377 = vector.broadcast %cst_162 : f32 to vector<1x512xf32>
    %378 = arith.select %17, %376, %377 : vector<1x512xi1>, vector<1x512xf32>
    %379 = vector.shape_cast %378 : vector<1x512xf32> to vector<1x1x512xf32>
    %cst_163 = arith.constant dense<0.000000e+00> : vector<1xf32>
    %380 = vector.multi_reduction <add>, %379, %cst_163 [1, 2] : vector<1x1x512xf32> to vector<1xf32>
    %381 = vector.shape_cast %380 : vector<1xf32> to vector<1x1x1xf32>
    %382 = vector.extract %381[0, 0, 0] : f32 from vector<1x1x1xf32>
    %383 = arith.addf %365, %382 : f32
    %384 = arith.mulf %378, %378 : vector<1x512xf32>
    %385 = vector.shape_cast %384 : vector<1x512xf32> to vector<1x1x512xf32>
    %cst_164 = arith.constant dense<0.000000e+00> : vector<1xf32>
    %386 = vector.multi_reduction <add>, %385, %cst_164 [1, 2] : vector<1x1x512xf32> to vector<1xf32>
    %387 = vector.shape_cast %386 : vector<1xf32> to vector<1x1x1xf32>
    %388 = vector.extract %387[0, 0, 0] : f32 from vector<1x1x1xf32>
    %389 = arith.addf %371, %388 : f32
    %cst_165 = arith.constant 6.37755089E-4 : f32
    %390 = arith.mulf %383, %cst_165 : f32
    %cst_166 = arith.constant 6.37755089E-4 : f32
    %391 = arith.mulf %389, %cst_166 : f32
    %392 = arith.mulf %390, %390 : f32
    %393 = arith.subf %391, %392 : f32
    %cst_167 = arith.constant 9.99999974E-6 : f32
    %394 = arith.addf %393, %cst_167 : f32
    %395 = math.rsqrt %394 : f32
    %c1_168 = arith.constant 1 : index
    %396 = memref.load %arg1[%c1_168] : memref<3xf32, #tpu.memory_space<smem>>
    %397 = arith.mulf %395, %396 : f32
    %c2_169 = arith.constant 2 : index
    %398 = memref.load %arg1[%c2_169] : memref<3xf32, #tpu.memory_space<smem>>
    %399 = arith.mulf %390, %397 : f32
    %400 = arith.subf %398, %399 : f32
    %401 = vector.broadcast %397 : f32 to vector<1x512xf32>
    %402 = arith.mulf %322, %401 : vector<1x512xf32>
    %403 = vector.broadcast %400 : f32 to vector<1x512xf32>
    %404 = arith.addf %402, %403 : vector<1x512xf32>
    %cst_170 = arith.constant 0.000000e+00 : f32
    %405 = vector.broadcast %cst_170 : f32 to vector<1x512xf32>
    %406 = arith.subf %405, %404 : vector<1x512xf32>
    %407 = math.exp %406 : vector<1x512xf32>
    %cst_171 = arith.constant 1.000000e+00 : f32
    %408 = vector.broadcast %cst_171 : f32 to vector<1x512xf32>
    %409 = arith.addf %408, %407 : vector<1x512xf32>
    %cst_172 = arith.constant 1.000000e+00 : f32
    %410 = vector.broadcast %cst_172 : f32 to vector<1x512xf32>
    %411 = arith.divf %410, %409 : vector<1x512xf32>
    %412 = vector.broadcast %397 : f32 to vector<1x512xf32>
    %413 = arith.mulf %340, %412 : vector<1x512xf32>
    %414 = vector.broadcast %400 : f32 to vector<1x512xf32>
    %415 = arith.addf %413, %414 : vector<1x512xf32>
    %cst_173 = arith.constant 0.000000e+00 : f32
    %416 = vector.broadcast %cst_173 : f32 to vector<1x512xf32>
    %417 = arith.subf %416, %415 : vector<1x512xf32>
    %418 = math.exp %417 : vector<1x512xf32>
    %cst_174 = arith.constant 1.000000e+00 : f32
    %419 = vector.broadcast %cst_174 : f32 to vector<1x512xf32>
    %420 = arith.addf %419, %418 : vector<1x512xf32>
    %cst_175 = arith.constant 1.000000e+00 : f32
    %421 = vector.broadcast %cst_175 : f32 to vector<1x512xf32>
    %422 = arith.divf %421, %420 : vector<1x512xf32>
    %423 = vector.broadcast %397 : f32 to vector<1x512xf32>
    %424 = arith.mulf %358, %423 : vector<1x512xf32>
    %425 = vector.broadcast %400 : f32 to vector<1x512xf32>
    %426 = arith.addf %424, %425 : vector<1x512xf32>
    %cst_176 = arith.constant 0.000000e+00 : f32
    %427 = vector.broadcast %cst_176 : f32 to vector<1x512xf32>
    %428 = arith.subf %427, %426 : vector<1x512xf32>
    %429 = math.exp %428 : vector<1x512xf32>
    %cst_177 = arith.constant 1.000000e+00 : f32
    %430 = vector.broadcast %cst_177 : f32 to vector<1x512xf32>
    %431 = arith.addf %430, %429 : vector<1x512xf32>
    %cst_178 = arith.constant 1.000000e+00 : f32
    %432 = vector.broadcast %cst_178 : f32 to vector<1x512xf32>
    %433 = arith.divf %432, %431 : vector<1x512xf32>
    %434 = vector.broadcast %397 : f32 to vector<1x512xf32>
    %435 = arith.mulf %376, %434 : vector<1x512xf32>
    %436 = vector.broadcast %400 : f32 to vector<1x512xf32>
    %437 = arith.addf %435, %436 : vector<1x512xf32>
    %cst_179 = arith.constant 0.000000e+00 : f32
    %438 = vector.broadcast %cst_179 : f32 to vector<1x512xf32>
    %439 = arith.subf %438, %437 : vector<1x512xf32>
    %440 = math.exp %439 : vector<1x512xf32>
    %cst_180 = arith.constant 1.000000e+00 : f32
    %441 = vector.broadcast %cst_180 : f32 to vector<1x512xf32>
    %442 = arith.addf %441, %440 : vector<1x512xf32>
    %cst_181 = arith.constant 1.000000e+00 : f32
    %443 = vector.broadcast %cst_181 : f32 to vector<1x512xf32>
    %444 = arith.divf %443, %442 : vector<1x512xf32>
    %445 = tpu.concatenate %411, %422, %433, %444 in 0 : vector<1x512xf32>, vector<1x512xf32>, vector<1x512xf32>, vector<1x512xf32> -> vector<4x512xf32>
    %c0_182 = arith.constant 0 : index
    %c0_183 = arith.constant 0 : index
    %446 = vector.load %arg11[%c0_182, %c0_183] : memref<4x512xf32, #tpu.memory_space<vmem>>, vector<4x512xf32>
    tpu.vector_store %arg11[%c0_182, %c0_183], %445 {strides = array<i32>} : memref<4x512xf32, #tpu.memory_space<vmem>>, vector<4x512xf32>,
    return
  }
}

</mosaic_0001>

<llo_original>
// kernel: decoder_forward.1
$region0: #{decoder_forward.1}
  #allocation0 [shape = 'u32[]', space=smem, size = 0x4, offset = 0x4, fixed_abs, tag = 'smem constant byte address 0x4 - core index']
  #allocation1 [shape = 'u32[144,128]{1,0:T(1,128)}', space=vmem, size = 0x12000, scoped, tag = 'internal scratch']
  #allocation2 [shape = 'f32[64,512]{1,0:T(8,128)}', space=vmem, size = 0x20000, scoped, tag = 'scratch operand']
  #allocation3 [shape = 'f32[256,512]{1,0:T(8,128)}', space=vmem, size = 0x80000, scoped, tag = 'scratch operand']
  %s0 = inlined_call_operand.vmem [shape: f32[2,2], index: 0, kind: input, shape index: {}]
  %s1 = inlined_call_operand.vmem [shape: f32[3], index: 1, kind: input, shape index: {}]
  %s2 = inlined_call_operand.vmem [shape: f32[64,256], index: 2, kind: input, shape index: {}]
  %s3 = inlined_call_operand.vmem [shape: f32[2,64,256], index: 3, kind: input, shape index: {}]
  %s4 = inlined_call_operand.vmem [shape: f32[64,1], index: 4, kind: input, shape index: {}]
  %s5 = inlined_call_operand.vmem [shape: f32[64,1], index: 5, kind: input, shape index: {}]
  %s6 = inlined_call_operand.vmem [shape: f32[4,64,64], index: 6, kind: input, shape index: {}]
  %s7 = inlined_call_operand.vmem [shape: f32[64,1], index: 7, kind: input, shape index: {}]
  %s8 = inlined_call_operand.vmem [shape: f32[64,1], index: 8, kind: input, shape index: {}]
  %s9 = inlined_call_operand.vmem [shape: f32[64,1], index: 9, kind: input, shape index: {}]
  %s10 = inlined_call_operand.vmem [shape: f32[9,64], index: 10, kind: input, shape index: {}]
  %s11 = inlined_call_operand.vmem [shape: f32[4,512], index: 11, kind: output, shape index: {}]
  %s12 = sld [smem:[#allocation0]]
  $region62: #{decoder_forward.1} parent=0
    _
  %s14 = ssub.s32 1, %s12
  %s15 = scalar_select 0, %s14, %s12
  $region1: #{decoder_forward.1} parent=0
    #allocation4 [shape = 'u8[1024]{0}', space=smem, size = 0x400, scoped, tag = 'input window, operand 0, single buffered']
    #allocation5 [shape = 's32[1]{0}', space=sflag, size = 0x4, scoped, tag = 'scoped memory for decoder_forward.1']
    #allocation6 [shape = 'u8[512]{0}', space=smem, size = 0x200, scoped, tag = 'input window, operand 1, single buffered']
    #allocation7 [shape = 's32[1]{0}', space=sflag, size = 0x4, scoped, tag = 'scoped memory for decoder_forward.1']
    %16 = vsyncpa [#allocation5], 0
    %17 = vsyncpa [#allocation7], 0
    // Predicated region
    $region2: #{decoder_forward.1} parent=1 // pred_check
      _
    $region3: #{decoder_forward.1} parent=1 // pred_check_branch
      %19 = sbr.rel (0) target = $region5
    $region4: #{decoder_forward.1} parent=1 // pred_region
      %s21 = ssub.s32 32, 32
      %22 = vsyncadd [#allocation5], %s21
      %s24 = sshll.u32 %s0, 4
      %s25 = int_to_ptr.vmem [resolvable:$true] %s24
      %27 = dma.vmem_to_smem %s25, 32, [#allocation4], [#allocation5]
    $region5: #{decoder_forward.1} parent=1 // pred_fallthru
      _
    // Predicated region
    $region6: #{decoder_forward.1} parent=1 // pred_check
      _
    $region7: #{decoder_forward.1} parent=1 // pred_check_branch
      %29 = sbr.rel (0) target = $region9
    $region8: #{decoder_forward.1} parent=1 // pred_region
      %s31 = ssub.s32 16, 16
      %32 = vsyncadd [#allocation7], %s31
      %s34 = sshll.u32 %s1, 4
      %s35 = int_to_ptr.vmem [resolvable:$true] %s34
      %37 = dma.vmem_to_smem %s35, 16, [#allocation6], [#allocation7]
    $region9: #{decoder_forward.1} parent=1 // pred_fallthru
      _
    // Predicated region
    $region10: #{decoder_forward.1} parent=1 // pred_check
      _
    $region11: #{decoder_forward.1} parent=1 // pred_check_branch
      %39 = sbr.rel (0) target = $region13
    $region12: #{decoder_forward.1} parent=1 // pred_region
      _
    $region13: #{decoder_forward.1} parent=1 // pred_fallthru
      _
    // Predicated region
    $region14: #{decoder_forward.1} parent=1 // pred_check
      _
    $region15: #{decoder_forward.1} parent=1 // pred_check_branch
      %41 = sbr.rel (0) target = $region17
    $region16: #{decoder_forward.1} parent=1 // pred_region
      _
    $region17: #{decoder_forward.1} parent=1 // pred_fallthru
      _
    // Predicated region
    $region18: #{decoder_forward.1} parent=1 // pred_check
      _
    $region19: #{decoder_forward.1} parent=1 // pred_check_branch
      %43 = sbr.rel (0) target = $region21
    $region20: #{decoder_forward.1} parent=1 // pred_region
      _
    $region21: #{decoder_forward.1} parent=1 // pred_fallthru
      _
    // Predicated region
    $region22: #{decoder_forward.1} parent=1 // pred_check
      _
    $region23: #{decoder_forward.1} parent=1 // pred_check_branch
      %45 = sbr.rel (0) target = $region25
    $region24: #{decoder_forward.1} parent=1 // pred_region
      _
    $region25: #{decoder_forward.1} parent=1 // pred_fallthru
      _
    // Predicated region
    $region26: #{decoder_forward.1} parent=1 // pred_check
      _
    $region27: #{decoder_forward.1} parent=1 // pred_check_branch
      %47 = sbr.rel (0) target = $region29
    $region28: #{decoder_forward.1} parent=1 // pred_region
      _
    $region29: #{decoder_forward.1} parent=1 // pred_fallthru
      _
    // Predicated region
    $region30: #{decoder_forward.1} parent=1 // pred_check
      _
    $region31: #{decoder_forward.1} parent=1 // pred_check_branch
      %49 = sbr.rel (0) target = $region33
    $region32: #{decoder_forward.1} parent=1 // pred_region
      _
    $region33: #{decoder_forward.1} parent=1 // pred_fallthru
      _
    // Predicated region
    $region34: #{decoder_forward.1} parent=1 // pred_check
      _
    $region35: #{decoder_forward.1} parent=1 // pred_check_branch
      %51 = sbr.rel (0) target = $region37
    $region36: #{decoder_forward.1} parent=1 // pred_region
      _
    $region37: #{decoder_forward.1} parent=1 // pred_fallthru
      _
    // Predicated region
    $region38: #{decoder_forward.1} parent=1 // pred_check
      _
    $region39: #{decoder_forward.1} parent=1 // pred_check_branch
      %53 = sbr.rel (0) target = $region41
    $region40: #{decoder_forward.1} parent=1 // pred_region
      _
    $region41: #{decoder_forward.1} parent=1 // pred_fallthru
      _
    // Predicated region
    $region42: #{decoder_forward.1} parent=1 // pred_check
      _
    $region43: #{decoder_forward.1} parent=1 // pred_check_branch
      %55 = sbr.rel (0) target = $region45
    $region44: #{decoder_forward.1} parent=1 // pred_region
      _
    $region45: #{decoder_forward.1} parent=1 // pred_fallthru
      _
    // Predicated region
    $region46: #{decoder_forward.1} parent=1 // pred_check
      _
    $region47: #{decoder_forward.1} parent=1 // pred_check_branch
      %57 = sbr.rel (0) target = $region49
    $region48: #{decoder_forward.1} parent=1 // pred_region
      %58 = dma.done [#allocation5], 32
    $region49: #{decoder_forward.1} parent=1 // pred_fallthru
      _
    // Predicated region
    $region50: #{decoder_forward.1} parent=1 // pred_check
      _
    $region51: #{decoder_forward.1} parent=1 // pred_check_branch
      %60 = sbr.rel (0) target = $region53
    $region52: #{decoder_forward.1} parent=1 // pred_region
      %61 = dma.done [#allocation7], 16
    $region53: #{decoder_forward.1} parent=1 // pred_fallthru
      _
    %62 = sfence
    %v63 = vlaneseq
    %v64 = vand.u32 %v63, 127
    %v65 = vadd.s32 %v64, 128
    %v66 = vadd.s32 %v64, 256
    %v67 = vadd.s32 %v64, 384
    %v68 = vand.u32 %v64, 255
    %v69 = vand.u32 %v65, 255
    %v70 = vand.u32 %v66, 255
    %v71 = vand.u32 %v67, 255
    %v72 = vshra.s32 %v68, 4
    %v73 = vshra.s32 %v69, 4
    %v74 = vshra.s32 %v70, 4
    %v75 = vshra.s32 %v71, 4
    %v76 = vand.u32 %v68, 15
    %v77 = vand.u32 %v69, 15
    %v78 = vand.u32 %v70, 15
    %v79 = vand.u32 %v71, 15
    %vm80 = vcmp.ge.s32.totalorder %v72, 1
    %vm81 = vcmp.ge.s32.totalorder %v73, 1
    %vm82 = vcmp.ge.s32.totalorder %v74, 1
    %vm83 = vcmp.ge.s32.totalorder %v75, 1
    %vm84 = vcmp.le.s32.totalorder %v72, 14
    %vm85 = vcmp.le.s32.totalorder %v73, 14
    %vm86 = vcmp.le.s32.totalorder %v74, 14
    %vm87 = vcmp.le.s32.totalorder %v75, 14
    %vm88 = vmand %vm80, %vm84
    %vm89 = vmand %vm81, %vm85
    %vm90 = vmand %vm82, %vm86
    %vm91 = vmand %vm83, %vm87
    %vm92 = vcmp.ge.s32.totalorder %v76, 1
    %vm93 = vcmp.ge.s32.totalorder %v77, 1
    %vm94 = vcmp.ge.s32.totalorder %v78, 1
    %vm95 = vcmp.ge.s32.totalorder %v79, 1
    %vm96 = vmand %vm88, %vm92
    %vm97 = vmand %vm89, %vm93
    %vm98 = vmand %vm90, %vm94
    %vm99 = vmand %vm91, %vm95
    %vm100 = vcmp.le.s32.totalorder %v76, 14
    %vm101 = vcmp.le.s32.totalorder %v77, 14
    %vm102 = vcmp.le.s32.totalorder %v78, 14
    %vm103 = vcmp.le.s32.totalorder %v79, 14
    %vm104 = vmand %vm96, %vm100
    %vm105 = vmand %vm97, %vm101
    %vm106 = vmand %vm98, %vm102
    %vm107 = vmand %vm99, %vm103
    %v108 = vld [vmem:[%s2] sm:$0xff]
    %v109 = vld [vmem:[%s2 + $0x8] sm:$0xff]
    %v110 = vld [vmem:[%s2 + $0x10] sm:$0xff]
    %v111 = vld [vmem:[%s2 + $0x18] sm:$0xff]
    %v112 = vld [vmem:[%s2 + $0x20] sm:$0xff]
    %v113 = vld [vmem:[%s2 + $0x28] sm:$0xff]
    %v114 = vld [vmem:[%s2 + $0x30] sm:$0xff]
    %v115 = vld [vmem:[%s2 + $0x38] sm:$0xff]
    %v116 = vld [vmem:[%s2 + $0x40] sm:$0xff]
    %v117 = vld [vmem:[%s2 + $0x48] sm:$0xff]
    %v118 = vld [vmem:[%s2 + $0x50] sm:$0xff]
    %v119 = vld [vmem:[%s2 + $0x58] sm:$0xff]
    %v120 = vld [vmem:[%s2 + $0x60] sm:$0xff]
    %v121 = vld [vmem:[%s2 + $0x68] sm:$0xff]
    %v122 = vld [vmem:[%s2 + $0x70] sm:$0xff]
    %v123 = vld [vmem:[%s2 + $0x78] sm:$0xff]
    %s124 = sld [smem:[#allocation4]]
    %v125 = vld [vmem:[%s3] sm:$0xff]
    %v126 = vld [vmem:[%s3 + $0x8] sm:$0xff]
    %v127 = vld [vmem:[%s3 + $0x10] sm:$0xff]
    %v128 = vld [vmem:[%s3 + $0x18] sm:$0xff]
    %v129 = vld [vmem:[%s3 + $0x20] sm:$0xff]
    %v130 = vld [vmem:[%s3 + $0x28] sm:$0xff]
    %v131 = vld [vmem:[%s3 + $0x30] sm:$0xff]
    %v132 = vld [vmem:[%s3 + $0x38] sm:$0xff]
    %v133 = vld [vmem:[%s3 + $0x40] sm:$0xff]
    %v134 = vld [vmem:[%s3 + $0x48] sm:$0xff]
    %v135 = vld [vmem:[%s3 + $0x50] sm:$0xff]
    %v136 = vld [vmem:[%s3 + $0x58] sm:$0xff]
    %v137 = vld [vmem:[%s3 + $0x60] sm:$0xff]
    %v138 = vld [vmem:[%s3 + $0x68] sm:$0xff]
    %v139 = vld [vmem:[%s3 + $0x70] sm:$0xff]
    %v140 = vld [vmem:[%s3 + $0x78] sm:$0xff]
    %v141 = vstv %s124
    %v142 = vmul.f32 %v141, %v125
    %v143 = vmul.f32 %v141, %v126
    %v144 = vmul.f32 %v141, %v127
    %v145 = vmul.f32 %v141, %v128
    %v146 = vmul.f32 %v141, %v129
    %v147 = vmul.f32 %v141, %v130
    %v148 = vmul.f32 %v141, %v131
    %v149 = vmul.f32 %v141, %v132
    %v150 = vmul.f32 %v141, %v133
    %v151 = vmul.f32 %v141, %v134
    %v152 = vmul.f32 %v141, %v135
    %v153 = vmul.f32 %v141, %v136
    %v154 = vmul.f32 %v141, %v137
    %v155 = vmul.f32 %v141, %v138
    %v156 = vmul.f32 %v141, %v139
    %v157 = vmul.f32 %v141, %v140
    %v158 = vadd.f32 %v108, %v142
    %v159 = vadd.f32 %v109, %v143
    %v160 = vadd.f32 %v110, %v144
    %v161 = vadd.f32 %v111, %v145
    %v162 = vadd.f32 %v112, %v146
    %v163 = vadd.f32 %v113, %v147
    %v164 = vadd.f32 %v114, %v148
    %v165 = vadd.f32 %v115, %v149
    %v166 = vadd.f32 %v116, %v150
    %v167 = vadd.f32 %v117, %v151
    %v168 = vadd.f32 %v118, %v152
    %v169 = vadd.f32 %v119, %v153
    %v170 = vadd.f32 %v120, %v154
    %v171 = vadd.f32 %v121, %v155
    %v172 = vadd.f32 %v122, %v156
    %v173 = vadd.f32 %v123, %v157
    %s174 = sld [smem:[#allocation4 + $0x1]]
    %s175 = scalar_lea.vmem %s3, 128
    %v176 = vld [vmem:[%s175] sm:$0xff]
    %v177 = vld [vmem:[%s175 + $0x8] sm:$0xff]
    %v178 = vld [vmem:[%s175 + $0x10] sm:$0xff]
    %v179 = vld [vmem:[%s175 + $0x18] sm:$0xff]
    %v180 = vld [vmem:[%s175 + $0x20] sm:$0xff]
    %v181 = vld [vmem:[%s175 + $0x28] sm:$0xff]
    %v182 = vld [vmem:[%s175 + $0x30] sm:$0xff]
    %v183 = vld [vmem:[%s175 + $0x38] sm:$0xff]
    %v184 = vld [vmem:[%s175 + $0x40] sm:$0xff]
    %v185 = vld [vmem:[%s175 + $0x48] sm:$0xff]
    %v186 = vld [vmem:[%s175 + $0x50] sm:$0xff]
    %v187 = vld [vmem:[%s175 + $0x58] sm:$0xff]
    %v188 = vld [vmem:[%s175 + $0x60] sm:$0xff]
    %v189 = vld [vmem:[%s175 + $0x68] sm:$0xff]
    %v190 = vld [vmem:[%s175 + $0x70] sm:$0xff]
    %v191 = vld [vmem:[%s175 + $0x78] sm:$0xff]
    %v192 = vstv %s174
    %v193 = vmul.f32 %v192, %v176
    %v194 = vmul.f32 %v192, %v177
    %v195 = vmul.f32 %v192, %v178
    %v196 = vmul.f32 %v192, %v179
    %v197 = vmul.f32 %v192, %v180
    %v198 = vmul.f32 %v192, %v181
    %v199 = vmul.f32 %v192, %v182
    %v200 = vmul.f32 %v192, %v183
    %v201 = vmul.f32 %v192, %v184
    %v202 = vmul.f32 %v192, %v185
    %v203 = vmul.f32 %v192, %v186
    %v204 = vmul.f32 %v192, %v187
    %v205 = vmul.f32 %v192, %v188
    %v206 = vmul.f32 %v192, %v189
    %v207 = vmul.f32 %v192, %v190
    %v208 = vmul.f32 %v192, %v191
    %v209 = vadd.f32 %v158, %v193
    %v210 = vadd.f32 %v159, %v194
    %v211 = vadd.f32 %v160, %v195
    %v212 = vadd.f32 %v161, %v196
    %v213 = vadd.f32 %v162, %v197
    %v214 = vadd.f32 %v163, %v198
    %v215 = vadd.f32 %v164, %v199
    %v216 = vadd.f32 %v165, %v200
    %v217 = vadd.f32 %v166, %v201
    %v218 = vadd.f32 %v167, %v202
    %v219 = vadd.f32 %v168, %v203
    %v220 = vadd.f32 %v169, %v204
    %v221 = vadd.f32 %v170, %v205
    %v222 = vadd.f32 %v171, %v206
    %v223 = vadd.f32 %v172, %v207
    %v224 = vadd.f32 %v173, %v208
    %v225 = vmax.f32 %v209, 0.0
    %v226 = vmax.f32 %v210, 0.0
    %v227 = vmax.f32 %v211, 0.0
    %v228 = vmax.f32 %v212, 0.0
    %v229 = vmax.f32 %v213, 0.0
    %v230 = vmax.f32 %v214, 0.0
    %v231 = vmax.f32 %v215, 0.0
    %v232 = vmax.f32 %v216, 0.0
    %v233 = vmax.f32 %v217, 0.0
    %v234 = vmax.f32 %v218, 0.0
    %v235 = vmax.f32 %v219, 0.0
    %v236 = vmax.f32 %v220, 0.0
    %v237 = vmax.f32 %v221, 0.0
    %v238 = vmax.f32 %v222, 0.0
    %v239 = vmax.f32 %v223, 0.0
    %v240 = vmax.f32 %v224, 0.0
    %241 = vst [vmem:[#allocation2] sm:$0xff] %v225
    %242 = vst [vmem:[#allocation2 + $0x8] sm:$0xff] %v226
    %243 = vst [vmem:[#allocation2 + $0x20] sm:$0xff] %v227
    %244 = vst [vmem:[#allocation2 + $0x28] sm:$0xff] %v228
    %245 = vst [vmem:[#allocation2 + $0x40] sm:$0xff] %v229
    %246 = vst [vmem:[#allocation2 + $0x48] sm:$0xff] %v230
    %247 = vst [vmem:[#allocation2 + $0x60] sm:$0xff] %v231
    %248 = vst [vmem:[#allocation2 + $0x68] sm:$0xff] %v232
    %249 = vst [vmem:[#allocation2 + $0x80] sm:$0xff] %v233
    %250 = vst [vmem:[#allocation2 + $0x88] sm:$0xff] %v234
    %251 = vst [vmem:[#allocation2 + $0xa0] sm:$0xff] %v235
    %252 = vst [vmem:[#allocation2 + $0xa8] sm:$0xff] %v236
    %253 = vst [vmem:[#allocation2 + $0xc0] sm:$0xff] %v237
    %254 = vst [vmem:[#allocation2 + $0xc8] sm:$0xff] %v238
    %255 = vst [vmem:[#allocation2 + $0xe0] sm:$0xff] %v239
    %256 = vst [vmem:[#allocation2 + $0xe8] sm:$0xff] %v240
    %v257 = vadd.f32 %v225, %v226
    %258 = vadd.xlane.f32.xlu0 %v257
    %v259 = vpop.xlane.xlu0 %258
    %v260 = vadd.f32 %v227, %v228
    %261 = vadd.xlane.f32.xlu0 %v260
    %v262 = vpop.xlane.xlu0 %261
    %v263 = vadd.f32 %v229, %v230
    %264 = vadd.xlane.f32.xlu0 %v263
    %v265 = vpop.xlane.xlu0 %264
    %v266 = vadd.f32 %v231, %v232
    %267 = vadd.xlane.f32.xlu0 %v266
    %v268 = vpop.xlane.xlu0 %267
    %v269 = vadd.f32 %v233, %v234
    %270 = vadd.xlane.f32.xlu0 %v269
    %v271 = vpop.xlane.xlu0 %270
    %v272 = vadd.f32 %v235, %v236
    %273 = vadd.xlane.f32.xlu0 %v272
    %v274 = vpop.xlane.xlu0 %273
    %v275 = vadd.f32 %v237, %v238
    %276 = vadd.xlane.f32.xlu0 %v275
    %v277 = vpop.xlane.xlu0 %276
    %v278 = vadd.f32 %v239, %v240
    %279 = vadd.xlane.f32.xlu0 %v278
    %v280 = vpop.xlane.xlu0 %279
    %v281 = vadd.f32 %v259, 0.0
    %v282 = vadd.f32 %v262, 0.0
    %v283 = vadd.f32 %v265, 0.0
    %v284 = vadd.f32 %v268, 0.0
    %v285 = vadd.f32 %v271, 0.0
    %v286 = vadd.f32 %v274, 0.0
    %v287 = vadd.f32 %v277, 0.0
    %v288 = vadd.f32 %v280, 0.0
    %v289 = vmul.f32 %v225, %v225
    %v290 = vmul.f32 %v226, %v226
    %v291 = vmul.f32 %v227, %v227
    %v292 = vmul.f32 %v228, %v228
    %v293 = vmul.f32 %v229, %v229
    %v294 = vmul.f32 %v230, %v230
    %v295 = vmul.f32 %v231, %v231
    %v296 = vmul.f32 %v232, %v232
    %v297 = vmul.f32 %v233, %v233
    %v298 = vmul.f32 %v234, %v234
    %v299 = vmul.f32 %v235, %v235
    %v300 = vmul.f32 %v236, %v236
    %v301 = vmul.f32 %v237, %v237
    %v302 = vmul.f32 %v238, %v238
    %v303 = vmul.f32 %v239, %v239
    %v304 = vmul.f32 %v240, %v240
    %v305 = vadd.f32 %v289, %v290
    %306 = vadd.xlane.f32.xlu0 %v305
    %v307 = vpop.xlane.xlu0 %306
    %v308 = vadd.f32 %v291, %v292
    %309 = vadd.xlane.f32.xlu0 %v308
    %v310 = vpop.xlane.xlu0 %309
    %v311 = vadd.f32 %v293, %v294
    %312 = vadd.xlane.f32.xlu0 %v311
    %v313 = vpop.xlane.xlu0 %312
    %v314 = vadd.f32 %v295, %v296
    %315 = vadd.xlane.f32.xlu0 %v314
    %v316 = vpop.xlane.xlu0 %315
    %v317 = vadd.f32 %v297, %v298
    %318 = vadd.xlane.f32.xlu0 %v317
    %v319 = vpop.xlane.xlu0 %318
    %v320 = vadd.f32 %v299, %v300
    %321 = vadd.xlane.f32.xlu0 %v320
    %v322 = vpop.xlane.xlu0 %321
    %v323 = vadd.f32 %v301, %v302
    %324 = vadd.xlane.f32.xlu0 %v323
    %v325 = vpop.xlane.xlu0 %324
    %v326 = vadd.f32 %v303, %v304
    %327 = vadd.xlane.f32.xlu0 %v326
    %v328 = vpop.xlane.xlu0 %327
    %v329 = vadd.f32 %v307, 0.0
    %v330 = vadd.f32 %v310, 0.0
    %v331 = vadd.f32 %v313, 0.0
    %v332 = vadd.f32 %v316, 0.0
    %v333 = vadd.f32 %v319, 0.0
    %v334 = vadd.f32 %v322, 0.0
    %v335 = vadd.f32 %v325, 0.0
    %v336 = vadd.f32 %v328, 0.0
    %v337 = vld [vmem:[%s2] sm:$0xff]
    %v338 = vld [vmem:[%s2 + $0x8] sm:$0xff]
    %v339 = vld [vmem:[%s2 + $0x10] sm:$0xff]
    %v340 = vld [vmem:[%s2 + $0x18] sm:$0xff]
    %v341 = vld [vmem:[%s2 + $0x20] sm:$0xff]
    %v342 = vld [vmem:[%s2 + $0x28] sm:$0xff]
    %v343 = vld [vmem:[%s2 + $0x30] sm:$0xff]
    %v344 = vld [vmem:[%s2 + $0x38] sm:$0xff]
    %v345 = vld [vmem:[%s2 + $0x40] sm:$0xff]
    %v346 = vld [vmem:[%s2 + $0x48] sm:$0xff]
    %v347 = vld [vmem:[%s2 + $0x50] sm:$0xff]
    %v348 = vld [vmem:[%s2 + $0x58] sm:$0xff]
    %v349 = vld [vmem:[%s2 + $0x60] sm:$0xff]
    %v350 = vld [vmem:[%s2 + $0x68] sm:$0xff]
    %v351 = vld [vmem:[%s2 + $0x70] sm:$0xff]
    %v352 = vld [vmem:[%s2 + $0x78] sm:$0xff]
    %s353 = sld [smem:[#allocation4 + $0x80]]
    %v354 = vld [vmem:[%s3] sm:$0xff]
    %v355 = vld [vmem:[%s3 + $0x8] sm:$0xff]
    %v356 = vld [vmem:[%s3 + $0x10] sm:$0xff]
    %v357 = vld [vmem:[%s3 + $0x18] sm:$0xff]
    %v358 = vld [vmem:[%s3 + $0x20] sm:$0xff]
    %v359 = vld [vmem:[%s3 + $0x28] sm:$0xff]
    %v360 = vld [vmem:[%s3 + $0x30] sm:$0xff]
    %v361 = vld [vmem:[%s3 + $0x38] sm:$0xff]
    %v362 = vld [vmem:[%s3 + $0x40] sm:$0xff]
    %v363 = vld [vmem:[%s3 + $0x48] sm:$0xff]
    %v364 = vld [vmem:[%s3 + $0x50] sm:$0xff]
    %v365 = vld [vmem:[%s3 + $0x58] sm:$0xff]
    %v366 = vld [vmem:[%s3 + $0x60] sm:$0xff]
    %v367 = vld [vmem:[%s3 + $0x68] sm:$0xff]
    %v368 = vld [vmem:[%s3 + $0x70] sm:$0xff]
    %v369 = vld [vmem:[%s3 + $0x78] sm:$0xff]
    %v370 = vstv %s353
    %v371 = vmul.f32 %v370, %v354
    %v372 = vmul.f32 %v370, %v355
    %v373 = vmul.f32 %v370, %v356
    %v374 = vmul.f32 %v370, %v357
    %v375 = vmul.f32 %v370, %v358
    %v376 = vmul.f32 %v370, %v359
    %v377 = vmul.f32 %v370, %v360
    %v378 = vmul.f32 %v370, %v361
    %v379 = vmul.f32 %v370, %v362
    %v380 = vmul.f32 %v370, %v363
    %v381 = vmul.f32 %v370, %v364
    %v382 = vmul.f32 %v370, %v365
    %v383 = vmul.f32 %v370, %v366
    %v384 = vmul.f32 %v370, %v367
    %v385 = vmul.f32 %v370, %v368
    %v386 = vmul.f32 %v370, %v369
    %v387 = vadd.f32 %v337, %v371
    %v388 = vadd.f32 %v338, %v372
    %v389 = vadd.f32 %v339, %v373
    %v390 = vadd.f32 %v340, %v374
    %v391 = vadd.f32 %v341, %v375
    %v392 = vadd.f32 %v342, %v376
    %v393 = vadd.f32 %v343, %v377
    %v394 = vadd.f32 %v344, %v378
    %v395 = vadd.f32 %v345, %v379
    %v396 = vadd.f32 %v346, %v380
    %v397 = vadd.f32 %v347, %v381
    %v398 = vadd.f32 %v348, %v382
    %v399 = vadd.f32 %v349, %v383
    %v400 = vadd.f32 %v350, %v384
    %v401 = vadd.f32 %v351, %v385
    %v402 = vadd.f32 %v352, %v386
    %s403 = sld [smem:[#allocation4 + $0x81]]
    %v404 = vld [vmem:[%s175] sm:$0xff]
    %v405 = vld [vmem:[%s175 + $0x8] sm:$0xff]
    %v406 = vld [vmem:[%s175 + $0x10] sm:$0xff]
    %v407 = vld [vmem:[%s175 + $0x18] sm:$0xff]
    %v408 = vld [vmem:[%s175 + $0x20] sm:$0xff]
    %v409 = vld [vmem:[%s175 + $0x28] sm:$0xff]
    %v410 = vld [vmem:[%s175 + $0x30] sm:$0xff]
    %v411 = vld [vmem:[%s175 + $0x38] sm:$0xff]
    %v412 = vld [vmem:[%s175 + $0x40] sm:$0xff]
    %v413 = vld [vmem:[%s175 + $0x48] sm:$0xff]
    %v414 = vld [vmem:[%s175 + $0x50] sm:$0xff]
    %v415 = vld [vmem:[%s175 + $0x58] sm:$0xff]
    %v416 = vld [vmem:[%s175 + $0x60] sm:$0xff]
    %v417 = vld [vmem:[%s175 + $0x68] sm:$0xff]
    %v418 = vld [vmem:[%s175 + $0x70] sm:$0xff]
    %v419 = vld [vmem:[%s175 + $0x78] sm:$0xff]
    %v420 = vstv %s403
    %v421 = vmul.f32 %v420, %v404
    %v422 = vmul.f32 %v420, %v405
    %v423 = vmul.f32 %v420, %v406
    %v424 = vmul.f32 %v420, %v407
    %v425 = vmul.f32 %v420, %v408
    %v426 = vmul.f32 %v420, %v409
    %v427 = vmul.f32 %v420, %v410
    %v428 = vmul.f32 %v420, %v411
    %v429 = vmul.f32 %v420, %v412
    %v430 = vmul.f32 %v420, %v413
    %v431 = vmul.f32 %v420, %v414
    %v432 = vmul.f32 %v420, %v415
    %v433 = vmul.f32 %v420, %v416
    %v434 = vmul.f32 %v420, %v417
    %v435 = vmul.f32 %v420, %v418
    %v436 = vmul.f32 %v420, %v419
    %v437 = vadd.f32 %v387, %v421
    %v438 = vadd.f32 %v388, %v422
    %v439 = vadd.f32 %v389, %v423
    %v440 = vadd.f32 %v390, %v424
    %v441 = vadd.f32 %v391, %v425
    %v442 = vadd.f32 %v392, %v426
    %v443 = vadd.f32 %v393, %v427
    %v444 = vadd.f32 %v394, %v428
    %v445 = vadd.f32 %v395, %v429
    %v446 = vadd.f32 %v396, %v430
    %v447 = vadd.f32 %v397, %v431
    %v448 = vadd.f32 %v398, %v432
    %v449 = vadd.f32 %v399, %v433
    %v450 = vadd.f32 %v400, %v434
    %v451 = vadd.f32 %v401, %v435
    %v452 = vadd.f32 %v402, %v436
    %v453 = vmax.f32 %v437, 0.0
    %v454 = vmax.f32 %v438, 0.0
    %v455 = vmax.f32 %v439, 0.0
    %v456 = vmax.f32 %v440, 0.0
    %v457 = vmax.f32 %v441, 0.0
    %v458 = vmax.f32 %v442, 0.0
    %v459 = vmax.f32 %v443, 0.0
    %v460 = vmax.f32 %v444, 0.0
    %v461 = vmax.f32 %v445, 0.0
    %v462 = vmax.f32 %v446, 0.0
    %v463 = vmax.f32 %v447, 0.0
    %v464 = vmax.f32 %v448, 0.0
    %v465 = vmax.f32 %v449, 0.0
    %v466 = vmax.f32 %v450, 0.0
    %v467 = vmax.f32 %v451, 0.0
    %v468 = vmax.f32 %v452, 0.0
    %469 = vst [vmem:[#allocation2 + $0x10] sm:$0xff] %v453
    %470 = vst [vmem:[#allocation2 + $0x18] sm:$0xff] %v454
    %471 = vst [vmem:[#allocation2 + $0x30] sm:$0xff] %v455
    %472 = vst [vmem:[#allocation2 + $0x38] sm:$0xff] %v456
    %473 = vst [vmem:[#allocation2 + $0x50] sm:$0xff] %v457
    %474 = vst [vmem:[#allocation2 + $0x58] sm:$0xff] %v458
    %475 = vst [vmem:[#allocation2 + $0x70] sm:$0xff] %v459
    %476 = vst [vmem:[#allocation2 + $0x78] sm:$0xff] %v460
    %477 = vst [vmem:[#allocation2 + $0x90] sm:$0xff] %v461
    %478 = vst [vmem:[#allocation2 + $0x98] sm:$0xff] %v462
    %479 = vst [vmem:[#allocation2 + $0xb0] sm:$0xff] %v463
    %480 = vst [vmem:[#allocation2 + $0xb8] sm:$0xff] %v464
    %481 = vst [vmem:[#allocation2 + $0xd0] sm:$0xff] %v465
    %482 = vst [vmem:[#allocation2 + $0xd8] sm:$0xff] %v466
    %483 = vst [vmem:[#allocation2 + $0xf0] sm:$0xff] %v467
    %484 = vst [vmem:[#allocation2 + $0xf8] sm:$0xff] %v468
    %v485 = vadd.f32 %v453, %v454
    %486 = vadd.xlane.f32.xlu0 %v485
    %v487 = vpop.xlane.xlu0 %486
    %v488 = vadd.f32 %v455, %v456
    %489 = vadd.xlane.f32.xlu0 %v488
    %v490 = vpop.xlane.xlu0 %489
    %v491 = vadd.f32 %v457, %v458
    %492 = vadd.xlane.f32.xlu0 %v491
    %v493 = vpop.xlane.xlu0 %492
    %v494 = vadd.f32 %v459, %v460
    %495 = vadd.xlane.f32.xlu0 %v494
    %v496 = vpop.xlane.xlu0 %495
    %v497 = vadd.f32 %v461, %v462
    %498 = vadd.xlane.f32.xlu0 %v497
    %v499 = vpop.xlane.xlu0 %498
    %v500 = vadd.f32 %v463, %v464
    %501 = vadd.xlane.f32.xlu0 %v500
    %v502 = vpop.xlane.xlu0 %501
    %v503 = vadd.f32 %v465, %v466
    %504 = vadd.xlane.f32.xlu0 %v503
    %v505 = vpop.xlane.xlu0 %504
    %v506 = vadd.f32 %v467, %v468
    %507 = vadd.xlane.f32.xlu0 %v506
    %v508 = vpop.xlane.xlu0 %507
    %v509 = vadd.f32 %v281, %v487
    %v510 = vadd.f32 %v282, %v490
    %v511 = vadd.f32 %v283, %v493
    %v512 = vadd.f32 %v284, %v496
    %v513 = vadd.f32 %v285, %v499
    %v514 = vadd.f32 %v286, %v502
    %v515 = vadd.f32 %v287, %v505
    %v516 = vadd.f32 %v288, %v508
    %v517 = vmul.f32 %v453, %v453
    %v518 = vmul.f32 %v454, %v454
    %v519 = vmul.f32 %v455, %v455
    %v520 = vmul.f32 %v456, %v456
    %v521 = vmul.f32 %v457, %v457
    %v522 = vmul.f32 %v458, %v458
    %v523 = vmul.f32 %v459, %v459
    %v524 = vmul.f32 %v460, %v460
    %v525 = vmul.f32 %v461, %v461
    %v526 = vmul.f32 %v462, %v462
    %v527 = vmul.f32 %v463, %v463
    %v528 = vmul.f32 %v464, %v464
    %v529 = vmul.f32 %v465, %v465
    %v530 = vmul.f32 %v466, %v466
    %v531 = vmul.f32 %v467, %v467
    %v532 = vmul.f32 %v468, %v468
    %v533 = vadd.f32 %v517, %v518
    %534 = vadd.xlane.f32.xlu0 %v533
    %v535 = vpop.xlane.xlu0 %534
    %v536 = vadd.f32 %v519, %v520
    %537 = vadd.xlane.f32.xlu0 %v536
    %v538 = vpop.xlane.xlu0 %537
    %v539 = vadd.f32 %v521, %v522
    %540 = vadd.xlane.f32.xlu0 %v539
    %v541 = vpop.xlane.xlu0 %540
    %v542 = vadd.f32 %v523, %v524
    %543 = vadd.xlane.f32.xlu0 %v542
    %v544 = vpop.xlane.xlu0 %543
    %v545 = vadd.f32 %v525, %v526
    %546 = vadd.xlane.f32.xlu0 %v545
    %v547 = vpop.xlane.xlu0 %546
    %v548 = vadd.f32 %v527, %v528
    %549 = vadd.xlane.f32.xlu0 %v548
    %v550 = vpop.xlane.xlu0 %549
    %v551 = vadd.f32 %v529, %v530
    %552 = vadd.xlane.f32.xlu0 %v551
    %v553 = vpop.xlane.xlu0 %552
    %v554 = vadd.f32 %v531, %v532
    %555 = vadd.xlane.f32.xlu0 %v554
    %v556 = vpop.xlane.xlu0 %555
    %v557 = vadd.f32 %v329, %v535
    %v558 = vadd.f32 %v330, %v538
    %v559 = vadd.f32 %v331, %v541
    %v560 = vadd.f32 %v332, %v544
    %v561 = vadd.f32 %v333, %v547
    %v562 = vadd.f32 %v334, %v550
    %v563 = vadd.f32 %v335, %v553
    %v564 = vadd.f32 %v336, %v556
    %v565 = vmul.f32 %v509, 0.0025510204
    %v566 = vmul.f32 %v510, 0.0025510204
    %v567 = vmul.f32 %v511, 0.0025510204
    %v568 = vmul.f32 %v512, 0.0025510204
    %v569 = vmul.f32 %v513, 0.0025510204
    %v570 = vmul.f32 %v514, 0.0025510204
    %v571 = vmul.f32 %v515, 0.0025510204
    %v572 = vmul.f32 %v516, 0.0025510204
    %v573 = vmul.f32 %v557, 0.0025510204
    %v574 = vmul.f32 %v558, 0.0025510204
    %v575 = vmul.f32 %v559, 0.0025510204
    %v576 = vmul.f32 %v560, 0.0025510204
    %v577 = vmul.f32 %v561, 0.0025510204
    %v578 = vmul.f32 %v562, 0.0025510204
    %v579 = vmul.f32 %v563, 0.0025510204
    %v580 = vmul.f32 %v564, 0.0025510204
    %v581 = vmul.f32 %v565, %v565
    %v582 = vmul.f32 %v566, %v566
    %v583 = vmul.f32 %v567, %v567
    %v584 = vmul.f32 %v568, %v568
    %v585 = vmul.f32 %v569, %v569
    %v586 = vmul.f32 %v570, %v570
    %v587 = vmul.f32 %v571, %v571
    %v588 = vmul.f32 %v572, %v572
    %v589 = vsub.f32 %v573, %v581
    %v590 = vsub.f32 %v574, %v582
    %v591 = vsub.f32 %v575, %v583
    %v592 = vsub.f32 %v576, %v584
    %v593 = vsub.f32 %v577, %v585
    %v594 = vsub.f32 %v578, %v586
    %v595 = vsub.f32 %v579, %v587
    %v596 = vsub.f32 %v580, %v588
    %v597 = vadd.f32 %v589, 1e-05
    %v598 = vadd.f32 %v590, 1e-05
    %v599 = vadd.f32 %v591, 1e-05
    %v600 = vadd.f32 %v592, 1e-05
    %v601 = vadd.f32 %v593, 1e-05
    %v602 = vadd.f32 %v594, 1e-05
    %v603 = vadd.f32 %v595, 1e-05
    %v604 = vadd.f32 %v596, 1e-05
    %v605 = vrsqrt.pop %v597
    %v606 = vrsqrt.pop %v598
    %v607 = vrsqrt.pop %v599
    %v608 = vrsqrt.pop %v600
    %v609 = vrsqrt.pop %v601
    %v610 = vrsqrt.pop %v602
    %v611 = vrsqrt.pop %v603
    %v612 = vrsqrt.pop %v604
    %v613 = vld [vmem:[%s4] sm:$0xff]
    %v614 = vld [vmem:[%s4 + $0x8] sm:$0xff]
    %v615 = vld [vmem:[%s4 + $0x10] sm:$0xff]
    %v616 = vld [vmem:[%s4 + $0x18] sm:$0xff]
    %v617 = vld [vmem:[%s4 + $0x20] sm:$0xff]
    %v618 = vld [vmem:[%s4 + $0x28] sm:$0xff]
    %v619 = vld [vmem:[%s4 + $0x30] sm:$0xff]
    %v620 = vld [vmem:[%s4 + $0x38] sm:$0xff]
    %v621 = vmul.f32 %v605, %v613
    %v622 = vmul.f32 %v606, %v614
    %v623 = vmul.f32 %v607, %v615
    %v624 = vmul.f32 %v608, %v616
    %v625 = vmul.f32 %v609, %v617
    %v626 = vmul.f32 %v610, %v618
    %v627 = vmul.f32 %v611, %v619
    %v628 = vmul.f32 %v612, %v620
    %v629 = vld [vmem:[%s5] sm:$0xff]
    %v630 = vld [vmem:[%s5 + $0x8] sm:$0xff]
    %v631 = vld [vmem:[%s5 + $0x10] sm:$0xff]
    %v632 = vld [vmem:[%s5 + $0x18] sm:$0xff]
    %v633 = vld [vmem:[%s5 + $0x20] sm:$0xff]
    %v634 = vld [vmem:[%s5 + $0x28] sm:$0xff]
    %v635 = vld [vmem:[%s5 + $0x30] sm:$0xff]
    %v636 = vld [vmem:[%s5 + $0x38] sm:$0xff]
    %v637 = vmul.f32 %v565, %v621
    %v638 = vmul.f32 %v566, %v622
    %v639 = vmul.f32 %v567, %v623
    %v640 = vmul.f32 %v568, %v624
    %v641 = vmul.f32 %v569, %v625
    %v642 = vmul.f32 %v570, %v626
    %v643 = vmul.f32 %v571, %v627
    %v644 = vmul.f32 %v572, %v628
    %v645 = vsub.f32 %v629, %v637
    %v646 = vsub.f32 %v630, %v638
    %v647 = vsub.f32 %v631, %v639
    %v648 = vsub.f32 %v632, %v640
    %v649 = vsub.f32 %v633, %v641
    %v650 = vsub.f32 %v634, %v642
    %v651 = vsub.f32 %v635, %v643
    %v652 = vsub.f32 %v636, %v644
    %v653 = vld [vmem:[#allocation2] sm:$0xff]
    %v654 = vld [vmem:[#allocation2 + $0x8] sm:$0xff]
    %v655 = vld [vmem:[#allocation2 + $0x10] sm:$0xff]
    %v656 = vld [vmem:[#allocation2 + $0x18] sm:$0xff]
    %v657 = vld [vmem:[#allocation2 + $0x20] sm:$0xff]
    %v658 = vld [vmem:[#allocation2 + $0x28] sm:$0xff]
    %v659 = vld [vmem:[#allocation2 + $0x30] sm:$0xff]
    %v660 = vld [vmem:[#allocation2 + $0x38] sm:$0xff]
    %v661 = vld [vmem:[#allocation2 + $0x40] sm:$0xff]
    %v662 = vld [vmem:[#allocation2 + $0x48] sm:$0xff]
    %v663 = vld [vmem:[#allocation2 + $0x50] sm:$0xff]
    %v664 = vld [vmem:[#allocation2 + $0x58] sm:$0xff]
    %v665 = vld [vmem:[#allocation2 + $0x60] sm:$0xff]
    %v666 = vld [vmem:[#allocation2 + $0x68] sm:$0xff]
    %v667 = vld [vmem:[#allocation2 + $0x70] sm:$0xff]
    %v668 = vld [vmem:[#allocation2 + $0x78] sm:$0xff]
    %v669 = vld [vmem:[#allocation2 + $0x80] sm:$0xff]
    %v670 = vld [vmem:[#allocation2 + $0x88] sm:$0xff]
    %v671 = vld [vmem:[#allocation2 + $0x90] sm:$0xff]
    %v672 = vld [vmem:[#allocation2 + $0x98] sm:$0xff]
    %v673 = vld [vmem:[#allocation2 + $0xa0] sm:$0xff]
    %v674 = vld [vmem:[#allocation2 + $0xa8] sm:$0xff]
    %v675 = vld [vmem:[#allocation2 + $0xb0] sm:$0xff]
    %v676 = vld [vmem:[#allocation2 + $0xb8] sm:$0xff]
    %v677 = vld [vmem:[#allocation2 + $0xc0] sm:$0xff]
    %v678 = vld [vmem:[#allocation2 + $0xc8] sm:$0xff]
    %v679 = vld [vmem:[#allocation2 + $0xd0] sm:$0xff]
    %v680 = vld [vmem:[#allocation2 + $0xd8] sm:$0xff]
    %v681 = vld [vmem:[#allocation2 + $0xe0] sm:$0xff]
    %v682 = vld [vmem:[#allocation2 + $0xe8] sm:$0xff]
    %v683 = vld [vmem:[#allocation2 + $0xf0] sm:$0xff]
    %v684 = vld [vmem:[#allocation2 + $0xf8] sm:$0xff]
    %686 = vset.pattern.permute.xlu0 0
    %687 = vperm.xlu0 %686, %v621
    %v688 = vpop.permute.xlu0 %687
    %691 = vset.pattern.permute.xlu0 0
    %692 = vperm.xlu0 %691, %v622
    %v693 = vpop.permute.xlu0 %692
    %696 = vset.pattern.permute.xlu0 0
    %697 = vperm.xlu0 %696, %v623
    %v698 = vpop.permute.xlu0 %697
    %701 = vset.pattern.permute.xlu0 0
    %702 = vperm.xlu0 %701, %v624
    %v703 = vpop.permute.xlu0 %702
    %706 = vset.pattern.permute.xlu0 0
    %707 = vperm.xlu0 %706, %v625
    %v708 = vpop.permute.xlu0 %707
    %711 = vset.pattern.permute.xlu0 0
    %712 = vperm.xlu0 %711, %v626
    %v713 = vpop.permute.xlu0 %712
    %716 = vset.pattern.permute.xlu0 0
    %717 = vperm.xlu0 %716, %v627
    %v718 = vpop.permute.xlu0 %717
    %721 = vset.pattern.permute.xlu0 0
    %722 = vperm.xlu0 %721, %v628
    %v723 = vpop.permute.xlu0 %722
    %v725 = vmul.f32 %v653, %v688
    %v726 = vmul.f32 %v654, %v688
    %v727 = vmul.f32 %v655, %v688
    %v728 = vmul.f32 %v656, %v688
    %v729 = vmul.f32 %v657, %v693
    %v730 = vmul.f32 %v658, %v693
    %v731 = vmul.f32 %v659, %v693
    %v732 = vmul.f32 %v660, %v693
    %v733 = vmul.f32 %v661, %v698
    %v734 = vmul.f32 %v662, %v698
    %v735 = vmul.f32 %v663, %v698
    %v736 = vmul.f32 %v664, %v698
    %v737 = vmul.f32 %v665, %v703
    %v738 = vmul.f32 %v666, %v703
    %v739 = vmul.f32 %v667, %v703
    %v740 = vmul.f32 %v668, %v703
    %v741 = vmul.f32 %v669, %v708
    %v742 = vmul.f32 %v670, %v708
    %v743 = vmul.f32 %v671, %v708
    %v744 = vmul.f32 %v672, %v708
    %v745 = vmul.f32 %v673, %v713
    %v746 = vmul.f32 %v674, %v713
    %v747 = vmul.f32 %v675, %v713
    %v748 = vmul.f32 %v676, %v713
    %v749 = vmul.f32 %v677, %v718
    %v750 = vmul.f32 %v678, %v718
    %v751 = vmul.f32 %v679, %v718
    %v752 = vmul.f32 %v680, %v718
    %v753 = vmul.f32 %v681, %v723
    %v754 = vmul.f32 %v682, %v723
    %v755 = vmul.f32 %v683, %v723
    %v756 = vmul.f32 %v684, %v723
    %758 = vset.pattern.permute.xlu0 0
    %759 = vperm.xlu0 %758, %v645
    %v760 = vpop.permute.xlu0 %759
    %763 = vset.pattern.permute.xlu0 0
    %764 = vperm.xlu0 %763, %v646
    %v765 = vpop.permute.xlu0 %764
    %768 = vset.pattern.permute.xlu0 0
    %769 = vperm.xlu0 %768, %v647
    %v770 = vpop.permute.xlu0 %769
    %773 = vset.pattern.permute.xlu0 0
    %774 = vperm.xlu0 %773, %v648
    %v775 = vpop.permute.xlu0 %774
    %778 = vset.pattern.permute.xlu0 0
    %779 = vperm.xlu0 %778, %v649
    %v780 = vpop.permute.xlu0 %779
    %783 = vset.pattern.permute.xlu0 0
    %784 = vperm.xlu0 %783, %v650
    %v785 = vpop.permute.xlu0 %784
    %788 = vset.pattern.permute.xlu0 0
    %789 = vperm.xlu0 %788, %v651
    %v790 = vpop.permute.xlu0 %789
    %793 = vset.pattern.permute.xlu0 0
    %794 = vperm.xlu0 %793, %v652
    %v795 = vpop.permute.xlu0 %794
    %v797 = vadd.f32 %v725, %v760
    %v798 = vadd.f32 %v726, %v760
    %v799 = vadd.f32 %v727, %v760
    %v800 = vadd.f32 %v728, %v760
    %v801 = vadd.f32 %v729, %v765
    %v802 = vadd.f32 %v730, %v765
    %v803 = vadd.f32 %v731, %v765
    %v804 = vadd.f32 %v732, %v765
    %v805 = vadd.f32 %v733, %v770
    %v806 = vadd.f32 %v734, %v770
    %v807 = vadd.f32 %v735, %v770
    %v808 = vadd.f32 %v736, %v770
    %v809 = vadd.f32 %v737, %v775
    %v810 = vadd.f32 %v738, %v775
    %v811 = vadd.f32 %v739, %v775
    %v812 = vadd.f32 %v740, %v775
    %v813 = vadd.f32 %v741, %v780
    %v814 = vadd.f32 %v742, %v780
    %v815 = vadd.f32 %v743, %v780
    %v816 = vadd.f32 %v744, %v780
    %v817 = vadd.f32 %v745, %v785
    %v818 = vadd.f32 %v746, %v785
    %v819 = vadd.f32 %v747, %v785
    %v820 = vadd.f32 %v748, %v785
    %v821 = vadd.f32 %v749, %v790
    %v822 = vadd.f32 %v750, %v790
    %v823 = vadd.f32 %v751, %v790
    %v824 = vadd.f32 %v752, %v790
    %v825 = vadd.f32 %v753, %v795
    %v826 = vadd.f32 %v754, %v795
    %v827 = vadd.f32 %v755, %v795
    %v828 = vadd.f32 %v756, %v795
    %829 = vst [vmem:[#allocation2] sm:$0xff] %v797
    %830 = vst [vmem:[#allocation2 + $0x8] sm:$0xff] %v798
    %831 = vst [vmem:[#allocation2 + $0x10] sm:$0xff] %v799
    %832 = vst [vmem:[#allocation2 + $0x18] sm:$0xff] %v800
    %833 = vst [vmem:[#allocation2 + $0x20] sm:$0xff] %v801
    %834 = vst [vmem:[#allocation2 + $0x28] sm:$0xff] %v802
    %835 = vst [vmem:[#allocation2 + $0x30] sm:$0xff] %v803
    %836 = vst [vmem:[#allocation2 + $0x38] sm:$0xff] %v804
    %837 = vst [vmem:[#allocation2 + $0x40] sm:$0xff] %v805
    %838 = vst [vmem:[#allocation2 + $0x48] sm:$0xff] %v806
    %839 = vst [vmem:[#allocation2 + $0x50] sm:$0xff] %v807
    %840 = vst [vmem:[#allocation2 + $0x58] sm:$0xff] %v808
    %841 = vst [vmem:[#allocation2 + $0x60] sm:$0xff] %v809
    %842 = vst [vmem:[#allocation2 + $0x68] sm:$0xff] %v810
    %843 = vst [vmem:[#allocation2 + $0x70] sm:$0xff] %v811
    %844 = vst [vmem:[#allocation2 + $0x78] sm:$0xff] %v812
    %845 = vst [vmem:[#allocation2 + $0x80] sm:$0xff] %v813
    %846 = vst [vmem:[#allocation2 + $0x88] sm:$0xff] %v814
    %847 = vst [vmem:[#allocation2 + $0x90] sm:$0xff] %v815
    %848 = vst [vmem:[#allocation2 + $0x98] sm:$0xff] %v816
    %849 = vst [vmem:[#allocation2 + $0xa0] sm:$0xff] %v817
    %850 = vst [vmem:[#allocation2 + $0xa8] sm:$0xff] %v818
    %851 = vst [vmem:[#allocation2 + $0xb0] sm:$0xff] %v819
    %852 = vst [vmem:[#allocation2 + $0xb8] sm:$0xff] %v820
    %853 = vst [vmem:[#allocation2 + $0xc0] sm:$0xff] %v821
    %854 = vst [vmem:[#allocation2 + $0xc8] sm:$0xff] %v822
    %855 = vst [vmem:[#allocation2 + $0xd0] sm:$0xff] %v823
    %856 = vst [vmem:[#allocation2 + $0xd8] sm:$0xff] %v824
    %857 = vst [vmem:[#allocation2 + $0xe0] sm:$0xff] %v825
    %858 = vst [vmem:[#allocation2 + $0xe8] sm:$0xff] %v826
    %859 = vst [vmem:[#allocation2 + $0xf0] sm:$0xff] %v827
    %860 = vst [vmem:[#allocation2 + $0xf8] sm:$0xff] %v828
    %v861 = vld [vmem:[%s6] sm:$0xff]
    %v862 = vld [vmem:[%s6 + $0x8] sm:$0xff]
    %v863 = vld [vmem:[%s6 + $0x10] sm:$0xff]
    %v864 = vld [vmem:[%s6 + $0x18] sm:$0xff]
    %v865 = vld [vmem:[%s6 + $0x20] sm:$0xff]
    %v866 = vld [vmem:[%s6 + $0x28] sm:$0xff]
    %v867 = vld [vmem:[%s6 + $0x30] sm:$0xff]
    %v868 = vld [vmem:[%s6 + $0x38] sm:$0xff]
    %v869 = vld [vmem:[#allocation2] sm:$0xff]
    %v870 = vld [vmem:[#allocation2 + $0x8] sm:$0xff]
    %v871 = vld [vmem:[#allocation2 + $0x10] sm:$0xff]
    %v872 = vld [vmem:[#allocation2 + $0x18] sm:$0xff]
    %v873 = vld [vmem:[#allocation2 + $0x20] sm:$0xff]
    %v874 = vld [vmem:[#allocation2 + $0x28] sm:$0xff]
    %v875 = vld [vmem:[#allocation2 + $0x30] sm:$0xff]
    %v876 = vld [vmem:[#allocation2 + $0x38] sm:$0xff]
    %v877 = vld [vmem:[#allocation2 + $0x40] sm:$0xff]
    %v878 = vld [vmem:[#allocation2 + $0x48] sm:$0xff]
    %v879 = vld [vmem:[#allocation2 + $0x50] sm:$0xff]
    %v880 = vld [vmem:[#allocation2 + $0x58] sm:$0xff]
    %v881 = vld [vmem:[#allocation2 + $0x60] sm:$0xff]
    %v882 = vld [vmem:[#allocation2 + $0x68] sm:$0xff]
    %v883 = vld [vmem:[#allocation2 + $0x70] sm:$0xff]
    %v884 = vld [vmem:[#allocation2 + $0x78] sm:$0xff]
    %v885 = vld [vmem:[#allocation2 + $0x80] sm:$0xff]
    %v886 = vld [vmem:[#allocation2 + $0x88] sm:$0xff]
    %v887 = vld [vmem:[#allocation2 + $0x90] sm:$0xff]
    %v888 = vld [vmem:[#allocation2 + $0x98] sm:$0xff]
    %v889 = vld [vmem:[#allocation2 + $0xa0] sm:$0xff]
    %v890 = vld [vmem:[#allocation2 + $0xa8] sm:$0xff]
    %v891 = vld [vmem:[#allocation2 + $0xb0] sm:$0xff]
    %v892 = vld [vmem:[#allocation2 + $0xb8] sm:$0xff]
    %v893 = vld [vmem:[#allocation2 + $0xc0] sm:$0xff]
    %v894 = vld [vmem:[#allocation2 + $0xc8] sm:$0xff]
    %v895 = vld [vmem:[#allocation2 + $0xd0] sm:$0xff]
    %v896 = vld [vmem:[#allocation2 + $0xd8] sm:$0xff]
    %v897 = vld [vmem:[#allocation2 + $0xe0] sm:$0xff]
    %v898 = vld [vmem:[#allocation2 + $0xe8] sm:$0xff]
    %v899 = vld [vmem:[#allocation2 + $0xf0] sm:$0xff]
    %v900 = vld [vmem:[#allocation2 + $0xf8] sm:$0xff]
    %v901 = vld [vmem:[%s7] sm:$0xff]
    %v902 = vld [vmem:[%s7 + $0x8] sm:$0xff]
    %v903 = vld [vmem:[%s7 + $0x10] sm:$0xff]
    %v904 = vld [vmem:[%s7 + $0x18] sm:$0xff]
    %v905 = vld [vmem:[%s7 + $0x20] sm:$0xff]
    %v906 = vld [vmem:[%s7 + $0x28] sm:$0xff]
    %v907 = vld [vmem:[%s7 + $0x30] sm:$0xff]
    %v908 = vld [vmem:[%s7 + $0x38] sm:$0xff]
    %910 = vset.pattern.permute.xlu0 0
    %911 = vperm.xlu0 %910, %v901
    %v912 = vpop.permute.xlu0 %911
    %915 = vset.pattern.permute.xlu0 0
    %916 = vperm.xlu0 %915, %v902
    %v917 = vpop.permute.xlu0 %916
    %920 = vset.pattern.permute.xlu0 0
    %921 = vperm.xlu0 %920, %v903
    %v922 = vpop.permute.xlu0 %921
    %925 = vset.pattern.permute.xlu0 0
    %926 = vperm.xlu0 %925, %v904
    %v927 = vpop.permute.xlu0 %926
    %930 = vset.pattern.permute.xlu0 0
    %931 = vperm.xlu0 %930, %v905
    %v932 = vpop.permute.xlu0 %931
    %935 = vset.pattern.permute.xlu0 0
    %936 = vperm.xlu0 %935, %v906
    %v937 = vpop.permute.xlu0 %936
    %940 = vset.pattern.permute.xlu0 0
    %941 = vperm.xlu0 %940, %v907
    %v942 = vpop.permute.xlu0 %941
    %945 = vset.pattern.permute.xlu0 0
    %946 = vperm.xlu0 %945, %v908
    %v947 = vpop.permute.xlu0 %946
    %vm949 = vcmask 523264
    %v951 = vsel %vm949, %v861, 0
    %v954 = vsel %vm949, %v862, 0
    %v957 = vsel %vm949, %v863, 0
    %v960 = vsel %vm949, %v864, 0
    %v963 = vsel %vm949, %v865, 0
    %v966 = vsel %vm949, %v866, 0
    %v969 = vsel %vm949, %v867, 0
    %v972 = vsel %vm949, %v868, 0
    %974 = vmatprep.subr.mxu0 %v870
    %975 = vmatpush1.msra.mxu0 %v869
    %976 = vmatprep.subr.mxu0 %v874
    %977 = vmatpush1.msra.mxu0 %v873
    %978 = vmatprep.subr.mxu0 %v878
    %979 = vmatpush1.msra.mxu0 %v877
    %980 = vmatprep.subr.mxu0 %v882
    %981 = vmatpush1.msra.mxu0 %v881
    %982 = vmatprep.subr.mxu0 %v886
    %983 = vmatpush1.msra.mxu0 %v885
    %984 = vmatprep.subr.mxu0 %v890
    %985 = vmatpush1.msra.mxu0 %v889
    %986 = vmatprep.subr.mxu0 %v894
    %987 = vmatpush1.msra.mxu0 %v893
    %988 = vmatprep.subr.mxu0 %v898
    %989 = vmatpush1.msra.mxu0 %v897
    %990 = vmatprep.subr.mxu0 0.0
    %991 = vmatpush1.msra.mxu0 0.0
    %992 = vmatprep.subr.mxu0 0.0
    %993 = vmatpush1.msra.mxu0 0.0
    %994 = vmatprep.subr.mxu0 0.0
    %995 = vmatpush1.msra.mxu0 0.0
    %996 = vmatprep.subr.mxu0 0.0
    %997 = vmatpush1.msra.mxu0 0.0
    %998 = vmatprep.subr.mxu0 0.0
    %999 = vmatpush1.msra.mxu0 0.0
    %1000 = vmatprep.subr.mxu0 0.0
    %1001 = vmatpush1.msra.mxu0 0.0
    %1002 = vmatprep.subr.mxu0 0.0
    %1003 = vmatpush1.msra.mxu0 0.0
    %1004 = vmatprep.subr.mxu0 0.0
    %1005 = vmatpush1.msra.mxu0 0.0
    %1006 = vmatprep.subr.mxu0 0.0
    %1007 = vmatpush1.msra.mxu0 0.0
    %1008 = vmatprep.subr.mxu0 0.0
    %1009 = vmatpush1.msra.mxu0 0.0
    %1010 = vmatprep.subr.mxu0 0.0
    %1011 = vmatpush1.msra.mxu0 0.0
    %1012 = vmatprep.subr.mxu0 0.0
    %1013 = vmatpush1.msra.mxu0 0.0
    %1014 = vmatprep.subr.mxu0 0.0
    %1015 = vmatpush1.msra.mxu0 0.0
    %1016 = vmatprep.subr.mxu0 0.0
    %1017 = vmatpush1.msra.mxu0 0.0
    %1018 = vmatprep.subr.mxu0 0.0
    %1019 = vmatpush1.msra.mxu0 0.0
    %1020 = vmatprep.subr.mxu0 0.0
    %1021 = vmatpush1.msra.mxu0 0.0
    %1022 = vmatprep.subr.mxu0 0.0
    %1023 = vmatpush1.msra.mxu0 0.0
    %1024 = vmatprep.subr.mxu0 0.0
    %1025 = vmatpush1.msra.mxu0 0.0
    %1026 = vmatprep.subr.mxu0 0.0
    %1027 = vmatpush1.msra.mxu0 0.0
    %1028 = vmatprep.subr.mxu0 0.0
    %1029 = vmatpush1.msra.mxu0 0.0
    %1030 = vmatprep.subr.mxu0 0.0
    %1031 = vmatpush1.msra.mxu0 0.0
    %1032 = vmatprep.subr.mxu0 0.0
    %1033 = vmatpush1.msra.mxu0 0.0
    %1034 = vmatprep.subr.mxu0 0.0
    %1035 = vmatpush1.msra.mxu0 0.0
    %1036 = vmatprep.subr.mxu0 0.0
    %1037 = vmatpush1.msra.mxu0 0.0
    %1038 = vmatprep.mubr.f32.mxu0 0.0
    %1039 = vmatmul.mubr.f32.gmra.mrb[0].mxu0 %v951
    %v1040 = vpop.f32.mrb[0].mxu0
    %v1041 = vadd.f32 %v912, %v1040
    %v1042 = vpop.f32.mrb[0].mxu0
    %v1043 = vadd.f32 %v912, %v1042
    %1044 = vmatprep.mubr.f32.mxu0 0.0
    %1045 = vmatmul.mubr.f32.gmra.mrb[0].mxu0 %v954
    %v1046 = vpop.f32.mrb[0].mxu0
    %v1047 = vadd.f32 %v917, %v1046
    %v1048 = vpop.f32.mrb[0].mxu0
    %v1049 = vadd.f32 %v917, %v1048
    %1050 = vmatprep.mubr.f32.mxu0 0.0
    %1051 = vmatmul.mubr.f32.gmra.mrb[0].mxu0 %v957
    %v1052 = vpop.f32.mrb[0].mxu0
    %v1053 = vadd.f32 %v922, %v1052
    %v1054 = vpop.f32.mrb[0].mxu0
    %v1055 = vadd.f32 %v922, %v1054
    %1056 = vmatprep.mubr.f32.mxu0 0.0
    %1057 = vmatmul.mubr.f32.gmra.mrb[0].mxu0 %v960
    %v1058 = vpop.f32.mrb[0].mxu0
    %v1059 = vadd.f32 %v927, %v1058
    %v1060 = vpop.f32.mrb[0].mxu0
    %v1061 = vadd.f32 %v927, %v1060
    %1062 = vmatprep.mubr.f32.mxu0 0.0
    %1063 = vmatmul.mubr.f32.gmra.mrb[0].mxu0 %v963
    %v1064 = vpop.f32.mrb[0].mxu0
    %v1065 = vadd.f32 %v932, %v1064
    %v1066 = vpop.f32.mrb[0].mxu0
    %v1067 = vadd.f32 %v932, %v1066
    %1068 = vmatprep.mubr.f32.mxu0 0.0
    %1069 = vmatmul.mubr.f32.gmra.mrb[0].mxu0 %v966
    %v1070 = vpop.f32.mrb[0].mxu0
    %v1071 = vadd.f32 %v937, %v1070
    %v1072 = vpop.f32.mrb[0].mxu0
    %v1073 = vadd.f32 %v937, %v1072
    %1074 = vmatprep.mubr.f32.mxu0 0.0
    %1075 = vmatmul.mubr.f32.gmra.mrb[0].mxu0 %v969
    %v1076 = vpop.f32.mrb[0].mxu0
    %v1077 = vadd.f32 %v942, %v1076
    %v1078 = vpop.f32.mrb[0].mxu0
    %v1079 = vadd.f32 %v942, %v1078
    %1080 = vmatprep.mubr.f32.mxu0 0.0
    %1081 = vmatmul.mubr.f32.gmra.mrb[0].mxu0 %v972
    %v1082 = vpop.f32.mrb[0].mxu0
    %v1083 = vadd.f32 %v947, %v1082
    %v1084 = vpop.f32.mrb[0].mxu0
    %v1085 = vadd.f32 %v947, %v1084
    %1086 = vdwg.mxu0
    %1087 = vmatprep.subr.mxu0 %v872
    %1088 = vmatpush1.msra.mxu0 %v871
    %1089 = vmatprep.subr.mxu0 %v876
    %1090 = vmatpush1.msra.mxu0 %v875
    %1091 = vmatprep.subr.mxu0 %v880
    %1092 = vmatpush1.msra.mxu0 %v879
    %1093 = vmatprep.subr.mxu0 %v884
    %1094 = vmatpush1.msra.mxu0 %v883
    %1095 = vmatprep.subr.mxu0 %v888
    %1096 = vmatpush1.msra.mxu0 %v887
    %1097 = vmatprep.subr.mxu0 %v892
    %1098 = vmatpush1.msra.mxu0 %v891
    %1099 = vmatprep.subr.mxu0 %v896
    %1100 = vmatpush1.msra.mxu0 %v895
    %1101 = vmatprep.subr.mxu0 %v900
    %1102 = vmatpush1.msra.mxu0 %v899
    %1103 = vmatprep.subr.mxu0 0.0
    %1104 = vmatpush1.msra.mxu0 0.0
    %1105 = vmatprep.subr.mxu0 0.0
    %1106 = vmatpush1.msra.mxu0 0.0
    %1107 = vmatprep.subr.mxu0 0.0
    %1108 = vmatpush1.msra.mxu0 0.0
    %1109 = vmatprep.subr.mxu0 0.0
    %1110 = vmatpush1.msra.mxu0 0.0
    %1111 = vmatprep.subr.mxu0 0.0
    %1112 = vmatpush1.msra.mxu0 0.0
    %1113 = vmatprep.subr.mxu0 0.0
    %1114 = vmatpush1.msra.mxu0 0.0
    %1115 = vmatprep.subr.mxu0 0.0
    %1116 = vmatpush1.msra.mxu0 0.0
    %1117 = vmatprep.subr.mxu0 0.0
    %1118 = vmatpush1.msra.mxu0 0.0
    %1119 = vmatprep.subr.mxu0 0.0
    %1120 = vmatpush1.msra.mxu0 0.0
    %1121 = vmatprep.subr.mxu0 0.0
    %1122 = vmatpush1.msra.mxu0 0.0
    %1123 = vmatprep.subr.mxu0 0.0
    %1124 = vmatpush1.msra.mxu0 0.0
    %1125 = vmatprep.subr.mxu0 0.0
    %1126 = vmatpush1.msra.mxu0 0.0
    %1127 = vmatprep.subr.mxu0 0.0
    %1128 = vmatpush1.msra.mxu0 0.0
    %1129 = vmatprep.subr.mxu0 0.0
    %1130 = vmatpush1.msra.mxu0 0.0
    %1131 = vmatprep.subr.mxu0 0.0
    %1132 = vmatpush1.msra.mxu0 0.0
    %1133 = vmatprep.subr.mxu0 0.0
    %1134 = vmatpush1.msra.mxu0 0.0
    %1135 = vmatprep.subr.mxu0 0.0
    %1136 = vmatpush1.msra.mxu0 0.0
    %1137 = vmatprep.subr.mxu0 0.0
    %1138 = vmatpush1.msra.mxu0 0.0
    %1139 = vmatprep.subr.mxu0 0.0
    %1140 = vmatpush1.msra.mxu0 0.0
    %1141 = vmatprep.subr.mxu0 0.0
    %1142 = vmatpush1.msra.mxu0 0.0
    %1143 = vmatprep.subr.mxu0 0.0
    %1144 = vmatpush1.msra.mxu0 0.0
    %1145 = vmatprep.subr.mxu0 0.0
    %1146 = vmatpush1.msra.mxu0 0.0
    %1147 = vmatprep.subr.mxu0 0.0
    %1148 = vmatpush1.msra.mxu0 0.0
    %1149 = vmatprep.subr.mxu0 0.0
    %1150 = vmatpush1.msra.mxu0 0.0
    %1151 = vmatprep.mubr.f32.mxu0 0.0
    %1152 = vmatmul.mubr.f32.gmra.mrb[0].mxu0 %v951
    %v1153 = vpop.f32.mrb[0].mxu0
    %v1154 = vadd.f32 %v912, %v1153
    %v1155 = vpop.f32.mrb[0].mxu0
    %v1156 = vadd.f32 %v912, %v1155
    %1157 = vmatprep.mubr.f32.mxu0 0.0
    %1158 = vmatmul.mubr.f32.gmra.mrb[0].mxu0 %v954
    %v1159 = vpop.f32.mrb[0].mxu0
    %v1160 = vadd.f32 %v917, %v1159
    %v1161 = vpop.f32.mrb[0].mxu0
    %v1162 = vadd.f32 %v917, %v1161
    %1163 = vmatprep.mubr.f32.mxu0 0.0
    %1164 = vmatmul.mubr.f32.gmra.mrb[0].mxu0 %v957
    %v1165 = vpop.f32.mrb[0].mxu0
    %v1166 = vadd.f32 %v922, %v1165
    %v1167 = vpop.f32.mrb[0].mxu0
    %v1168 = vadd.f32 %v922, %v1167
    %1169 = vmatprep.mubr.f32.mxu0 0.0
    %1170 = vmatmul.mubr.f32.gmra.mrb[0].mxu0 %v960
    %v1171 = vpop.f32.mrb[0].mxu0
    %v1172 = vadd.f32 %v927, %v1171
    %v1173 = vpop.f32.mrb[0].mxu0
    %v1174 = vadd.f32 %v927, %v1173
    %1175 = vmatprep.mubr.f32.mxu0 0.0
    %1176 = vmatmul.mubr.f32.gmra.mrb[0].mxu0 %v963
    %v1177 = vpop.f32.mrb[0].mxu0
    %v1178 = vadd.f32 %v932, %v1177
    %v1179 = vpop.f32.mrb[0].mxu0
    %v1180 = vadd.f32 %v932, %v1179
    %1181 = vmatprep.mubr.f32.mxu0 0.0
    %1182 = vmatmul.mubr.f32.gmra.mrb[0].mxu0 %v966
    %v1183 = vpop.f32.mrb[0].mxu0
    %v1184 = vadd.f32 %v937, %v1183
    %v1185 = vpop.f32.mrb[0].mxu0
    %v1186 = vadd.f32 %v937, %v1185
    %1187 = vmatprep.mubr.f32.mxu0 0.0
    %1188 = vmatmul.mubr.f32.gmra.mrb[0].mxu0 %v969
    %v1189 = vpop.f32.mrb[0].mxu0
    %v1190 = vadd.f32 %v942, %v1189
    %v1191 = vpop.f32.mrb[0].mxu0
    %v1192 = vadd.f32 %v942, %v1191
    %1193 = vmatprep.mubr.f32.mxu0 0.0
    %1194 = vmatmul.mubr.f32.gmra.mrb[0].mxu0 %v972
    %v1195 = vpop.f32.mrb[0].mxu0
    %v1196 = vadd.f32 %v947, %v1195
    %v1197 = vpop.f32.mrb[0].mxu0
    %v1198 = vadd.f32 %v947, %v1197
    %1199 = vdwg.mxu0
    %v1200 = vmax.f32 %v1041, 0.0
    %v1201 = vmax.f32 %v1043, 0.0
    %v1202 = vmax.f32 %v1154, 0.0
    %v1203 = vmax.f32 %v1156, 0.0
    %v1204 = vmax.f32 %v1047, 0.0
    %v1205 = vmax.f32 %v1049, 0.0
    %v1206 = vmax.f32 %v1160, 0.0
    %v1207 = vmax.f32 %v1162, 0.0
    %v1208 = vmax.f32 %v1053, 0.0
    %v1209 = vmax.f32 %v1055, 0.0
    %v1210 = vmax.f32 %v1166, 0.0
    %v1211 = vmax.f32 %v1168, 0.0
    %v1212 = vmax.f32 %v1059, 0.0
    %v1213 = vmax.f32 %v1061, 0.0
    %v1214 = vmax.f32 %v1172, 0.0
    %v1215 = vmax.f32 %v1174, 0.0
    %v1216 = vmax.f32 %v1065, 0.0
    %v1217 = vmax.f32 %v1067, 0.0
    %v1218 = vmax.f32 %v1178, 0.0
    %v1219 = vmax.f32 %v1180, 0.0
    %v1220 = vmax.f32 %v1071, 0.0
    %v1221 = vmax.f32 %v1073, 0.0
    %v1222 = vmax.f32 %v1184, 0.0
    %v1223 = vmax.f32 %v1186, 0.0
    %v1224 = vmax.f32 %v1077, 0.0
    %v1225 = vmax.f32 %v1079, 0.0
    %v1226 = vmax.f32 %v1190, 0.0
    %v1227 = vmax.f32 %v1192, 0.0
    %v1228 = vmax.f32 %v1083, 0.0
    %v1229 = vmax.f32 %v1085, 0.0
    %v1230 = vmax.f32 %v1196, 0.0
    %v1231 = vmax.f32 %v1198, 0.0
    %v1232 = vsel %vm104, 1, 0
    %v1233 = vsel %vm105, 1, 0
    %v1234 = vsel %vm106, 1, 0
    %v1235 = vsel %vm107, 1, 0
    %vm1236 = vcmp.eq.s32.totalorder %v1232, 1
    %vm1237 = vcmp.eq.s32.totalorder %v1233, 1
    %vm1238 = vcmp.eq.s32.totalorder %v1234, 1
    %vm1239 = vcmp.eq.s32.totalorder %v1235, 1
    %v1240 = vsel %vm1236, %v1200, 0.0
    %v1241 = vsel %vm1237, %v1201, 0.0
    %v1242 = vsel %vm1238, %v1202, 0.0
    %v1243 = vsel %vm1239, %v1203, 0.0
    %v1244 = vsel %vm1236, %v1204, 0.0
    %v1245 = vsel %vm1237, %v1205, 0.0
    %v1246 = vsel %vm1238, %v1206, 0.0
    %v1247 = vsel %vm1239, %v1207, 0.0
    %v1248 = vsel %vm1236, %v1208, 0.0
    %v1249 = vsel %vm1237, %v1209, 0.0
    %v1250 = vsel %vm1238, %v1210, 0.0
    %v1251 = vsel %vm1239, %v1211, 0.0
    %v1252 = vsel %vm1236, %v1212, 0.0
    %v1253 = vsel %vm1237, %v1213, 0.0
    %v1254 = vsel %vm1238, %v1214, 0.0
    %v1255 = vsel %vm1239, %v1215, 0.0
    %v1256 = vsel %vm1236, %v1216, 0.0
    %v1257 = vsel %vm1237, %v1217, 0.0
    %v1258 = vsel %vm1238, %v1218, 0.0
    %v1259 = vsel %vm1239, %v1219, 0.0
    %v1260 = vsel %vm1236, %v1220, 0.0
    %v1261 = vsel %vm1237, %v1221, 0.0
    %v1262 = vsel %vm1238, %v1222, 0.0
    %v1263 = vsel %vm1239, %v1223, 0.0
    %v1264 = vsel %vm1236, %v1224, 0.0
    %v1265 = vsel %vm1237, %v1225, 0.0
    %v1266 = vsel %vm1238, %v1226, 0.0
    %v1267 = vsel %vm1239, %v1227, 0.0
    %v1268 = vsel %vm1236, %v1228, 0.0
    %v1269 = vsel %vm1237, %v1229, 0.0
    %v1270 = vsel %vm1238, %v1230, 0.0
    %v1271 = vsel %vm1239, %v1231, 0.0
    %1272 = vst [vmem:[#allocation3] sm:$0xff] %v1240
    %1273 = vst [vmem:[#allocation3 + $0x8] sm:$0xff] %v1241
    %1274 = vst [vmem:[#allocation3 + $0x10] sm:$0xff] %v1242
    %1275 = vst [vmem:[#allocation3 + $0x18] sm:$0xff] %v1243
    %1276 = vst [vmem:[#allocation3 + $0x20] sm:$0xff] %v1244
    %1277 = vst [vmem:[#allocation3 + $0x28] sm:$0xff] %v1245
    %1278 = vst [vmem:[#allocation3 + $0x30] sm:$0xff] %v1246
    %1279 = vst [vmem:[#allocation3 + $0x38] sm:$0xff] %v1247
    %1280 = vst [vmem:[#allocation3 + $0x40] sm:$0xff] %v1248
    %1281 = vst [vmem:[#allocation3 + $0x48] sm:$0xff] %v1249
    %1282 = vst [vmem:[#allocation3 + $0x50] sm:$0xff] %v1250
    %1283 = vst [vmem:[#allocation3 + $0x58] sm:$0xff] %v1251
    %1284 = vst [vmem:[#allocation3 + $0x60] sm:$0xff] %v1252
    %1285 = vst [vmem:[#allocation3 + $0x68] sm:$0xff] %v1253
    %1286 = vst [vmem:[#allocation3 + $0x70] sm:$0xff] %v1254
    %1287 = vst [vmem:[#allocation3 + $0x78] sm:$0xff] %v1255
    %1288 = vst [vmem:[#allocation3 + $0x80] sm:$0xff] %v1256
    %1289 = vst [vmem:[#allocation3 + $0x88] sm:$0xff] %v1257
    %1290 = vst [vmem:[#allocation3 + $0x90] sm:$0xff] %v1258
    %1291 = vst [vmem:[#allocation3 + $0x98] sm:$0xff] %v1259
    %1292 = vst [vmem:[#allocation3 + $0xa0] sm:$0xff] %v1260
    %1293 = vst [vmem:[#allocation3 + $0xa8] sm:$0xff] %v1261
    %1294 = vst [vmem:[#allocation3 + $0xb0] sm:$0xff] %v1262
    %1295 = vst [vmem:[#allocation3 + $0xb8] sm:$0xff] %v1263
    %1296 = vst [vmem:[#allocation3 + $0xc0] sm:$0xff] %v1264
    %1297 = vst [vmem:[#allocation3 + $0xc8] sm:$0xff] %v1265
    %1298 = vst [vmem:[#allocation3 + $0xd0] sm:$0xff] %v1266
    %1299 = vst [vmem:[#allocation3 + $0xd8] sm:$0xff] %v1267
    %1300 = vst [vmem:[#allocation3 + $0xe0] sm:$0xff] %v1268
    %1301 = vst [vmem:[#allocation3 + $0xe8] sm:$0xff] %v1269
    %1302 = vst [vmem:[#allocation3 + $0xf0] sm:$0xff] %v1270
    %1303 = vst [vmem:[#allocation3 + $0xf8] sm:$0xff] %v1271
    %v1304 = vadd.f32 %v1240, %v1241
    %v1305 = vadd.f32 %v1304, %v1242
    %v1306 = vadd.f32 %v1305, %v1243
    %1307 = vadd.xlane.f32.xlu0 %v1306
    %v1308 = vpop.xlane.xlu0 %1307
    %v1309 = vadd.f32 %v1244, %v1245
    %v1310 = vadd.f32 %v1309, %v1246
    %v1311 = vadd.f32 %v1310, %v1247
    %1312 = vadd.xlane.f32.xlu0 %v1311
    %v1313 = vpop.xlane.xlu0 %1312
    %v1314 = vadd.f32 %v1248, %v1249
    %v1315 = vadd.f32 %v1314, %v1250
    %v1316 = vadd.f32 %v1315, %v1251
    %1317 = vadd.xlane.f32.xlu0 %v1316
    %v1318 = vpop.xlane.xlu0 %1317
    %v1319 = vadd.f32 %v1252, %v1253
    %v1320 = vadd.f32 %v1319, %v1254
    %v1321 = vadd.f32 %v1320, %v1255
    %1322 = vadd.xlane.f32.xlu0 %v1321
    %v1323 = vpop.xlane.xlu0 %1322
    %v1324 = vadd.f32 %v1256, %v1257
    %v1325 = vadd.f32 %v1324, %v1258
    %v1326 = vadd.f32 %v1325, %v1259
    %1327 = vadd.xlane.f32.xlu0 %v1326
    %v1328 = vpop.xlane.xlu0 %1327
    %v1329 = vadd.f32 %v1260, %v1261
    %v1330 = vadd.f32 %v1329, %v1262
    %v1331 = vadd.f32 %v1330, %v1263
    %1332 = vadd.xlane.f32.xlu0 %v1331
    %v1333 = vpop.xlane.xlu0 %1332
    %v1334 = vadd.f32 %v1264, %v1265
    %v1335 = vadd.f32 %v1334, %v1266
    %v1336 = vadd.f32 %v1335, %v1267
    %1337 = vadd.xlane.f32.xlu0 %v1336
    %v1338 = vpop.xlane.xlu0 %1337
    %v1339 = vadd.f32 %v1268, %v1269
    %v1340 = vadd.f32 %v1339, %v1270
    %v1341 = vadd.f32 %v1340, %v1271
    %1342 = vadd.xlane.f32.xlu0 %v1341
    %v1343 = vpop.xlane.xlu0 %1342
    %v1344 = vadd.f32 %v1308, 0.0
    %v1345 = vadd.f32 %v1313, 0.0
    %v1346 = vadd.f32 %v1318, 0.0
    %v1347 = vadd.f32 %v1323, 0.0
    %v1348 = vadd.f32 %v1328, 0.0
    %v1349 = vadd.f32 %v1333, 0.0
    %v1350 = vadd.f32 %v1338, 0.0
    %v1351 = vadd.f32 %v1343, 0.0
    %v1352 = vmul.f32 %v1240, %v1240
    %v1353 = vmul.f32 %v1241, %v1241
    %v1354 = vmul.f32 %v1242, %v1242
    %v1355 = vmul.f32 %v1243, %v1243
    %v1356 = vmul.f32 %v1244, %v1244
    %v1357 = vmul.f32 %v1245, %v1245
    %v1358 = vmul.f32 %v1246, %v1246
    %v1359 = vmul.f32 %v1247, %v1247
    %v1360 = vmul.f32 %v1248, %v1248
    %v1361 = vmul.f32 %v1249, %v1249
    %v1362 = vmul.f32 %v1250, %v1250
    %v1363 = vmul.f32 %v1251, %v1251
    %v1364 = vmul.f32 %v1252, %v1252
    %v1365 = vmul.f32 %v1253, %v1253
    %v1366 = vmul.f32 %v1254, %v1254
    %v1367 = vmul.f32 %v1255, %v1255
    %v1368 = vmul.f32 %v1256, %v1256
    %v1369 = vmul.f32 %v1257, %v1257
    %v1370 = vmul.f32 %v1258, %v1258
    %v1371 = vmul.f32 %v1259, %v1259
    %v1372 = vmul.f32 %v1260, %v1260
    %v1373 = vmul.f32 %v1261, %v1261
    %v1374 = vmul.f32 %v1262, %v1262
    %v1375 = vmul.f32 %v1263, %v1263
    %v1376 = vmul.f32 %v1264, %v1264
    %v1377 = vmul.f32 %v1265, %v1265
    %v1378 = vmul.f32 %v1266, %v1266
    %v1379 = vmul.f32 %v1267, %v1267
    %v1380 = vmul.f32 %v1268, %v1268
    %v1381 = vmul.f32 %v1269, %v1269
    %v1382 = vmul.f32 %v1270, %v1270
    %v1383 = vmul.f32 %v1271, %v1271
    %v1384 = vadd.f32 %v1352, %v1353
    %v1385 = vadd.f32 %v1384, %v1354
    %v1386 = vadd.f32 %v1385, %v1355
    %1387 = vadd.xlane.f32.xlu0 %v1386
    %v1388 = vpop.xlane.xlu0 %1387
    %v1389 = vadd.f32 %v1356, %v1357
    %v1390 = vadd.f32 %v1389, %v1358
    %v1391 = vadd.f32 %v1390, %v1359
    %1392 = vadd.xlane.f32.xlu0 %v1391
    %v1393 = vpop.xlane.xlu0 %1392
    %v1394 = vadd.f32 %v1360, %v1361
    %v1395 = vadd.f32 %v1394, %v1362
    %v1396 = vadd.f32 %v1395, %v1363
    %1397 = vadd.xlane.f32.xlu0 %v1396
    %v1398 = vpop.xlane.xlu0 %1397
    %v1399 = vadd.f32 %v1364, %v1365
    %v1400 = vadd.f32 %v1399, %v1366
    %v1401 = vadd.f32 %v1400, %v1367
    %1402 = vadd.xlane.f32.xlu0 %v1401
    %v1403 = vpop.xlane.xlu0 %1402
    %v1404 = vadd.f32 %v1368, %v1369
    %v1405 = vadd.f32 %v1404, %v1370
    %v1406 = vadd.f32 %v1405, %v1371
    %1407 = vadd.xlane.f32.xlu0 %v1406
    %v1408 = vpop.xlane.xlu0 %1407
    %v1409 = vadd.f32 %v1372, %v1373
    %v1410 = vadd.f32 %v1409, %v1374
    %v1411 = vadd.f32 %v1410, %v1375
    %1412 = vadd.xlane.f32.xlu0 %v1411
    %v1413 = vpop.xlane.xlu0 %1412
    %v1414 = vadd.f32 %v1376, %v1377
    %v1415 = vadd.f32 %v1414, %v1378
    %v1416 = vadd.f32 %v1415, %v1379
    %1417 = vadd.xlane.f32.xlu0 %v1416
    %v1418 = vpop.xlane.xlu0 %1417
    %v1419 = vadd.f32 %v1380, %v1381
    %v1420 = vadd.f32 %v1419, %v1382
    %v1421 = vadd.f32 %v1420, %v1383
    %1422 = vadd.xlane.f32.xlu0 %v1421
    %v1423 = vpop.xlane.xlu0 %1422
    %v1424 = vadd.f32 %v1388, 0.0
    %v1425 = vadd.f32 %v1393, 0.0
    %v1426 = vadd.f32 %v1398, 0.0
    %v1427 = vadd.f32 %v1403, 0.0
    %v1428 = vadd.f32 %v1408, 0.0
    %v1429 = vadd.f32 %v1413, 0.0
    %v1430 = vadd.f32 %v1418, 0.0
    %v1431 = vadd.f32 %v1423, 0.0
    %s1432 = scalar_lea.vmem %s6, 64
    %v1433 = vld [vmem:[%s1432] sm:$0xff]
    %v1434 = vld [vmem:[%s1432 + $0x8] sm:$0xff]
    %v1435 = vld [vmem:[%s1432 + $0x10] sm:$0xff]
    %v1436 = vld [vmem:[%s1432 + $0x18] sm:$0xff]
    %v1437 = vld [vmem:[%s1432 + $0x20] sm:$0xff]
    %v1438 = vld [vmem:[%s1432 + $0x28] sm:$0xff]
    %v1439 = vld [vmem:[%s1432 + $0x30] sm:$0xff]
    %v1440 = vld [vmem:[%s1432 + $0x38] sm:$0xff]
    %v1441 = vld [vmem:[#allocation2] sm:$0xff]
    %v1442 = vld [vmem:[#allocation2 + $0x8] sm:$0xff]
    %v1443 = vld [vmem:[#allocation2 + $0x10] sm:$0xff]
    %v1444 = vld [vmem:[#allocation2 + $0x18] sm:$0xff]
    %v1445 = vld [vmem:[#allocation2 + $0x20] sm:$0xff]
    %v1446 = vld [vmem:[#allocation2 + $0x28] sm:$0xff]
    %v1447 = vld [vmem:[#allocation2 + $0x30] sm:$0xff]
    %v1448 = vld [vmem:[#allocation2 + $0x38] sm:$0xff]
    %v1449 = vld [vmem:[#allocation2 + $0x40] sm:$0xff]
    %v1450 = vld [vmem:[#allocation2 + $0x48] sm:$0xff]
    %v1451 = vld [vmem:[#allocation2 + $0x50] sm:$0xff]
    %v1452 = vld [vmem:[#allocation2 + $0x58] sm:$0xff]
    %v1453 = vld [vmem:[#allocation2 + $0x60] sm:$0xff]
    %v1454 = vld [vmem:[#allocation2 + $0x68] sm:$0xff]
    %v1455 = vld [vmem:[#allocation2 + $0x70] sm:$0xff]
    %v1456 = vld [vmem:[#allocation2 + $0x78] sm:$0xff]
    %v1457 = vld [vmem:[#allocation2 + $0x80] sm:$0xff]
    %v1458 = vld [vmem:[#allocation2 + $0x88] sm:$0xff]
    %v1459 = vld [vmem:[#allocation2 + $0x90] sm:$0xff]
    %v1460 = vld [vmem:[#allocation2 + $0x98] sm:$0xff]
    %v1461 = vld [vmem:[#allocation2 + $0xa0] sm:$0xff]
    %v1462 = vld [vmem:[#allocation2 + $0xa8] sm:$0xff]
    %v1463 = vld [vmem:[#allocation2 + $0xb0] sm:$0xff]
    %v1464 = vld [vmem:[#allocation2 + $0xb8] sm:$0xff]
    %v1465 = vld [vmem:[#allocation2 + $0xc0] sm:$0xff]
    %v1466 = vld [vmem:[#allocation2 + $0xc8] sm:$0xff]
    %v1467 = vld [vmem:[#allocation2 + $0xd0] sm:$0xff]
    %v1468 = vld [vmem:[#allocation2 + $0xd8] sm:$0xff]
    %v1469 = vld [vmem:[#allocation2 + $0xe0] sm:$0xff]
    %v1470 = vld [vmem:[#allocation2 + $0xe8] sm:$0xff]
    %v1471 = vld [vmem:[#allocation2 + $0xf0] sm:$0xff]
    %v1472 = vld [vmem:[#allocation2 + $0xf8] sm:$0xff]
    %v1473 = vld [vmem:[%s7] sm:$0xff]
    %v1474 = vld [vmem:[%s7 + $0x8] sm:$0xff]
    %v1475 = vld [vmem:[%s7 + $0x10] sm:$0xff]
    %v1476 = vld [vmem:[%s7 + $0x18] sm:$0xff]
    %v1477 = vld [vmem:[%s7 + $0x20] sm:$0xff]
    %v1478 = vld [vmem:[%s7 + $0x28] sm:$0xff]
    %v1479 = vld [vmem:[%s7 + $0x30] sm:$0xff]
    %v1480 = vld [vmem:[%s7 + $0x38] sm:$0xff]
    %1482 = vset.pattern.permute.xlu0 0
    %1483 = vperm.xlu0 %1482, %v1473
    %v1484 = vpop.permute.xlu0 %1483
    %1487 = vset.pattern.permute.xlu0 0
    %1488 = vperm.xlu0 %1487, %v1474
    %v1489 = vpop.permute.xlu0 %1488
    %1492 = vset.pattern.permute.xlu0 0
    %1493 = vperm.xlu0 %1492, %v1475
    %v1494 = vpop.permute.xlu0 %1493
    %1497 = vset.pattern.permute.xlu0 0
    %1498 = vperm.xlu0 %1497, %v1476
    %v1499 = vpop.permute.xlu0 %1498
    %1502 = vset.pattern.permute.xlu0 0
    %1503 = vperm.xlu0 %1502, %v1477
    %v1504 = vpop.permute.xlu0 %1503
    %1507 = vset.pattern.permute.xlu0 0
    %1508 = vperm.xlu0 %1507, %v1478
    %v1509 = vpop.permute.xlu0 %1508
    %1512 = vset.pattern.permute.xlu0 0
    %1513 = vperm.xlu0 %1512, %v1479
    %v1514 = vpop.permute.xlu0 %1513
    %1517 = vset.pattern.permute.xlu0 0
    %1518 = vperm.xlu0 %1517, %v1480
    %v1519 = vpop.permute.xlu0 %1518
    %v1522 = vsel %vm949, %v1433, 0
    %v1525 = vsel %vm949, %v1434, 0
    %v1528 = vsel %vm949, %v1435, 0
    %v1531 = vsel %vm949, %v1436, 0
    %v1534 = vsel %vm949, %v1437, 0
    %v1537 = vsel %vm949, %v1438, 0
    %v1540 = vsel %vm949, %v1439, 0
    %v1543 = vsel %vm949, %v1440, 0
    %1545 = vmatprep.subr.mxu0 %v1442
    %1546 = vmatpush1.msra.mxu0 %v1441
    %1547 = vmatprep.subr.mxu0 %v1446
    %1548 = vmatpush1.msra.mxu0 %v1445
    %1549 = vmatprep.subr.mxu0 %v1450
    %1550 = vmatpush1.msra.mxu0 %v1449
    %1551 = vmatprep.subr.mxu0 %v1454
    %1552 = vmatpush1.msra.mxu0 %v1453
    %1553 = vmatprep.subr.mxu0 %v1458
    %1554 = vmatpush1.msra.mxu0 %v1457
    %1555 = vmatprep.subr.mxu0 %v1462
    %1556 = vmatpush1.msra.mxu0 %v1461
    %1557 = vmatprep.subr.mxu0 %v1466
    %1558 = vmatpush1.msra.mxu0 %v1465
    %1559 = vmatprep.subr.mxu0 %v1470
    %1560 = vmatpush1.msra.mxu0 %v1469
    %1561 = vmatprep.subr.mxu0 0.0
    %1562 = vmatpush1.msra.mxu0 0.0
    %1563 = vmatprep.subr.mxu0 0.0
    %1564 = vmatpush1.msra.mxu0 0.0
    %1565 = vmatprep.subr.mxu0 0.0
    %1566 = vmatpush1.msra.mxu0 0.0
    %1567 = vmatprep.subr.mxu0 0.0
    %1568 = vmatpush1.msra.mxu0 0.0
    %1569 = vmatprep.subr.mxu0 0.0
    %1570 = vmatpush1.msra.mxu0 0.0
    %1571 = vmatprep.subr.mxu0 0.0
    %1572 = vmatpush1.msra.mxu0 0.0
    %1573 = vmatprep.subr.mxu0 0.0
    %1574 = vmatpush1.msra.mxu0 0.0
    %1575 = vmatprep.subr.mxu0 0.0
    %1576 = vmatpush1.msra.mxu0 0.0
    %1577 = vmatprep.subr.mxu0 0.0
    %1578 = vmatpush1.msra.mxu0 0.0
    %1579 = vmatprep.subr.mxu0 0.0
    %1580 = vmatpush1.msra.mxu0 0.0
    %1581 = vmatprep.subr.mxu0 0.0
    %1582 = vmatpush1.msra.mxu0 0.0
    %1583 = vmatprep.subr.mxu0 0.0
    %1584 = vmatpush1.msra.mxu0 0.0
    %1585 = vmatprep.subr.mxu0 0.0
    %1586 = vmatpush1.msra.mxu0 0.0
    %1587 = vmatprep.subr.mxu0 0.0
    %1588 = vmatpush1.msra.mxu0 0.0
    %1589 = vmatprep.subr.mxu0 0.0
    %1590 = vmatpush1.msra.mxu0 0.0
    %1591 = vmatprep.subr.mxu0 0.0
    %1592 = vmatpush1.msra.mxu0 0.0
    %1593 = vmatprep.subr.mxu0 0.0
    %1594 = vmatpush1.msra.mxu0 0.0
    %1595 = vmatprep.subr.mxu0 0.0
    %1596 = vmatpush1.msra.mxu0 0.0
    %1597 = vmatprep.subr.mxu0 0.0
    %1598 = vmatpush1.msra.mxu0 0.0
    %1599 = vmatprep.subr.mxu0 0.0
    %1600 = vmatpush1.msra.mxu0 0.0
    %1601 = vmatprep.subr.mxu0 0.0
    %1602 = vmatpush1.msra.mxu0 0.0
    %1603 = vmatprep.subr.mxu0 0.0
    %1604 = vmatpush1.msra.mxu0 0.0
    %1605 = vmatprep.subr.mxu0 0.0
    %1606 = vmatpush1.msra.mxu0 0.0
    %1607 = vmatprep.subr.mxu0 0.0
    %1608 = vmatpush1.msra.mxu0 0.0
    %1609 = vmatprep.mubr.f32.mxu0 0.0
    %1610 = vmatmul.mubr.f32.gmra.mrb[0].mxu0 %v1522
    %v1611 = vpop.f32.mrb[0].mxu0
    %v1612 = vadd.f32 %v1484, %v1611
    %v1613 = vpop.f32.mrb[0].mxu0
    %v1614 = vadd.f32 %v1484, %v1613
    %1615 = vmatprep.mubr.f32.mxu0 0.0
    %1616 = vmatmul.mubr.f32.gmra.mrb[0].mxu0 %v1525
    %v1617 = vpop.f32.mrb[0].mxu0
    %v1618 = vadd.f32 %v1489, %v1617
    %v1619 = vpop.f32.mrb[0].mxu0
    %v1620 = vadd.f32 %v1489, %v1619
    %1621 = vmatprep.mubr.f32.mxu0 0.0
    %1622 = vmatmul.mubr.f32.gmra.mrb[0].mxu0 %v1528
    %v1623 = vpop.f32.mrb[0].mxu0
    %v1624 = vadd.f32 %v1494, %v1623
    %v1625 = vpop.f32.mrb[0].mxu0
    %v1626 = vadd.f32 %v1494, %v1625
    %1627 = vmatprep.mubr.f32.mxu0 0.0
    %1628 = vmatmul.mubr.f32.gmra.mrb[0].mxu0 %v1531
    %v1629 = vpop.f32.mrb[0].mxu0
    %v1630 = vadd.f32 %v1499, %v1629
    %v1631 = vpop.f32.mrb[0].mxu0
    %v1632 = vadd.f32 %v1499, %v1631
    %1633 = vmatprep.mubr.f32.mxu0 0.0
    %1634 = vmatmul.mubr.f32.gmra.mrb[0].mxu0 %v1534
    %v1635 = vpop.f32.mrb[0].mxu0
    %v1636 = vadd.f32 %v1504, %v1635
    %v1637 = vpop.f32.mrb[0].mxu0
    %v1638 = vadd.f32 %v1504, %v1637
    %1639 = vmatprep.mubr.f32.mxu0 0.0
    %1640 = vmatmul.mubr.f32.gmra.mrb[0].mxu0 %v1537
    %v1641 = vpop.f32.mrb[0].mxu0
    %v1642 = vadd.f32 %v1509, %v1641
    %v1643 = vpop.f32.mrb[0].mxu0
    %v1644 = vadd.f32 %v1509, %v1643
    %1645 = vmatprep.mubr.f32.mxu0 0.0
    %1646 = vmatmul.mubr.f32.gmra.mrb[0].mxu0 %v1540
    %v1647 = vpop.f32.mrb[0].mxu0
    %v1648 = vadd.f32 %v1514, %v1647
    %v1649 = vpop.f32.mrb[0].mxu0
    %v1650 = vadd.f32 %v1514, %v1649
    %1651 = vmatprep.mubr.f32.mxu0 0.0
    %1652 = vmatmul.mubr.f32.gmra.mrb[0].mxu0 %v1543
    %v1653 = vpop.f32.mrb[0].mxu0
    %v1654 = vadd.f32 %v1519, %v1653
    %v1655 = vpop.f32.mrb[0].mxu0
    %v1656 = vadd.f32 %v1519, %v1655
    %1657 = vdwg.mxu0
    %1658 = vmatprep.subr.mxu0 %v1444
    %1659 = vmatpush1.msra.mxu0 %v1443
    %1660 = vmatprep.subr.mxu0 %v1448
    %1661 = vmatpush1.msra.mxu0 %v1447
    %1662 = vmatprep.subr.mxu0 %v1452
    %1663 = vmatpush1.msra.mxu0 %v1451
    %1664 = vmatprep.subr.mxu0 %v1456
    %1665 = vmatpush1.msra.mxu0 %v1455
    %1666 = vmatprep.subr.mxu0 %v1460
    %1667 = vmatpush1.msra.mxu0 %v1459
    %1668 = vmatprep.subr.mxu0 %v1464
    %1669 = vmatpush1.msra.mxu0 %v1463
    %1670 = vmatprep.subr.mxu0 %v1468
    %1671 = vmatpush1.msra.mxu0 %v1467
    %1672 = vmatprep.subr.mxu0 %v1472
    %1673 = vmatpush1.msra.mxu0 %v1471
    %1674 = vmatprep.subr.mxu0 0.0
    %1675 = vmatpush1.msra.mxu0 0.0
    %1676 = vmatprep.subr.mxu0 0.0
    %1677 = vmatpush1.msra.mxu0 0.0
    %1678 = vmatprep.subr.mxu0 0.0
    %1679 = vmatpush1.msra.mxu0 0.0
    %1680 = vmatprep.subr.mxu0 0.0
    %1681 = vmatpush1.msra.mxu0 0.0
    %1682 = vmatprep.subr.mxu0 0.0
    %1683 = vmatpush1.msra.mxu0 0.0
    %1684 = vmatprep.subr.mxu0 0.0
    %1685 = vmatpush1.msra.mxu0 0.0
    %1686 = vmatprep.subr.mxu0 0.0
    %1687 = vmatpush1.msra.mxu0 0.0
    %1688 = vmatprep.subr.mxu0 0.0
    %1689 = vmatpush1.msra.mxu0 0.0
    %1690 = vmatprep.subr.mxu0 0.0
    %1691 = vmatpush1.msra.mxu0 0.0
    %1692 = vmatprep.subr.mxu0 0.0
    %1693 = vmatpush1.msra.mxu0 0.0
    %1694 = vmatprep.subr.mxu0 0.0
    %1695 = vmatpush1.msra.mxu0 0.0
    %1696 = vmatprep.subr.mxu0 0.0
    %1697 = vmatpush1.msra.mxu0 0.0
    %1698 = vmatprep.subr.mxu0 0.0
    %1699 = vmatpush1.msra.mxu0 0.0
    %1700 = vmatprep.subr.mxu0 0.0
    %1701 = vmatpush1.msra.mxu0 0.0
    %1702 = vmatprep.subr.mxu0 0.0
    %1703 = vmatpush1.msra.mxu0 0.0
    %1704 = vmatprep.subr.mxu0 0.0
    %1705 = vmatpush1.msra.mxu0 0.0
    %1706 = vmatprep.subr.mxu0 0.0
    %1707 = vmatpush1.msra.mxu0 0.0
    %1708 = vmatprep.subr.mxu0 0.0
    %1709 = vmatpush1.msra.mxu0 0.0
    %1710 = vmatprep.subr.mxu0 0.0
    %1711 = vmatpush1.msra.mxu0 0.0
    %1712 = vmatprep.subr.mxu0 0.0
    %1713 = vmatpush1.msra.mxu0 0.0
    %1714 = vmatprep.subr.mxu0 0.0
    %1715 = vmatpush1.msra.mxu0 0.0
    %1716 = vmatprep.subr.mxu0 0.0
    %1717 = vmatpush1.msra.mxu0 0.0
    %1718 = vmatprep.subr.mxu0 0.0
    %1719 = vmatpush1.msra.mxu0 0.0
    %1720 = vmatprep.subr.mxu0 0.0
    %1721 = vmatpush1.msra.mxu0 0.0
    %1722 = vmatprep.mubr.f32.mxu0 0.0
    %1723 = vmatmul.mubr.f32.gmra.mrb[0].mxu0 %v1522
    %v1724 = vpop.f32.mrb[0].mxu0
    %v1725 = vadd.f32 %v1484, %v1724
    %v1726 = vpop.f32.mrb[0].mxu0
    %v1727 = vadd.f32 %v1484, %v1726
    %1728 = vmatprep.mubr.f32.mxu0 0.0
    %1729 = vmatmul.mubr.f32.gmra.mrb[0].mxu0 %v1525
    %v1730 = vpop.f32.mrb[0].mxu0
    %v1731 = vadd.f32 %v1489, %v1730
    %v1732 = vpop.f32.mrb[0].mxu0
    %v1733 = vadd.f32 %v1489, %v1732
    %1734 = vmatprep.mubr.f32.mxu0 0.0
    %1735 = vmatmul.mubr.f32.gmra.mrb[0].mxu0 %v1528
    %v1736 = vpop.f32.mrb[0].mxu0
    %v1737 = vadd.f32 %v1494, %v1736
    %v1738 = vpop.f32.mrb[0].mxu0
    %v1739 = vadd.f32 %v1494, %v1738
    %1740 = vmatprep.mubr.f32.mxu0 0.0
    %1741 = vmatmul.mubr.f32.gmra.mrb[0].mxu0 %v1531
    %v1742 = vpop.f32.mrb[0].mxu0
    %v1743 = vadd.f32 %v1499, %v1742
    %v1744 = vpop.f32.mrb[0].mxu0
    %v1745 = vadd.f32 %v1499, %v1744
    %1746 = vmatprep.mubr.f32.mxu0 0.0
    %1747 = vmatmul.mubr.f32.gmra.mrb[0].mxu0 %v1534
    %v1748 = vpop.f32.mrb[0].mxu0
    %v1749 = vadd.f32 %v1504, %v1748
    %v1750 = vpop.f32.mrb[0].mxu0
    %v1751 = vadd.f32 %v1504, %v1750
    %1752 = vmatprep.mubr.f32.mxu0 0.0
    %1753 = vmatmul.mubr.f32.gmra.mrb[0].mxu0 %v1537
    %v1754 = vpop.f32.mrb[0].mxu0
    %v1755 = vadd.f32 %v1509, %v1754
    %v1756 = vpop.f32.mrb[0].mxu0
    %v1757 = vadd.f32 %v1509, %v1756
    %1758 = vmatprep.mubr.f32.mxu0 0.0
    %1759 = vmatmul.mubr.f32.gmra.mrb[0].mxu0 %v1540
    %v1760 = vpop.f32.mrb[0].mxu0
    %v1761 = vadd.f32 %v1514, %v1760
    %v1762 = vpop.f32.mrb[0].mxu0
    %v1763 = vadd.f32 %v1514, %v1762
    %1764 = vmatprep.mubr.f32.mxu0 0.0
    %1765 = vmatmul.mubr.f32.gmra.mrb[0].mxu0 %v1543
    %v1766 = vpop.f32.mrb[0].mxu0
    %v1767 = vadd.f32 %v1519, %v1766
    %v1768 = vpop.f32.mrb[0].mxu0
    %v1769 = vadd.f32 %v1519, %v1768
    %1770 = vdwg.mxu0
    %v1771 = vmax.f32 %v1612, 0.0
    %v1772 = vmax.f32 %v1614, 0.0
    %v1773 = vmax.f32 %v1725, 0.0
    %v1774 = vmax.f32 %v1727, 0.0
    %v1775 = vmax.f32 %v1618, 0.0
    %v1776 = vmax.f32 %v1620, 0.0
    %v1777 = vmax.f32 %v1731, 0.0
    %v1778 = vmax.f32 %v1733, 0.0
    %v1779 = vmax.f32 %v1624, 0.0
    %v1780 = vmax.f32 %v1626, 0.0
    %v1781 = vmax.f32 %v1737, 0.0
    %v1782 = vmax.f32 %v1739, 0.0
    %v1783 = vmax.f32 %v1630, 0.0
    %v1784 = vmax.f32 %v1632, 0.0
    %v1785 = vmax.f32 %v1743, 0.0
    %v1786 = vmax.f32 %v1745, 0.0
    %v1787 = vmax.f32 %v1636, 0.0
    %v1788 = vmax.f32 %v1638, 0.0
    %v1789 = vmax.f32 %v1749, 0.0
    %v1790 = vmax.f32 %v1751, 0.0
    %v1791 = vmax.f32 %v1642, 0.0
    %v1792 = vmax.f32 %v1644, 0.0
    %v1793 = vmax.f32 %v1755, 0.0
    %v1794 = vmax.f32 %v1757, 0.0
    %v1795 = vmax.f32 %v1648, 0.0
    %v1796 = vmax.f32 %v1650, 0.0
    %v1797 = vmax.f32 %v1761, 0.0
    %v1798 = vmax.f32 %v1763, 0.0
    %v1799 = vmax.f32 %v1654, 0.0
    %v1800 = vmax.f32 %v1656, 0.0
    %v1801 = vmax.f32 %v1767, 0.0
    %v1802 = vmax.f32 %v1769, 0.0
    %v1803 = vsel %vm1236, %v1771, 0.0
    %v1804 = vsel %vm1237, %v1772, 0.0
    %v1805 = vsel %vm1238, %v1773, 0.0
    %v1806 = vsel %vm1239, %v1774, 0.0
    %v1807 = vsel %vm1236, %v1775, 0.0
    %v1808 = vsel %vm1237, %v1776, 0.0
    %v1809 = vsel %vm1238, %v1777, 0.0
    %v1810 = vsel %vm1239, %v1778, 0.0
    %v1811 = vsel %vm1236, %v1779, 0.0
    %v1812 = vsel %vm1237, %v1780, 0.0
    %v1813 = vsel %vm1238, %v1781, 0.0
    %v1814 = vsel %vm1239, %v1782, 0.0
    %v1815 = vsel %vm1236, %v1783, 0.0
    %v1816 = vsel %vm1237, %v1784, 0.0
    %v1817 = vsel %vm1238, %v1785, 0.0
    %v1818 = vsel %vm1239, %v1786, 0.0
    %v1819 = vsel %vm1236, %v1787, 0.0
    %v1820 = vsel %vm1237, %v1788, 0.0
    %v1821 = vsel %vm1238, %v1789, 0.0
    %v1822 = vsel %vm1239, %v1790, 0.0
    %v1823 = vsel %vm1236, %v1791, 0.0
    %v1824 = vsel %vm1237, %v1792, 0.0
    %v1825 = vsel %vm1238, %v1793, 0.0
    %v1826 = vsel %vm1239, %v1794, 0.0
    %v1827 = vsel %vm1236, %v1795, 0.0
    %v1828 = vsel %vm1237, %v1796, 0.0
    %v1829 = vsel %vm1238, %v1797, 0.0
    %v1830 = vsel %vm1239, %v1798, 0.0
    %v1831 = vsel %vm1236, %v1799, 0.0
    %v1832 = vsel %vm1237, %v1800, 0.0
    %v1833 = vsel %vm1238, %v1801, 0.0
    %v1834 = vsel %vm1239, %v1802, 0.0
    %1835 = vst [vmem:[#allocation3 + $0x100] sm:$0xff] %v1803
    %1836 = vst [vmem:[#allocation3 + $0x108] sm:$0xff] %v1804
    %1837 = vst [vmem:[#allocation3 + $0x110] sm:$0xff] %v1805
    %1838 = vst [vmem:[#allocation3 + $0x118] sm:$0xff] %v1806
    %1839 = vst [vmem:[#allocation3 + $0x120] sm:$0xff] %v1807
    %1840 = vst [vmem:[#allocation3 + $0x128] sm:$0xff] %v1808
    %1841 = vst [vmem:[#allocation3 + $0x130] sm:$0xff] %v1809
    %1842 = vst [vmem:[#allocation3 + $0x138] sm:$0xff] %v1810
    %1843 = vst [vmem:[#allocation3 + $0x140] sm:$0xff] %v1811
    %1844 = vst [vmem:[#allocation3 + $0x148] sm:$0xff] %v1812
    %1845 = vst [vmem:[#allocation3 + $0x150] sm:$0xff] %v1813
    %1846 = vst [vmem:[#allocation3 + $0x158] sm:$0xff] %v1814
    %1847 = vst [vmem:[#allocation3 + $0x160] sm:$0xff] %v1815
    %1848 = vst [vmem:[#allocation3 + $0x168] sm:$0xff] %v1816
    %1849 = vst [vmem:[#allocation3 + $0x170] sm:$0xff] %v1817
    %1850 = vst [vmem:[#allocation3 + $0x178] sm:$0xff] %v1818
    %1851 = vst [vmem:[#allocation3 + $0x180] sm:$0xff] %v1819
    %1852 = vst [vmem:[#allocation3 + $0x188] sm:$0xff] %v1820
    %1853 = vst [vmem:[#allocation3 + $0x190] sm:$0xff] %v1821
    %1854 = vst [vmem:[#allocation3 + $0x198] sm:$0xff] %v1822
    %1855 = vst [vmem:[#allocation3 + $0x1a0] sm:$0xff] %v1823
    %1856 = vst [vmem:[#allocation3 + $0x1a8] sm:$0xff] %v1824
    %1857 = vst [vmem:[#allocation3 + $0x1b0] sm:$0xff] %v1825
    %1858 = vst [vmem:[#allocation3 + $0x1b8] sm:$0xff] %v1826
    %1859 = vst [vmem:[#allocation3 + $0x1c0] sm:$0xff] %v1827
    %1860 = vst [vmem:[#allocation3 + $0x1c8] sm:$0xff] %v1828
    %1861 = vst [vmem:[#allocation3 + $0x1d0] sm:$0xff] %v1829
    %1862 = vst [vmem:[#allocation3 + $0x1d8] sm:$0xff] %v1830
    %1863 = vst [vmem:[#allocation3 + $0x1e0] sm:$0xff] %v1831
    %1864 = vst [vmem:[#allocation3 + $0x1e8] sm:$0xff] %v1832
    %1865 = vst [vmem:[#allocation3 + $0x1f0] sm:$0xff] %v1833
    %1866 = vst [vmem:[#allocation3 + $0x1f8] sm:$0xff] %v1834
    %v1867 = vadd.f32 %v1803, %v1804
    %v1868 = vadd.f32 %v1867, %v1805
    %v1869 = vadd.f32 %v1868, %v1806
    %1870 = vadd.xlane.f32.xlu0 %v1869
    %v1871 = vpop.xlane.xlu0 %1870
    %v1872 = vadd.f32 %v1807, %v1808
    %v1873 = vadd.f32 %v1872, %v1809
    %v1874 = vadd.f32 %v1873, %v1810
    %1875 = vadd.xlane.f32.xlu0 %v1874
    %v1876 = vpop.xlane.xlu0 %1875
    %v1877 = vadd.f32 %v1811, %v1812
    %v1878 = vadd.f32 %v1877, %v1813
    %v1879 = vadd.f32 %v1878, %v1814
    %1880 = vadd.xlane.f32.xlu0 %v1879
    %v1881 = vpop.xlane.xlu0 %1880
    %v1882 = vadd.f32 %v1815, %v1816
    %v1883 = vadd.f32 %v1882, %v1817
    %v1884 = vadd.f32 %v1883, %v1818
    %1885 = vadd.xlane.f32.xlu0 %v1884
    %v1886 = vpop.xlane.xlu0 %1885
    %v1887 = vadd.f32 %v1819, %v1820
    %v1888 = vadd.f32 %v1887, %v1821
    %v1889 = vadd.f32 %v1888, %v1822
    %1890 = vadd.xlane.f32.xlu0 %v1889
    %v1891 = vpop.xlane.xlu0 %1890
    %v1892 = vadd.f32 %v1823, %v1824
    %v1893 = vadd.f32 %v1892, %v1825
    %v1894 = vadd.f32 %v1893, %v1826
    %1895 = vadd.xlane.f32.xlu0 %v1894
    %v1896 = vpop.xlane.xlu0 %1895
    %v1897 = vadd.f32 %v1827, %v1828
    %v1898 = vadd.f32 %v1897, %v1829
    %v1899 = vadd.f32 %v1898, %v1830
    %1900 = vadd.xlane.f32.xlu0 %v1899
    %v1901 = vpop.xlane.xlu0 %1900
    %v1902 = vadd.f32 %v1831, %v1832
    %v1903 = vadd.f32 %v1902, %v1833
    %v1904 = vadd.f32 %v1903, %v1834
    %1905 = vadd.xlane.f32.xlu0 %v1904
    %v1906 = vpop.xlane.xlu0 %1905
    %v1907 = vadd.f32 %v1344, %v1871
    %v1908 = vadd.f32 %v1345, %v1876
    %v1909 = vadd.f32 %v1346, %v1881
    %v1910 = vadd.f32 %v1347, %v1886
    %v1911 = vadd.f32 %v1348, %v1891
    %v1912 = vadd.f32 %v1349, %v1896
    %v1913 = vadd.f32 %v1350, %v1901
    %v1914 = vadd.f32 %v1351, %v1906
    %v1915 = vmul.f32 %v1803, %v1803
    %v1916 = vmul.f32 %v1804, %v1804
    %v1917 = vmul.f32 %v1805, %v1805
    %v1918 = vmul.f32 %v1806, %v1806
    %v1919 = vmul.f32 %v1807, %v1807
    %v1920 = vmul.f32 %v1808, %v1808
    %v1921 = vmul.f32 %v1809, %v1809
    %v1922 = vmul.f32 %v1810, %v1810
    %v1923 = vmul.f32 %v1811, %v1811
    %v1924 = vmul.f32 %v1812, %v1812
    %v1925 = vmul.f32 %v1813, %v1813
    %v1926 = vmul.f32 %v1814, %v1814
    %v1927 = vmul.f32 %v1815, %v1815
    %v1928 = vmul.f32 %v1816, %v1816
    %v1929 = vmul.f32 %v1817, %v1817
    %v1930 = vmul.f32 %v1818, %v1818
    %v1931 = vmul.f32 %v1819, %v1819
    %v1932 = vmul.f32 %v1820, %v1820
    %v1933 = vmul.f32 %v1821, %v1821
    %v1934 = vmul.f32 %v1822, %v1822
    %v1935 = vmul.f32 %v1823, %v1823
    %v1936 = vmul.f32 %v1824, %v1824
    %v1937 = vmul.f32 %v1825, %v1825
    %v1938 = vmul.f32 %v1826, %v1826
    %v1939 = vmul.f32 %v1827, %v1827
    %v1940 = vmul.f32 %v1828, %v1828
    %v1941 = vmul.f32 %v1829, %v1829
    %v1942 = vmul.f32 %v1830, %v1830
    %v1943 = vmul.f32 %v1831, %v1831
    %v1944 = vmul.f32 %v1832, %v1832
    %v1945 = vmul.f32 %v1833, %v1833
    %v1946 = vmul.f32 %v1834, %v1834
    %v1947 = vadd.f32 %v1915, %v1916
    %v1948 = vadd.f32 %v1947, %v1917
    %v1949 = vadd.f32 %v1948, %v1918
    %1950 = vadd.xlane.f32.xlu0 %v1949
    %v1951 = vpop.xlane.xlu0 %1950
    %v1952 = vadd.f32 %v1919, %v1920
    %v1953 = vadd.f32 %v1952, %v1921
    %v1954 = vadd.f32 %v1953, %v1922
    %1955 = vadd.xlane.f32.xlu0 %v1954
    %v1956 = vpop.xlane.xlu0 %1955
    %v1957 = vadd.f32 %v1923, %v1924
    %v1958 = vadd.f32 %v1957, %v1925
    %v1959 = vadd.f32 %v1958, %v1926
    %1960 = vadd.xlane.f32.xlu0 %v1959
    %v1961 = vpop.xlane.xlu0 %1960
    %v1962 = vadd.f32 %v1927, %v1928
    %v1963 = vadd.f32 %v1962, %v1929
    %v1964 = vadd.f32 %v1963, %v1930
    %1965 = vadd.xlane.f32.xlu0 %v1964
    %v1966 = vpop.xlane.xlu0 %1965
    %v1967 = vadd.f32 %v1931, %v1932
    %v1968 = vadd.f32 %v1967, %v1933
    %v1969 = vadd.f32 %v1968, %v1934
    %1970 = vadd.xlane.f32.xlu0 %v1969
    %v1971 = vpop.xlane.xlu0 %1970
    %v1972 = vadd.f32 %v1935, %v1936
    %v1973 = vadd.f32 %v1972, %v1937
    %v1974 = vadd.f32 %v1973, %v1938
    %1975 = vadd.xlane.f32.xlu0 %v1974
    %v1976 = vpop.xlane.xlu0 %1975
    %v1977 = vadd.f32 %v1939, %v1940
    %v1978 = vadd.f32 %v1977, %v1941
    %v1979 = vadd.f32 %v1978, %v1942
    %1980 = vadd.xlane.f32.xlu0 %v1979
    %v1981 = vpop.xlane.xlu0 %1980
    %v1982 = vadd.f32 %v1943, %v1944
    %v1983 = vadd.f32 %v1982, %v1945
    %v1984 = vadd.f32 %v1983, %v1946
    %1985 = vadd.xlane.f32.xlu0 %v1984
    %v1986 = vpop.xlane.xlu0 %1985
    %v1987 = vadd.f32 %v1424, %v1951
    %v1988 = vadd.f32 %v1425, %v1956
    %v1989 = vadd.f32 %v1426, %v1961
    %v1990 = vadd.f32 %v1427, %v1966
    %v1991 = vadd.f32 %v1428, %v1971
    %v1992 = vadd.f32 %v1429, %v1976
    %v1993 = vadd.f32 %v1430, %v1981
    %v1994 = vadd.f32 %v1431, %v1986
    %s1995 = scalar_lea.vmem %s6, 128
    %v1996 = vld [vmem:[%s1995] sm:$0xff]
    %v1997 = vld [vmem:[%s1995 + $0x8] sm:$0xff]
    %v1998 = vld [vmem:[%s1995 + $0x10] sm:$0xff]
    %v1999 = vld [vmem:[%s1995 + $0x18] sm:$0xff]
    %v2000 = vld [vmem:[%s1995 + $0x20] sm:$0xff]
    %v2001 = vld [vmem:[%s1995 + $0x28] sm:$0xff]
    %v2002 = vld [vmem:[%s1995 + $0x30] sm:$0xff]
    %v2003 = vld [vmem:[%s1995 + $0x38] sm:$0xff]
    %v2004 = vld [vmem:[#allocation2] sm:$0xff]
    %v2005 = vld [vmem:[#allocation2 + $0x8] sm:$0xff]
    %v2006 = vld [vmem:[#allocation2 + $0x10] sm:$0xff]
    %v2007 = vld [vmem:[#allocation2 + $0x18] sm:$0xff]
    %v2008 = vld [vmem:[#allocation2 + $0x20] sm:$0xff]
    %v2009 = vld [vmem:[#allocation2 + $0x28] sm:$0xff]
    %v2010 = vld [vmem:[#allocation2 + $0x30] sm:$0xff]
    %v2011 = vld [vmem:[#allocation2 + $0x38] sm:$0xff]
    %v2012 = vld [vmem:[#allocation2 + $0x40] sm:$0xff]
    %v2013 = vld [vmem:[#allocation2 + $0x48] sm:$0xff]
    %v2014 = vld [vmem:[#allocation2 + $0x50] sm:$0xff]
    %v2015 = vld [vmem:[#allocation2 + $0x58] sm:$0xff]
    %v2016 = vld [vmem:[#allocation2 + $0x60] sm:$0xff]
    %v2017 = vld [vmem:[#allocation2 + $0x68] sm:$0xff]
    %v2018 = vld [vmem:[#allocation2 + $0x70] sm:$0xff]
    %v2019 = vld [vmem:[#allocation2 + $0x78] sm:$0xff]
    %v2020 = vld [vmem:[#allocation2 + $0x80] sm:$0xff]
    %v2021 = vld [vmem:[#allocation2 + $0x88] sm:$0xff]
    %v2022 = vld [vmem:[#allocation2 + $0x90] sm:$0xff]
    %v2023 = vld [vmem:[#allocation2 + $0x98] sm:$0xff]
    %v2024 = vld [vmem:[#allocation2 + $0xa0] sm:$0xff]
    %v2025 = vld [vmem:[#allocation2 + $0xa8] sm:$0xff]
    %v2026 = vld [vmem:[#allocation2 + $0xb0] sm:$0xff]
    %v2027 = vld [vmem:[#allocation2 + $0xb8] sm:$0xff]
    %v2028 = vld [vmem:[#allocation2 + $0xc0] sm:$0xff]
    %v2029 = vld [vmem:[#allocation2 + $0xc8] sm:$0xff]
    %v2030 = vld [vmem:[#allocation2 + $0xd0] sm:$0xff]
    %v2031 = vld [vmem:[#allocation2 + $0xd8] sm:$0xff]
    %v2032 = vld [vmem:[#allocation2 + $0xe0] sm:$0xff]
    %v2033 = vld [vmem:[#allocation2 + $0xe8] sm:$0xff]
    %v2034 = vld [vmem:[#allocation2 + $0xf0] sm:$0xff]
    %v2035 = vld [vmem:[#allocation2 + $0xf8] sm:$0xff]
    %v2036 = vld [vmem:[%s7] sm:$0xff]
    %v2037 = vld [vmem:[%s7 + $0x8] sm:$0xff]
    %v2038 = vld [vmem:[%s7 + $0x10] sm:$0xff]
    %v2039 = vld [vmem:[%s7 + $0x18] sm:$0xff]
    %v2040 = vld [vmem:[%s7 + $0x20] sm:$0xff]
    %v2041 = vld [vmem:[%s7 + $0x28] sm:$0xff]
    %v2042 = vld [vmem:[%s7 + $0x30] sm:$0xff]
    %v2043 = vld [vmem:[%s7 + $0x38] sm:$0xff]
    %2045 = vset.pattern.permute.xlu0 0
    %2046 = vperm.xlu0 %2045, %v2036
    %v2047 = vpop.permute.xlu0 %2046
    %2050 = vset.pattern.permute.xlu0 0
    %2051 = vperm.xlu0 %2050, %v2037
    %v2052 = vpop.permute.xlu0 %2051
    %2055 = vset.pattern.permute.xlu0 0
    %2056 = vperm.xlu0 %2055, %v2038
    %v2057 = vpop.permute.xlu0 %2056
    %2060 = vset.pattern.permute.xlu0 0
    %2061 = vperm.xlu0 %2060, %v2039
    %v2062 = vpop.permute.xlu0 %2061
    %2065 = vset.pattern.permute.xlu0 0
    %2066 = vperm.xlu0 %2065, %v2040
    %v2067 = vpop.permute.xlu0 %2066
    %2070 = vset.pattern.permute.xlu0 0
    %2071 = vperm.xlu0 %2070, %v2041
    %v2072 = vpop.permute.xlu0 %2071
    %2075 = vset.pattern.permute.xlu0 0
    %2076 = vperm.xlu0 %2075, %v2042
    %v2077 = vpop.permute.xlu0 %2076
    %2080 = vset.pattern.permute.xlu0 0
    %2081 = vperm.xlu0 %2080, %v2043
    %v2082 = vpop.permute.xlu0 %2081
    %v2085 = vsel %vm949, %v1996, 0
    %v2088 = vsel %vm949, %v1997, 0
    %v2091 = vsel %vm949, %v1998, 0
    %v2094 = vsel %vm949, %v1999, 0
    %v2097 = vsel %vm949, %v2000, 0
    %v2100 = vsel %vm949, %v2001, 0
    %v2103 = vsel %vm949, %v2002, 0
    %v2106 = vsel %vm949, %v2003, 0
    %2108 = vmatprep.subr.mxu0 %v2005
    %2109 = vmatpush1.msra.mxu0 %v2004
    %2110 = vmatprep.subr.mxu0 %v2009
    %2111 = vmatpush1.msra.mxu0 %v2008
    %2112 = vmatprep.subr.mxu0 %v2013
    %2113 = vmatpush1.msra.mxu0 %v2012
    %2114 = vmatprep.subr.mxu0 %v2017
    %2115 = vmatpush1.msra.mxu0 %v2016
    %2116 = vmatprep.subr.mxu0 %v2021
    %2117 = vmatpush1.msra.mxu0 %v2020
    %2118 = vmatprep.subr.mxu0 %v2025
    %2119 = vmatpush1.msra.mxu0 %v2024
    %2120 = vmatprep.subr.mxu0 %v2029
    %2121 = vmatpush1.msra.mxu0 %v2028
    %2122 = vmatprep.subr.mxu0 %v2033
    %2123 = vmatpush1.msra.mxu0 %v2032
    %2124 = vmatprep.subr.mxu0 0.0
    %2125 = vmatpush1.msra.mxu0 0.0
    %2126 = vmatprep.subr.mxu0 0.0
    %2127 = vmatpush1.msra.mxu0 0.0
    %2128 = vmatprep.subr.mxu0 0.0
    %2129 = vmatpush1.msra.mxu0 0.0
    %2130 = vmatprep.subr.mxu0 0.0
    %2131 = vmatpush1.msra.mxu0 0.0
    %2132 = vmatprep.subr.mxu0 0.0
    %2133 = vmatpush1.msra.mxu0 0.0
    %2134 = vmatprep.subr.mxu0 0.0
    %2135 = vmatpush1.msra.mxu0 0.0
    %2136 = vmatprep.subr.mxu0 0.0
    %2137 = vmatpush1.msra.mxu0 0.0
    %2138 = vmatprep.subr.mxu0 0.0
    %2139 = vmatpush1.msra.mxu0 0.0
    %2140 = vmatprep.subr.mxu0 0.0
    %2141 = vmatpush1.msra.mxu0 0.0
    %2142 = vmatprep.subr.mxu0 0.0
    %2143 = vmatpush1.msra.mxu0 0.0
    %2144 = vmatprep.subr.mxu0 0.0
    %2145 = vmatpush1.msra.mxu0 0.0
    %2146 = vmatprep.subr.mxu0 0.0
    %2147 = vmatpush1.msra.mxu0 0.0
    %2148 = vmatprep.subr.mxu0 0.0
    %2149 = vmatpush1.msra.mxu0 0.0
    %2150 = vmatprep.subr.mxu0 0.0
    %2151 = vmatpush1.msra.mxu0 0.0
    %2152 = vmatprep.subr.mxu0 0.0
    %2153 = vmatpush1.msra.mxu0 0.0
    %2154 = vmatprep.subr.mxu0 0.0
    %2155 = vmatpush1.msra.mxu0 0.0
    %2156 = vmatprep.subr.mxu0 0.0
    %2157 = vmatpush1.msra.mxu0 0.0
    %2158 = vmatprep.subr.mxu0 0.0
    %2159 = vmatpush1.msra.mxu0 0.0
    %2160 = vmatprep.subr.mxu0 0.0
    %2161 = vmatpush1.msra.mxu0 0.0
    %2162 = vmatprep.subr.mxu0 0.0
    %2163 = vmatpush1.msra.mxu0 0.0
    %2164 = vmatprep.subr.mxu0 0.0
    %2165 = vmatpush1.msra.mxu0 0.0
    %2166 = vmatprep.subr.mxu0 0.0
    %2167 = vmatpush1.msra.mxu0 0.0
    %2168 = vmatprep.subr.mxu0 0.0
    %2169 = vmatpush1.msra.mxu0 0.0
    %2170 = vmatprep.subr.mxu0 0.0
    %2171 = vmatpush1.msra.mxu0 0.0
    %2172 = vmatprep.mubr.f32.mxu0 0.0
    %2173 = vmatmul.mubr.f32.gmra.mrb[0].mxu0 %v2085
    %v2174 = vpop.f32.mrb[0].mxu0
    %v2175 = vadd.f32 %v2047, %v2174
    %v2176 = vpop.f32.mrb[0].mxu0
    %v2177 = vadd.f32 %v2047, %v2176
    %2178 = vmatprep.mubr.f32.mxu0 0.0
    %2179 = vmatmul.mubr.f32.gmra.mrb[0].mxu0 %v2088
    %v2180 = vpop.f32.mrb[0].mxu0
    %v2181 = vadd.f32 %v2052, %v2180
    %v2182 = vpop.f32.mrb[0].mxu0
    %v2183 = vadd.f32 %v2052, %v2182
    %2184 = vmatprep.mubr.f32.mxu0 0.0
    %2185 = vmatmul.mubr.f32.gmra.mrb[0].mxu0 %v2091
    %v2186 = vpop.f32.mrb[0].mxu0
    %v2187 = vadd.f32 %v2057, %v2186
    %v2188 = vpop.f32.mrb[0].mxu0
    %v2189 = vadd.f32 %v2057, %v2188
    %2190 = vmatprep.mubr.f32.mxu0 0.0
    %2191 = vmatmul.mubr.f32.gmra.mrb[0].mxu0 %v2094
    %v2192 = vpop.f32.mrb[0].mxu0
    %v2193 = vadd.f32 %v2062, %v2192
    %v2194 = vpop.f32.mrb[0].mxu0
    %v2195 = vadd.f32 %v2062, %v2194
    %2196 = vmatprep.mubr.f32.mxu0 0.0
    %2197 = vmatmul.mubr.f32.gmra.mrb[0].mxu0 %v2097
    %v2198 = vpop.f32.mrb[0].mxu0
    %v2199 = vadd.f32 %v2067, %v2198
    %v2200 = vpop.f32.mrb[0].mxu0
    %v2201 = vadd.f32 %v2067, %v2200
    %2202 = vmatprep.mubr.f32.mxu0 0.0
    %2203 = vmatmul.mubr.f32.gmra.mrb[0].mxu0 %v2100
    %v2204 = vpop.f32.mrb[0].mxu0
    %v2205 = vadd.f32 %v2072, %v2204
    %v2206 = vpop.f32.mrb[0].mxu0
    %v2207 = vadd.f32 %v2072, %v2206
    %2208 = vmatprep.mubr.f32.mxu0 0.0
    %2209 = vmatmul.mubr.f32.gmra.mrb[0].mxu0 %v2103
    %v2210 = vpop.f32.mrb[0].mxu0
    %v2211 = vadd.f32 %v2077, %v2210
    %v2212 = vpop.f32.mrb[0].mxu0
    %v2213 = vadd.f32 %v2077, %v2212
    %2214 = vmatprep.mubr.f32.mxu0 0.0
    %2215 = vmatmul.mubr.f32.gmra.mrb[0].mxu0 %v2106
    %v2216 = vpop.f32.mrb[0].mxu0
    %v2217 = vadd.f32 %v2082, %v2216
    %v2218 = vpop.f32.mrb[0].mxu0
    %v2219 = vadd.f32 %v2082, %v2218
    %2220 = vdwg.mxu0
    %2221 = vmatprep.subr.mxu0 %v2007
    %2222 = vmatpush1.msra.mxu0 %v2006
    %2223 = vmatprep.subr.mxu0 %v2011
    %2224 = vmatpush1.msra.mxu0 %v2010
    %2225 = vmatprep.subr.mxu0 %v2015
    %2226 = vmatpush1.msra.mxu0 %v2014
    %2227 = vmatprep.subr.mxu0 %v2019
    %2228 = vmatpush1.msra.mxu0 %v2018
    %2229 = vmatprep.subr.mxu0 %v2023
    %2230 = vmatpush1.msra.mxu0 %v2022
    %2231 = vmatprep.subr.mxu0 %v2027
    %2232 = vmatpush1.msra.mxu0 %v2026
    %2233 = vmatprep.subr.mxu0 %v2031
    %2234 = vmatpush1.msra.mxu0 %v2030
    %2235 = vmatprep.subr.mxu0 %v2035
    %2236 = vmatpush1.msra.mxu0 %v2034
    %2237 = vmatprep.subr.mxu0 0.0
    %2238 = vmatpush1.msra.mxu0 0.0
    %2239 = vmatprep.subr.mxu0 0.0
    %2240 = vmatpush1.msra.mxu0 0.0
    %2241 = vmatprep.subr.mxu0 0.0
    %2242 = vmatpush1.msra.mxu0 0.0
    %2243 = vmatprep.subr.mxu0 0.0
    %2244 = vmatpush1.msra.mxu0 0.0
    %2245 = vmatprep.subr.mxu0 0.0
    %2246 = vmatpush1.msra.mxu0 0.0
    %2247 = vmatprep.subr.mxu0 0.0
    %2248 = vmatpush1.msra.mxu0 0.0
    %2249 = vmatprep.subr.mxu0 0.0
    %2250 = vmatpush1.msra.mxu0 0.0
    %2251 = vmatprep.subr.mxu0 0.0
    %2252 = vmatpush1.msra.mxu0 0.0
    %2253 = vmatprep.subr.mxu0 0.0
    %2254 = vmatpush1.msra.mxu0 0.0
    %2255 = vmatprep.subr.mxu0 0.0
    %2256 = vmatpush1.msra.mxu0 0.0
    %2257 = vmatprep.subr.mxu0 0.0
    %2258 = vmatpush1.msra.mxu0 0.0
    %2259 = vmatprep.subr.mxu0 0.0
    %2260 = vmatpush1.msra.mxu0 0.0
    %2261 = vmatprep.subr.mxu0 0.0
    %2262 = vmatpush1.msra.mxu0 0.0
    %2263 = vmatprep.subr.mxu0 0.0
    %2264 = vmatpush1.msra.mxu0 0.0
    %2265 = vmatprep.subr.mxu0 0.0
    %2266 = vmatpush1.msra.mxu0 0.0
    %2267 = vmatprep.subr.mxu0 0.0
    %2268 = vmatpush1.msra.mxu0 0.0
    %2269 = vmatprep.subr.mxu0 0.0
    %2270 = vmatpush1.msra.mxu0 0.0
    %2271 = vmatprep.subr.mxu0 0.0
    %2272 = vmatpush1.msra.mxu0 0.0
    %2273 = vmatprep.subr.mxu0 0.0
    %2274 = vmatpush1.msra.mxu0 0.0
    %2275 = vmatprep.subr.mxu0 0.0
    %2276 = vmatpush1.msra.mxu0 0.0
    %2277 = vmatprep.subr.mxu0 0.0
    %2278 = vmatpush1.msra.mxu0 0.0
    %2279 = vmatprep.subr.mxu0 0.0
    %2280 = vmatpush1.msra.mxu0 0.0
    %2281 = vmatprep.subr.mxu0 0.0
    %2282 = vmatpush1.msra.mxu0 0.0
    %2283 = vmatprep.subr.mxu0 0.0
    %2284 = vmatpush1.msra.mxu0 0.0
    %2285 = vmatprep.mubr.f32.mxu0 0.0
    %2286 = vmatmul.mubr.f32.gmra.mrb[0].mxu0 %v2085
    %v2287 = vpop.f32.mrb[0].mxu0
    %v2288 = vadd.f32 %v2047, %v2287
    %v2289 = vpop.f32.mrb[0].mxu0
    %v2290 = vadd.f32 %v2047, %v2289
    %2291 = vmatprep.mubr.f32.mxu0 0.0
    %2292 = vmatmul.mubr.f32.gmra.mrb[0].mxu0 %v2088
    %v2293 = vpop.f32.mrb[0].mxu0
    %v2294 = vadd.f32 %v2052, %v2293
    %v2295 = vpop.f32.mrb[0].mxu0
    %v2296 = vadd.f32 %v2052, %v2295
    %2297 = vmatprep.mubr.f32.mxu0 0.0
    %2298 = vmatmul.mubr.f32.gmra.mrb[0].mxu0 %v2091
    %v2299 = vpop.f32.mrb[0].mxu0
    %v2300 = vadd.f32 %v2057, %v2299
    %v2301 = vpop.f32.mrb[0].mxu0
    %v2302 = vadd.f32 %v2057, %v2301
    %2303 = vmatprep.mubr.f32.mxu0 0.0
    %2304 = vmatmul.mubr.f32.gmra.mrb[0].mxu0 %v2094
    %v2305 = vpop.f32.mrb[0].mxu0
    %v2306 = vadd.f32 %v2062, %v2305
    %v2307 = vpop.f32.mrb[0].mxu0
    %v2308 = vadd.f32 %v2062, %v2307
    %2309 = vmatprep.mubr.f32.mxu0 0.0
    %2310 = vmatmul.mubr.f32.gmra.mrb[0].mxu0 %v2097
    %v2311 = vpop.f32.mrb[0].mxu0
    %v2312 = vadd.f32 %v2067, %v2311
    %v2313 = vpop.f32.mrb[0].mxu0
    %v2314 = vadd.f32 %v2067, %v2313
    %2315 = vmatprep.mubr.f32.mxu0 0.0
    %2316 = vmatmul.mubr.f32.gmra.mrb[0].mxu0 %v2100
    %v2317 = vpop.f32.mrb[0].mxu0
    %v2318 = vadd.f32 %v2072, %v2317
    %v2319 = vpop.f32.mrb[0].mxu0
    %v2320 = vadd.f32 %v2072, %v2319
    %2321 = vmatprep.mubr.f32.mxu0 0.0
    %2322 = vmatmul.mubr.f32.gmra.mrb[0].mxu0 %v2103
    %v2323 = vpop.f32.mrb[0].mxu0
    %v2324 = vadd.f32 %v2077, %v2323
    %v2325 = vpop.f32.mrb[0].mxu0
    %v2326 = vadd.f32 %v2077, %v2325
    %2327 = vmatprep.mubr.f32.mxu0 0.0
    %2328 = vmatmul.mubr.f32.gmra.mrb[0].mxu0 %v2106
    %v2329 = vpop.f32.mrb[0].mxu0
    %v2330 = vadd.f32 %v2082, %v2329
    %v2331 = vpop.f32.mrb[0].mxu0
    %v2332 = vadd.f32 %v2082, %v2331
    %2333 = vdwg.mxu0
    %v2334 = vmax.f32 %v2175, 0.0
    %v2335 = vmax.f32 %v2177, 0.0
    %v2336 = vmax.f32 %v2288, 0.0
    %v2337 = vmax.f32 %v2290, 0.0
    %v2338 = vmax.f32 %v2181, 0.0
    %v2339 = vmax.f32 %v2183, 0.0
    %v2340 = vmax.f32 %v2294, 0.0
    %v2341 = vmax.f32 %v2296, 0.0
    %v2342 = vmax.f32 %v2187, 0.0
    %v2343 = vmax.f32 %v2189, 0.0
    %v2344 = vmax.f32 %v2300, 0.0
    %v2345 = vmax.f32 %v2302, 0.0
    %v2346 = vmax.f32 %v2193, 0.0
    %v2347 = vmax.f32 %v2195, 0.0
    %v2348 = vmax.f32 %v2306, 0.0
    %v2349 = vmax.f32 %v2308, 0.0
    %v2350 = vmax.f32 %v2199, 0.0
    %v2351 = vmax.f32 %v2201, 0.0
    %v2352 = vmax.f32 %v2312, 0.0
    %v2353 = vmax.f32 %v2314, 0.0
    %v2354 = vmax.f32 %v2205, 0.0
    %v2355 = vmax.f32 %v2207, 0.0
    %v2356 = vmax.f32 %v2318, 0.0
    %v2357 = vmax.f32 %v2320, 0.0
    %v2358 = vmax.f32 %v2211, 0.0
    %v2359 = vmax.f32 %v2213, 0.0
    %v2360 = vmax.f32 %v2324, 0.0
    %v2361 = vmax.f32 %v2326, 0.0
    %v2362 = vmax.f32 %v2217, 0.0
    %v2363 = vmax.f32 %v2219, 0.0
    %v2364 = vmax.f32 %v2330, 0.0
    %v2365 = vmax.f32 %v2332, 0.0
    %v2366 = vsel %vm1236, %v2334, 0.0
    %v2367 = vsel %vm1237, %v2335, 0.0
    %v2368 = vsel %vm1238, %v2336, 0.0
    %v2369 = vsel %vm1239, %v2337, 0.0
    %v2370 = vsel %vm1236, %v2338, 0.0
    %v2371 = vsel %vm1237, %v2339, 0.0
    %v2372 = vsel %vm1238, %v2340, 0.0
    %v2373 = vsel %vm1239, %v2341, 0.0
    %v2374 = vsel %vm1236, %v2342, 0.0
    %v2375 = vsel %vm1237, %v2343, 0.0
    %v2376 = vsel %vm1238, %v2344, 0.0
    %v2377 = vsel %vm1239, %v2345, 0.0
    %v2378 = vsel %vm1236, %v2346, 0.0
    %v2379 = vsel %vm1237, %v2347, 0.0
    %v2380 = vsel %vm1238, %v2348, 0.0
    %v2381 = vsel %vm1239, %v2349, 0.0
    %v2382 = vsel %vm1236, %v2350, 0.0
    %v2383 = vsel %vm1237, %v2351, 0.0
    %v2384 = vsel %vm1238, %v2352, 0.0
    %v2385 = vsel %vm1239, %v2353, 0.0
    %v2386 = vsel %vm1236, %v2354, 0.0
    %v2387 = vsel %vm1237, %v2355, 0.0
    %v2388 = vsel %vm1238, %v2356, 0.0
    %v2389 = vsel %vm1239, %v2357, 0.0
    %v2390 = vsel %vm1236, %v2358, 0.0
    %v2391 = vsel %vm1237, %v2359, 0.0
    %v2392 = vsel %vm1238, %v2360, 0.0
    %v2393 = vsel %vm1239, %v2361, 0.0
    %v2394 = vsel %vm1236, %v2362, 0.0
    %v2395 = vsel %vm1237, %v2363, 0.0
    %v2396 = vsel %vm1238, %v2364, 0.0
    %v2397 = vsel %vm1239, %v2365, 0.0
    %2398 = vst [vmem:[#allocation3 + $0x200] sm:$0xff] %v2366
    %2399 = vst [vmem:[#allocation3 + $0x208] sm:$0xff] %v2367
    %2400 = vst [vmem:[#allocation3 + $0x210] sm:$0xff] %v2368
    %2401 = vst [vmem:[#allocation3 + $0x218] sm:$0xff] %v2369
    %2402 = vst [vmem:[#allocation3 + $0x220] sm:$0xff] %v2370
    %2403 = vst [vmem:[#allocation3 + $0x228] sm:$0xff] %v2371
    %2404 = vst [vmem:[#allocation3 + $0x230] sm:$0xff] %v2372
    %2405 = vst [vmem:[#allocation3 + $0x238] sm:$0xff] %v2373
    %2406 = vst [vmem:[#allocation3 + $0x240] sm:$0xff] %v2374
    %2407 = vst [vmem:[#allocation3 + $0x248] sm:$0xff] %v2375
    %2408 = vst [vmem:[#allocation3 + $0x250] sm:$0xff] %v2376
    %2409 = vst [vmem:[#allocation3 + $0x258] sm:$0xff] %v2377
    %2410 = vst [vmem:[#allocation3 + $0x260] sm:$0xff] %v2378
    %2411 = vst [vmem:[#allocation3 + $0x268] sm:$0xff] %v2379
    %2412 = vst [vmem:[#allocation3 + $0x270] sm:$0xff] %v2380
    %2413 = vst [vmem:[#allocation3 + $0x278] sm:$0xff] %v2381
    %2414 = vst [vmem:[#allocation3 + $0x280] sm:$0xff] %v2382
    %2415 = vst [vmem:[#allocation3 + $0x288] sm:$0xff] %v2383
    %2416 = vst [vmem:[#allocation3 + $0x290] sm:$0xff] %v2384
    %2417 = vst [vmem:[#allocation3 + $0x298] sm:$0xff] %v2385
    %2418 = vst [vmem:[#allocation3 + $0x2a0] sm:$0xff] %v2386
    %2419 = vst [vmem:[#allocation3 + $0x2a8] sm:$0xff] %v2387
    %2420 = vst [vmem:[#allocation3 + $0x2b0] sm:$0xff] %v2388
    %2421 = vst [vmem:[#allocation3 + $0x2b8] sm:$0xff] %v2389
    %2422 = vst [vmem:[#allocation3 + $0x2c0] sm:$0xff] %v2390
    %2423 = vst [vmem:[#allocation3 + $0x2c8] sm:$0xff] %v2391
    %2424 = vst [vmem:[#allocation3 + $0x2d0] sm:$0xff] %v2392
    %2425 = vst [vmem:[#allocation3 + $0x2d8] sm:$0xff] %v2393
    %2426 = vst [vmem:[#allocation3 + $0x2e0] sm:$0xff] %v2394
    %2427 = vst [vmem:[#allocation3 + $0x2e8] sm:$0xff] %v2395
    %2428 = vst [vmem:[#allocation3 + $0x2f0] sm:$0xff] %v2396
    %2429 = vst [vmem:[#allocation3 + $0x2f8] sm:$0xff] %v2397
    %v2430 = vadd.f32 %v2366, %v2367
    %v2431 = vadd.f32 %v2430, %v2368
    %v2432 = vadd.f32 %v2431, %v2369
    %2433 = vadd.xlane.f32.xlu0 %v2432
    %v2434 = vpop.xlane.xlu0 %2433
    %v2435 = vadd.f32 %v2370, %v2371
    %v2436 = vadd.f32 %v2435, %v2372
    %v2437 = vadd.f32 %v2436, %v2373
    %2438 = vadd.xlane.f32.xlu0 %v2437
    %v2439 = vpop.xlane.xlu0 %2438
    %v2440 = vadd.f32 %v2374, %v2375
    %v2441 = vadd.f32 %v2440, %v2376
    %v2442 = vadd.f32 %v2441, %v2377
    %2443 = vadd.xlane.f32.xlu0 %v2442
    %v2444 = vpop.xlane.xlu0 %2443
    %v2445 = vadd.f32 %v2378, %v2379
    %v2446 = vadd.f32 %v2445, %v2380
    %v2447 = vadd.f32 %v2446, %v2381
    %2448 = vadd.xlane.f32.xlu0 %v2447
    %v2449 = vpop.xlane.xlu0 %2448
    %v2450 = vadd.f32 %v2382, %v2383
    %v2451 = vadd.f32 %v2450, %v2384
    %v2452 = vadd.f32 %v2451, %v2385
    %2453 = vadd.xlane.f32.xlu0 %v2452
    %v2454 = vpop.xlane.xlu0 %2453
    %v2455 = vadd.f32 %v2386, %v2387
    %v2456 = vadd.f32 %v2455, %v2388
    %v2457 = vadd.f32 %v2456, %v2389
    %2458 = vadd.xlane.f32.xlu0 %v2457
    %v2459 = vpop.xlane.xlu0 %2458
    %v2460 = vadd.f32 %v2390, %v2391
    %v2461 = vadd.f32 %v2460, %v2392
    %v2462 = vadd.f32 %v2461, %v2393
    %2463 = vadd.xlane.f32.xlu0 %v2462
    %v2464 = vpop.xlane.xlu0 %2463
    %v2465 = vadd.f32 %v2394, %v2395
    %v2466 = vadd.f32 %v2465, %v2396
    %v2467 = vadd.f32 %v2466, %v2397
    %2468 = vadd.xlane.f32.xlu0 %v2467
    %v2469 = vpop.xlane.xlu0 %2468
    %v2470 = vadd.f32 %v1907, %v2434
    %v2471 = vadd.f32 %v1908, %v2439
    %v2472 = vadd.f32 %v1909, %v2444
    %v2473 = vadd.f32 %v1910, %v2449
    %v2474 = vadd.f32 %v1911, %v2454
    %v2475 = vadd.f32 %v1912, %v2459
    %v2476 = vadd.f32 %v1913, %v2464
    %v2477 = vadd.f32 %v1914, %v2469
    %v2478 = vmul.f32 %v2366, %v2366
    %v2479 = vmul.f32 %v2367, %v2367
    %v2480 = vmul.f32 %v2368, %v2368
    %v2481 = vmul.f32 %v2369, %v2369
    %v2482 = vmul.f32 %v2370, %v2370
    %v2483 = vmul.f32 %v2371, %v2371
    %v2484 = vmul.f32 %v2372, %v2372
    %v2485 = vmul.f32 %v2373, %v2373
    %v2486 = vmul.f32 %v2374, %v2374
    %v2487 = vmul.f32 %v2375, %v2375
    %v2488 = vmul.f32 %v2376, %v2376
    %v2489 = vmul.f32 %v2377, %v2377
    %v2490 = vmul.f32 %v2378, %v2378
    %v2491 = vmul.f32 %v2379, %v2379
    %v2492 = vmul.f32 %v2380, %v2380
    %v2493 = vmul.f32 %v2381, %v2381
    %v2494 = vmul.f32 %v2382, %v2382
    %v2495 = vmul.f32 %v2383, %v2383
    %v2496 = vmul.f32 %v2384, %v2384
    %v2497 = vmul.f32 %v2385, %v2385
    %v2498 = vmul.f32 %v2386, %v2386
    %v2499 = vmul.f32 %v2387, %v2387
    %v2500 = vmul.f32 %v2388, %v2388
    %v2501 = vmul.f32 %v2389, %v2389
    %v2502 = vmul.f32 %v2390, %v2390
    %v2503 = vmul.f32 %v2391, %v2391
    %v2504 = vmul.f32 %v2392, %v2392
    %v2505 = vmul.f32 %v2393, %v2393
    %v2506 = vmul.f32 %v2394, %v2394
    %v2507 = vmul.f32 %v2395, %v2395
    %v2508 = vmul.f32 %v2396, %v2396
    %v2509 = vmul.f32 %v2397, %v2397
    %v2510 = vadd.f32 %v2478, %v2479
    %v2511 = vadd.f32 %v2510, %v2480
    %v2512 = vadd.f32 %v2511, %v2481
    %2513 = vadd.xlane.f32.xlu0 %v2512
    %v2514 = vpop.xlane.xlu0 %2513
    %v2515 = vadd.f32 %v2482, %v2483
    %v2516 = vadd.f32 %v2515, %v2484
    %v2517 = vadd.f32 %v2516, %v2485
    %2518 = vadd.xlane.f32.xlu0 %v2517
    %v2519 = vpop.xlane.xlu0 %2518
    %v2520 = vadd.f32 %v2486, %v2487
    %v2521 = vadd.f32 %v2520, %v2488
    %v2522 = vadd.f32 %v2521, %v2489
    %2523 = vadd.xlane.f32.xlu0 %v2522
    %v2524 = vpop.xlane.xlu0 %2523
    %v2525 = vadd.f32 %v2490, %v2491
    %v2526 = vadd.f32 %v2525, %v2492
    %v2527 = vadd.f32 %v2526, %v2493
    %2528 = vadd.xlane.f32.xlu0 %v2527
    %v2529 = vpop.xlane.xlu0 %2528
    %v2530 = vadd.f32 %v2494, %v2495
    %v2531 = vadd.f32 %v2530, %v2496
    %v2532 = vadd.f32 %v2531, %v2497
    %2533 = vadd.xlane.f32.xlu0 %v2532
    %v2534 = vpop.xlane.xlu0 %2533
    %v2535 = vadd.f32 %v2498, %v2499
    %v2536 = vadd.f32 %v2535, %v2500
    %v2537 = vadd.f32 %v2536, %v2501
    %2538 = vadd.xlane.f32.xlu0 %v2537
    %v2539 = vpop.xlane.xlu0 %2538
    %v2540 = vadd.f32 %v2502, %v2503
    %v2541 = vadd.f32 %v2540, %v2504
    %v2542 = vadd.f32 %v2541, %v2505
    %2543 = vadd.xlane.f32.xlu0 %v2542
    %v2544 = vpop.xlane.xlu0 %2543
    %v2545 = vadd.f32 %v2506, %v2507
    %v2546 = vadd.f32 %v2545, %v2508
    %v2547 = vadd.f32 %v2546, %v2509
    %2548 = vadd.xlane.f32.xlu0 %v2547
    %v2549 = vpop.xlane.xlu0 %2548
    %v2550 = vadd.f32 %v1987, %v2514
    %v2551 = vadd.f32 %v1988, %v2519
    %v2552 = vadd.f32 %v1989, %v2524
    %v2553 = vadd.f32 %v1990, %v2529
    %v2554 = vadd.f32 %v1991, %v2534
    %v2555 = vadd.f32 %v1992, %v2539
    %v2556 = vadd.f32 %v1993, %v2544
    %v2557 = vadd.f32 %v1994, %v2549
    %s2558 = scalar_lea.vmem %s6, 192
    %v2559 = vld [vmem:[%s2558] sm:$0xff]
    %v2560 = vld [vmem:[%s2558 + $0x8] sm:$0xff]
    %v2561 = vld [vmem:[%s2558 + $0x10] sm:$0xff]
    %v2562 = vld [vmem:[%s2558 + $0x18] sm:$0xff]
    %v2563 = vld [vmem:[%s2558 + $0x20] sm:$0xff]
    %v2564 = vld [vmem:[%s2558 + $0x28] sm:$0xff]
    %v2565 = vld [vmem:[%s2558 + $0x30] sm:$0xff]
    %v2566 = vld [vmem:[%s2558 + $0x38] sm:$0xff]
    %v2567 = vld [vmem:[#allocation2] sm:$0xff]
    %v2568 = vld [vmem:[#allocation2 + $0x8] sm:$0xff]
    %v2569 = vld [vmem:[#allocation2 + $0x10] sm:$0xff]
    %v2570 = vld [vmem:[#allocation2 + $0x18] sm:$0xff]
    %v2571 = vld [vmem:[#allocation2 + $0x20] sm:$0xff]
    %v2572 = vld [vmem:[#allocation2 + $0x28] sm:$0xff]
    %v2573 = vld [vmem:[#allocation2 + $0x30] sm:$0xff]
    %v2574 = vld [vmem:[#allocation2 + $0x38] sm:$0xff]
    %v2575 = vld [vmem:[#allocation2 + $0x40] sm:$0xff]
    %v2576 = vld [vmem:[#allocation2 + $0x48] sm:$0xff]
    %v2577 = vld [vmem:[#allocation2 + $0x50] sm:$0xff]
    %v2578 = vld [vmem:[#allocation2 + $0x58] sm:$0xff]
    %v2579 = vld [vmem:[#allocation2 + $0x60] sm:$0xff]
    %v2580 = vld [vmem:[#allocation2 + $0x68] sm:$0xff]
    %v2581 = vld [vmem:[#allocation2 + $0x70] sm:$0xff]
    %v2582 = vld [vmem:[#allocation2 + $0x78] sm:$0xff]
    %v2583 = vld [vmem:[#allocation2 + $0x80] sm:$0xff]
    %v2584 = vld [vmem:[#allocation2 + $0x88] sm:$0xff]
    %v2585 = vld [vmem:[#allocation2 + $0x90] sm:$0xff]
    %v2586 = vld [vmem:[#allocation2 + $0x98] sm:$0xff]
    %v2587 = vld [vmem:[#allocation2 + $0xa0] sm:$0xff]
    %v2588 = vld [vmem:[#allocation2 + $0xa8] sm:$0xff]
    %v2589 = vld [vmem:[#allocation2 + $0xb0] sm:$0xff]
    %v2590 = vld [vmem:[#allocation2 + $0xb8] sm:$0xff]
    %v2591 = vld [vmem:[#allocation2 + $0xc0] sm:$0xff]
    %v2592 = vld [vmem:[#allocation2 + $0xc8] sm:$0xff]
    %v2593 = vld [vmem:[#allocation2 + $0xd0] sm:$0xff]
    %v2594 = vld [vmem:[#allocation2 + $0xd8] sm:$0xff]
    %v2595 = vld [vmem:[#allocation2 + $0xe0] sm:$0xff]
    %v2596 = vld [vmem:[#allocation2 + $0xe8] sm:$0xff]
    %v2597 = vld [vmem:[#allocation2 + $0xf0] sm:$0xff]
    %v2598 = vld [vmem:[#allocation2 + $0xf8] sm:$0xff]
    %v2599 = vld [vmem:[%s7] sm:$0xff]
    %v2600 = vld [vmem:[%s7 + $0x8] sm:$0xff]
    %v2601 = vld [vmem:[%s7 + $0x10] sm:$0xff]
    %v2602 = vld [vmem:[%s7 + $0x18] sm:$0xff]
    %v2603 = vld [vmem:[%s7 + $0x20] sm:$0xff]
    %v2604 = vld [vmem:[%s7 + $0x28] sm:$0xff]
    %v2605 = vld [vmem:[%s7 + $0x30] sm:$0xff]
    %v2606 = vld [vmem:[%s7 + $0x38] sm:$0xff]
    %2608 = vset.pattern.permute.xlu0 0
    %2609 = vperm.xlu0 %2608, %v2599
    %v2610 = vpop.permute.xlu0 %2609
    %2613 = vset.pattern.permute.xlu0 0
    %2614 = vperm.xlu0 %2613, %v2600
    %v2615 = vpop.permute.xlu0 %2614
    %2618 = vset.pattern.permute.xlu0 0
    %2619 = vperm.xlu0 %2618, %v2601
    %v2620 = vpop.permute.xlu0 %2619
    %2623 = vset.pattern.permute.xlu0 0
    %2624 = vperm.xlu0 %2623, %v2602
    %v2625 = vpop.permute.xlu0 %2624
    %2628 = vset.pattern.permute.xlu0 0
    %2629 = vperm.xlu0 %2628, %v2603
    %v2630 = vpop.permute.xlu0 %2629
    %2633 = vset.pattern.permute.xlu0 0
    %2634 = vperm.xlu0 %2633, %v2604
    %v2635 = vpop.permute.xlu0 %2634
    %2638 = vset.pattern.permute.xlu0 0
    %2639 = vperm.xlu0 %2638, %v2605
    %v2640 = vpop.permute.xlu0 %2639
    %2643 = vset.pattern.permute.xlu0 0
    %2644 = vperm.xlu0 %2643, %v2606
    %v2645 = vpop.permute.xlu0 %2644
    %v2648 = vsel %vm949, %v2559, 0
    %v2651 = vsel %vm949, %v2560, 0
    %v2654 = vsel %vm949, %v2561, 0
    %v2657 = vsel %vm949, %v2562, 0
    %v2660 = vsel %vm949, %v2563, 0
    %v2663 = vsel %vm949, %v2564, 0
    %v2666 = vsel %vm949, %v2565, 0
    %v2669 = vsel %vm949, %v2566, 0
    %2671 = vmatprep.subr.mxu0 %v2568
    %2672 = vmatpush1.msra.mxu0 %v2567
    %2673 = vmatprep.subr.mxu0 %v2572
    %2674 = vmatpush1.msra.mxu0 %v2571
    %2675 = vmatprep.subr.mxu0 %v2576
    %2676 = vmatpush1.msra.mxu0 %v2575
    %2677 = vmatprep.subr.mxu0 %v2580
    %2678 = vmatpush1.msra.mxu0 %v2579
    %2679 = vmatprep.subr.mxu0 %v2584
    %2680 = vmatpush1.msra.mxu0 %v2583
    %2681 = vmatprep.subr.mxu0 %v2588
    %2682 = vmatpush1.msra.mxu0 %v2587
    %2683 = vmatprep.subr.mxu0 %v2592
    %2684 = vmatpush1.msra.mxu0 %v2591
    %2685 = vmatprep.subr.mxu0 %v2596
    %2686 = vmatpush1.msra.mxu0 %v2595
    %2687 = vmatprep.subr.mxu0 0.0
    %2688 = vmatpush1.msra.mxu0 0.0
    %2689 = vmatprep.subr.mxu0 0.0
    %2690 = vmatpush1.msra.mxu0 0.0
    %2691 = vmatprep.subr.mxu0 0.0
    %2692 = vmatpush1.msra.mxu0 0.0
    %2693 = vmatprep.subr.mxu0 0.0
    %2694 = vmatpush1.msra.mxu0 0.0
    %2695 = vmatprep.subr.mxu0 0.0
    %2696 = vmatpush1.msra.mxu0 0.0
    %2697 = vmatprep.subr.mxu0 0.0
    %2698 = vmatpush1.msra.mxu0 0.0
    %2699 = vmatprep.subr.mxu0 0.0
    %2700 = vmatpush1.msra.mxu0 0.0
    %2701 = vmatprep.subr.mxu0 0.0
    %2702 = vmatpush1.msra.mxu0 0.0
    %2703 = vmatprep.subr.mxu0 0.0
    %2704 = vmatpush1.msra.mxu0 0.0
    %2705 = vmatprep.subr.mxu0 0.0
    %2706 = vmatpush1.msra.mxu0 0.0
    %2707 = vmatprep.subr.mxu0 0.0
    %2708 = vmatpush1.msra.mxu0 0.0
    %2709 = vmatprep.subr.mxu0 0.0
    %2710 = vmatpush1.msra.mxu0 0.0
    %2711 = vmatprep.subr.mxu0 0.0
    %2712 = vmatpush1.msra.mxu0 0.0
    %2713 = vmatprep.subr.mxu0 0.0
    %2714 = vmatpush1.msra.mxu0 0.0
    %2715 = vmatprep.subr.mxu0 0.0
    %2716 = vmatpush1.msra.mxu0 0.0
    %2717 = vmatprep.subr.mxu0 0.0
    %2718 = vmatpush1.msra.mxu0 0.0
    %2719 = vmatprep.subr.mxu0 0.0
    %2720 = vmatpush1.msra.mxu0 0.0
    %2721 = vmatprep.subr.mxu0 0.0
    %2722 = vmatpush1.msra.mxu0 0.0
    %2723 = vmatprep.subr.mxu0 0.0
    %2724 = vmatpush1.msra.mxu0 0.0
    %2725 = vmatprep.subr.mxu0 0.0
    %2726 = vmatpush1.msra.mxu0 0.0
    %2727 = vmatprep.subr.mxu0 0.0
    %2728 = vmatpush1.msra.mxu0 0.0
    %2729 = vmatprep.subr.mxu0 0.0
    %2730 = vmatpush1.msra.mxu0 0.0
    %2731 = vmatprep.subr.mxu0 0.0
    %2732 = vmatpush1.msra.mxu0 0.0
    %2733 = vmatprep.subr.mxu0 0.0
    %2734 = vmatpush1.msra.mxu0 0.0
    %2735 = vmatprep.mubr.f32.mxu0 0.0
    %2736 = vmatmul.mubr.f32.gmra.mrb[0].mxu0 %v2648
    %v2737 = vpop.f32.mrb[0].mxu0
    %v2738 = vadd.f32 %v2610, %v2737
    %v2739 = vpop.f32.mrb[0].mxu0
    %v2740 = vadd.f32 %v2610, %v2739
    %2741 = vmatprep.mubr.f32.mxu0 0.0
    %2742 = vmatmul.mubr.f32.gmra.mrb[0].mxu0 %v2651
    %v2743 = vpop.f32.mrb[0].mxu0
    %v2744 = vadd.f32 %v2615, %v2743
    %v2745 = vpop.f32.mrb[0].mxu0
    %v2746 = vadd.f32 %v2615, %v2745
    %2747 = vmatprep.mubr.f32.mxu0 0.0
    %2748 = vmatmul.mubr.f32.gmra.mrb[0].mxu0 %v2654
    %v2749 = vpop.f32.mrb[0].mxu0
    %v2750 = vadd.f32 %v2620, %v2749
    %v2751 = vpop.f32.mrb[0].mxu0
    %v2752 = vadd.f32 %v2620, %v2751
    %2753 = vmatprep.mubr.f32.mxu0 0.0
    %2754 = vmatmul.mubr.f32.gmra.mrb[0].mxu0 %v2657
    %v2755 = vpop.f32.mrb[0].mxu0
    %v2756 = vadd.f32 %v2625, %v2755
    %v2757 = vpop.f32.mrb[0].mxu0
    %v2758 = vadd.f32 %v2625, %v2757
    %2759 = vmatprep.mubr.f32.mxu0 0.0
    %2760 = vmatmul.mubr.f32.gmra.mrb[0].mxu0 %v2660
    %v2761 = vpop.f32.mrb[0].mxu0
    %v2762 = vadd.f32 %v2630, %v2761
    %v2763 = vpop.f32.mrb[0].mxu0
    %v2764 = vadd.f32 %v2630, %v2763
    %2765 = vmatprep.mubr.f32.mxu0 0.0
    %2766 = vmatmul.mubr.f32.gmra.mrb[0].mxu0 %v2663
    %v2767 = vpop.f32.mrb[0].mxu0
    %v2768 = vadd.f32 %v2635, %v2767
    %v2769 = vpop.f32.mrb[0].mxu0
    %v2770 = vadd.f32 %v2635, %v2769
    %2771 = vmatprep.mubr.f32.mxu0 0.0
    %2772 = vmatmul.mubr.f32.gmra.mrb[0].mxu0 %v2666
    %v2773 = vpop.f32.mrb[0].mxu0
    %v2774 = vadd.f32 %v2640, %v2773
    %v2775 = vpop.f32.mrb[0].mxu0
    %v2776 = vadd.f32 %v2640, %v2775
    %2777 = vmatprep.mubr.f32.mxu0 0.0
    %2778 = vmatmul.mubr.f32.gmra.mrb[0].mxu0 %v2669
    %v2779 = vpop.f32.mrb[0].mxu0
    %v2780 = vadd.f32 %v2645, %v2779
    %v2781 = vpop.f32.mrb[0].mxu0
    %v2782 = vadd.f32 %v2645, %v2781
    %2783 = vdwg.mxu0
    %2784 = vmatprep.subr.mxu0 %v2570
    %2785 = vmatpush1.msra.mxu0 %v2569
    %2786 = vmatprep.subr.mxu0 %v2574
    %2787 = vmatpush1.msra.mxu0 %v2573
    %2788 = vmatprep.subr.mxu0 %v2578
    %2789 = vmatpush1.msra.mxu0 %v2577
    %2790 = vmatprep.subr.mxu0 %v2582
    %2791 = vmatpush1.msra.mxu0 %v2581
    %2792 = vmatprep.subr.mxu0 %v2586
    %2793 = vmatpush1.msra.mxu0 %v2585
    %2794 = vmatprep.subr.mxu0 %v2590
    %2795 = vmatpush1.msra.mxu0 %v2589
    %2796 = vmatprep.subr.mxu0 %v2594
    %2797 = vmatpush1.msra.mxu0 %v2593
    %2798 = vmatprep.subr.mxu0 %v2598
    %2799 = vmatpush1.msra.mxu0 %v2597
    %2800 = vmatprep.subr.mxu0 0.0
    %2801 = vmatpush1.msra.mxu0 0.0
    %2802 = vmatprep.subr.mxu0 0.0
    %2803 = vmatpush1.msra.mxu0 0.0
    %2804 = vmatprep.subr.mxu0 0.0
    %2805 = vmatpush1.msra.mxu0 0.0
    %2806 = vmatprep.subr.mxu0 0.0
    %2807 = vmatpush1.msra.mxu0 0.0
    %2808 = vmatprep.subr.mxu0 0.0
    %2809 = vmatpush1.msra.mxu0 0.0
    %2810 = vmatprep.subr.mxu0 0.0
    %2811 = vmatpush1.msra.mxu0 0.0
    %2812 = vmatprep.subr.mxu0 0.0
    %2813 = vmatpush1.msra.mxu0 0.0
    %2814 = vmatprep.subr.mxu0 0.0
    %2815 = vmatpush1.msra.mxu0 0.0
    %2816 = vmatprep.subr.mxu0 0.0
    %2817 = vmatpush1.msra.mxu0 0.0
    %2818 = vmatprep.subr.mxu0 0.0
    %2819 = vmatpush1.msra.mxu0 0.0
    %2820 = vmatprep.subr.mxu0 0.0
    %2821 = vmatpush1.msra.mxu0 0.0
    %2822 = vmatprep.subr.mxu0 0.0
    %2823 = vmatpush1.msra.mxu0 0.0
    %2824 = vmatprep.subr.mxu0 0.0
    %2825 = vmatpush1.msra.mxu0 0.0
    %2826 = vmatprep.subr.mxu0 0.0
    %2827 = vmatpush1.msra.mxu0 0.0
    %2828 = vmatprep.subr.mxu0 0.0
    %2829 = vmatpush1.msra.mxu0 0.0
    %2830 = vmatprep.subr.mxu0 0.0
    %2831 = vmatpush1.msra.mxu0 0.0
    %2832 = vmatprep.subr.mxu0 0.0
    %2833 = vmatpush1.msra.mxu0 0.0
    %2834 = vmatprep.subr.mxu0 0.0
    %2835 = vmatpush1.msra.mxu0 0.0
    %2836 = vmatprep.subr.mxu0 0.0
    %2837 = vmatpush1.msra.mxu0 0.0
    %2838 = vmatprep.subr.mxu0 0.0
    %2839 = vmatpush1.msra.mxu0 0.0
    %2840 = vmatprep.subr.mxu0 0.0
    %2841 = vmatpush1.msra.mxu0 0.0
    %2842 = vmatprep.subr.mxu0 0.0
    %2843 = vmatpush1.msra.mxu0 0.0
    %2844 = vmatprep.subr.mxu0 0.0
    %2845 = vmatpush1.msra.mxu0 0.0
    %2846 = vmatprep.subr.mxu0 0.0
    %2847 = vmatpush1.msra.mxu0 0.0
    %2848 = vmatprep.mubr.f32.mxu0 0.0
    %2849 = vmatmul.mubr.f32.gmra.mrb[0].mxu0 %v2648
    %v2850 = vpop.f32.mrb[0].mxu0
    %v2851 = vadd.f32 %v2610, %v2850
    %v2852 = vpop.f32.mrb[0].mxu0
    %v2853 = vadd.f32 %v2610, %v2852
    %2854 = vmatprep.mubr.f32.mxu0 0.0
    %2855 = vmatmul.mubr.f32.gmra.mrb[0].mxu0 %v2651
    %v2856 = vpop.f32.mrb[0].mxu0
    %v2857 = vadd.f32 %v2615, %v2856
    %v2858 = vpop.f32.mrb[0].mxu0
    %v2859 = vadd.f32 %v2615, %v2858
    %2860 = vmatprep.mubr.f32.mxu0 0.0
    %2861 = vmatmul.mubr.f32.gmra.mrb[0].mxu0 %v2654
    %v2862 = vpop.f32.mrb[0].mxu0
    %v2863 = vadd.f32 %v2620, %v2862
    %v2864 = vpop.f32.mrb[0].mxu0
    %v2865 = vadd.f32 %v2620, %v2864
    %2866 = vmatprep.mubr.f32.mxu0 0.0
    %2867 = vmatmul.mubr.f32.gmra.mrb[0].mxu0 %v2657
    %v2868 = vpop.f32.mrb[0].mxu0
    %v2869 = vadd.f32 %v2625, %v2868
    %v2870 = vpop.f32.mrb[0].mxu0
    %v2871 = vadd.f32 %v2625, %v2870
    %2872 = vmatprep.mubr.f32.mxu0 0.0
    %2873 = vmatmul.mubr.f32.gmra.mrb[0].mxu0 %v2660
    %v2874 = vpop.f32.mrb[0].mxu0
    %v2875 = vadd.f32 %v2630, %v2874
    %v2876 = vpop.f32.mrb[0].mxu0
    %v2877 = vadd.f32 %v2630, %v2876
    %2878 = vmatprep.mubr.f32.mxu0 0.0
    %2879 = vmatmul.mubr.f32.gmra.mrb[0].mxu0 %v2663
    %v2880 = vpop.f32.mrb[0].mxu0
    %v2881 = vadd.f32 %v2635, %v2880
    %v2882 = vpop.f32.mrb[0].mxu0
    %v2883 = vadd.f32 %v2635, %v2882
    %2884 = vmatprep.mubr.f32.mxu0 0.0
    %2885 = vmatmul.mubr.f32.gmra.mrb[0].mxu0 %v2666
    %v2886 = vpop.f32.mrb[0].mxu0
    %v2887 = vadd.f32 %v2640, %v2886
    %v2888 = vpop.f32.mrb[0].mxu0
    %v2889 = vadd.f32 %v2640, %v2888
    %2890 = vmatprep.mubr.f32.mxu0 0.0
    %2891 = vmatmul.mubr.f32.gmra.mrb[0].mxu0 %v2669
    %v2892 = vpop.f32.mrb[0].mxu0
    %v2893 = vadd.f32 %v2645, %v2892
    %v2894 = vpop.f32.mrb[0].mxu0
    %v2895 = vadd.f32 %v2645, %v2894
    %2896 = vdwg.mxu0
    %v2897 = vmax.f32 %v2738, 0.0
    %v2898 = vmax.f32 %v2740, 0.0
    %v2899 = vmax.f32 %v2851, 0.0
    %v2900 = vmax.f32 %v2853, 0.0
    %v2901 = vmax.f32 %v2744, 0.0
    %v2902 = vmax.f32 %v2746, 0.0
    %v2903 = vmax.f32 %v2857, 0.0
    %v2904 = vmax.f32 %v2859, 0.0
    %v2905 = vmax.f32 %v2750, 0.0
    %v2906 = vmax.f32 %v2752, 0.0
    %v2907 = vmax.f32 %v2863, 0.0
    %v2908 = vmax.f32 %v2865, 0.0
    %v2909 = vmax.f32 %v2756, 0.0
    %v2910 = vmax.f32 %v2758, 0.0
    %v2911 = vmax.f32 %v2869, 0.0
    %v2912 = vmax.f32 %v2871, 0.0
    %v2913 = vmax.f32 %v2762, 0.0
    %v2914 = vmax.f32 %v2764, 0.0
    %v2915 = vmax.f32 %v2875, 0.0
    %v2916 = vmax.f32 %v2877, 0.0
    %v2917 = vmax.f32 %v2768, 0.0
    %v2918 = vmax.f32 %v2770, 0.0
    %v2919 = vmax.f32 %v2881, 0.0
    %v2920 = vmax.f32 %v2883, 0.0
    %v2921 = vmax.f32 %v2774, 0.0
    %v2922 = vmax.f32 %v2776, 0.0
    %v2923 = vmax.f32 %v2887, 0.0
    %v2924 = vmax.f32 %v2889, 0.0
    %v2925 = vmax.f32 %v2780, 0.0
    %v2926 = vmax.f32 %v2782, 0.0
    %v2927 = vmax.f32 %v2893, 0.0
    %v2928 = vmax.f32 %v2895, 0.0
    %v2929 = vsel %vm1236, %v2897, 0.0
    %v2930 = vsel %vm1237, %v2898, 0.0
    %v2931 = vsel %vm1238, %v2899, 0.0
    %v2932 = vsel %vm1239, %v2900, 0.0
    %v2933 = vsel %vm1236, %v2901, 0.0
    %v2934 = vsel %vm1237, %v2902, 0.0
    %v2935 = vsel %vm1238, %v2903, 0.0
    %v2936 = vsel %vm1239, %v2904, 0.0
    %v2937 = vsel %vm1236, %v2905, 0.0
    %v2938 = vsel %vm1237, %v2906, 0.0
    %v2939 = vsel %vm1238, %v2907, 0.0
    %v2940 = vsel %vm1239, %v2908, 0.0
    %v2941 = vsel %vm1236, %v2909, 0.0
    %v2942 = vsel %vm1237, %v2910, 0.0
    %v2943 = vsel %vm1238, %v2911, 0.0
    %v2944 = vsel %vm1239, %v2912, 0.0
    %v2945 = vsel %vm1236, %v2913, 0.0
    %v2946 = vsel %vm1237, %v2914, 0.0
    %v2947 = vsel %vm1238, %v2915, 0.0
    %v2948 = vsel %vm1239, %v2916, 0.0
    %v2949 = vsel %vm1236, %v2917, 0.0
    %v2950 = vsel %vm1237, %v2918, 0.0
    %v2951 = vsel %vm1238, %v2919, 0.0
    %v2952 = vsel %vm1239, %v2920, 0.0
    %v2953 = vsel %vm1236, %v2921, 0.0
    %v2954 = vsel %vm1237, %v2922, 0.0
    %v2955 = vsel %vm1238, %v2923, 0.0
    %v2956 = vsel %vm1239, %v2924, 0.0
    %v2957 = vsel %vm1236, %v2925, 0.0
    %v2958 = vsel %vm1237, %v2926, 0.0
    %v2959 = vsel %vm1238, %v2927, 0.0
    %v2960 = vsel %vm1239, %v2928, 0.0
    %2961 = vst [vmem:[#allocation3 + $0x300] sm:$0xff] %v2929
    %2962 = vst [vmem:[#allocation3 + $0x308] sm:$0xff] %v2930
    %2963 = vst [vmem:[#allocation3 + $0x310] sm:$0xff] %v2931
    %2964 = vst [vmem:[#allocation3 + $0x318] sm:$0xff] %v2932
    %2965 = vst [vmem:[#allocation3 + $0x320] sm:$0xff] %v2933
    %2966 = vst [vmem:[#allocation3 + $0x328] sm:$0xff] %v2934
    %2967 = vst [vmem:[#allocation3 + $0x330] sm:$0xff] %v2935
    %2968 = vst [vmem:[#allocation3 + $0x338] sm:$0xff] %v2936
    %2969 = vst [vmem:[#allocation3 + $0x340] sm:$0xff] %v2937
    %2970 = vst [vmem:[#allocation3 + $0x348] sm:$0xff] %v2938
    %2971 = vst [vmem:[#allocation3 + $0x350] sm:$0xff] %v2939
    %2972 = vst [vmem:[#allocation3 + $0x358] sm:$0xff] %v2940
    %2973 = vst [vmem:[#allocation3 + $0x360] sm:$0xff] %v2941
    %2974 = vst [vmem:[#allocation3 + $0x368] sm:$0xff] %v2942
    %2975 = vst [vmem:[#allocation3 + $0x370] sm:$0xff] %v2943
    %2976 = vst [vmem:[#allocation3 + $0x378] sm:$0xff] %v2944
    %2977 = vst [vmem:[#allocation3 + $0x380] sm:$0xff] %v2945
    %2978 = vst [vmem:[#allocation3 + $0x388] sm:$0xff] %v2946
    %2979 = vst [vmem:[#allocation3 + $0x390] sm:$0xff] %v2947
    %2980 = vst [vmem:[#allocation3 + $0x398] sm:$0xff] %v2948
    %2981 = vst [vmem:[#allocation3 + $0x3a0] sm:$0xff] %v2949
    %2982 = vst [vmem:[#allocation3 + $0x3a8] sm:$0xff] %v2950
    %2983 = vst [vmem:[#allocation3 + $0x3b0] sm:$0xff] %v2951
    %2984 = vst [vmem:[#allocation3 + $0x3b8] sm:$0xff] %v2952
    %2985 = vst [vmem:[#allocation3 + $0x3c0] sm:$0xff] %v2953
    %2986 = vst [vmem:[#allocation3 + $0x3c8] sm:$0xff] %v2954
    %2987 = vst [vmem:[#allocation3 + $0x3d0] sm:$0xff] %v2955
    %2988 = vst [vmem:[#allocation3 + $0x3d8] sm:$0xff] %v2956
    %2989 = vst [vmem:[#allocation3 + $0x3e0] sm:$0xff] %v2957
    %2990 = vst [vmem:[#allocation3 + $0x3e8] sm:$0xff] %v2958
    %2991 = vst [vmem:[#allocation3 + $0x3f0] sm:$0xff] %v2959
    %2992 = vst [vmem:[#allocation3 + $0x3f8] sm:$0xff] %v2960
    %v2993 = vadd.f32 %v2929, %v2930
    %v2994 = vadd.f32 %v2993, %v2931
    %v2995 = vadd.f32 %v2994, %v2932
    %2996 = vadd.xlane.f32.xlu0 %v2995
    %v2997 = vpop.xlane.xlu0 %2996
    %v2998 = vadd.f32 %v2933, %v2934
    %v2999 = vadd.f32 %v2998, %v2935
    %v3000 = vadd.f32 %v2999, %v2936
    %3001 = vadd.xlane.f32.xlu0 %v3000
    %v3002 = vpop.xlane.xlu0 %3001
    %v3003 = vadd.f32 %v2937, %v2938
    %v3004 = vadd.f32 %v3003, %v2939
    %v3005 = vadd.f32 %v3004, %v2940
    %3006 = vadd.xlane.f32.xlu0 %v3005
    %v3007 = vpop.xlane.xlu0 %3006
    %v3008 = vadd.f32 %v2941, %v2942
    %v3009 = vadd.f32 %v3008, %v2943
    %v3010 = vadd.f32 %v3009, %v2944
    %3011 = vadd.xlane.f32.xlu0 %v3010
    %v3012 = vpop.xlane.xlu0 %3011
    %v3013 = vadd.f32 %v2945, %v2946
    %v3014 = vadd.f32 %v3013, %v2947
    %v3015 = vadd.f32 %v3014, %v2948
    %3016 = vadd.xlane.f32.xlu0 %v3015
    %v3017 = vpop.xlane.xlu0 %3016
    %v3018 = vadd.f32 %v2949, %v2950
    %v3019 = vadd.f32 %v3018, %v2951
    %v3020 = vadd.f32 %v3019, %v2952
    %3021 = vadd.xlane.f32.xlu0 %v3020
    %v3022 = vpop.xlane.xlu0 %3021
    %v3023 = vadd.f32 %v2953, %v2954
    %v3024 = vadd.f32 %v3023, %v2955
    %v3025 = vadd.f32 %v3024, %v2956
    %3026 = vadd.xlane.f32.xlu0 %v3025
    %v3027 = vpop.xlane.xlu0 %3026
    %v3028 = vadd.f32 %v2957, %v2958
    %v3029 = vadd.f32 %v3028, %v2959
    %v3030 = vadd.f32 %v3029, %v2960
    %3031 = vadd.xlane.f32.xlu0 %v3030
    %v3032 = vpop.xlane.xlu0 %3031
    %v3033 = vadd.f32 %v2470, %v2997
    %v3034 = vadd.f32 %v2471, %v3002
    %v3035 = vadd.f32 %v2472, %v3007
    %v3036 = vadd.f32 %v2473, %v3012
    %v3037 = vadd.f32 %v2474, %v3017
    %v3038 = vadd.f32 %v2475, %v3022
    %v3039 = vadd.f32 %v2476, %v3027
    %v3040 = vadd.f32 %v2477, %v3032
    %v3041 = vmul.f32 %v2929, %v2929
    %v3042 = vmul.f32 %v2930, %v2930
    %v3043 = vmul.f32 %v2931, %v2931
    %v3044 = vmul.f32 %v2932, %v2932
    %v3045 = vmul.f32 %v2933, %v2933
    %v3046 = vmul.f32 %v2934, %v2934
    %v3047 = vmul.f32 %v2935, %v2935
    %v3048 = vmul.f32 %v2936, %v2936
    %v3049 = vmul.f32 %v2937, %v2937
    %v3050 = vmul.f32 %v2938, %v2938
    %v3051 = vmul.f32 %v2939, %v2939
    %v3052 = vmul.f32 %v2940, %v2940
    %v3053 = vmul.f32 %v2941, %v2941
    %v3054 = vmul.f32 %v2942, %v2942
    %v3055 = vmul.f32 %v2943, %v2943
    %v3056 = vmul.f32 %v2944, %v2944
    %v3057 = vmul.f32 %v2945, %v2945
    %v3058 = vmul.f32 %v2946, %v2946
    %v3059 = vmul.f32 %v2947, %v2947
    %v3060 = vmul.f32 %v2948, %v2948
    %v3061 = vmul.f32 %v2949, %v2949
    %v3062 = vmul.f32 %v2950, %v2950
    %v3063 = vmul.f32 %v2951, %v2951
    %v3064 = vmul.f32 %v2952, %v2952
    %v3065 = vmul.f32 %v2953, %v2953
    %v3066 = vmul.f32 %v2954, %v2954
    %v3067 = vmul.f32 %v2955, %v2955
    %v3068 = vmul.f32 %v2956, %v2956
    %v3069 = vmul.f32 %v2957, %v2957
    %v3070 = vmul.f32 %v2958, %v2958
    %v3071 = vmul.f32 %v2959, %v2959
    %v3072 = vmul.f32 %v2960, %v2960
    %v3073 = vadd.f32 %v3041, %v3042
    %v3074 = vadd.f32 %v3073, %v3043
    %v3075 = vadd.f32 %v3074, %v3044
    %3076 = vadd.xlane.f32.xlu0 %v3075
    %v3077 = vpop.xlane.xlu0 %3076
    %v3078 = vadd.f32 %v3045, %v3046
    %v3079 = vadd.f32 %v3078, %v3047
    %v3080 = vadd.f32 %v3079, %v3048
    %3081 = vadd.xlane.f32.xlu0 %v3080
    %v3082 = vpop.xlane.xlu0 %3081
    %v3083 = vadd.f32 %v3049, %v3050
    %v3084 = vadd.f32 %v3083, %v3051
    %v3085 = vadd.f32 %v3084, %v3052
    %3086 = vadd.xlane.f32.xlu0 %v3085
    %v3087 = vpop.xlane.xlu0 %3086
    %v3088 = vadd.f32 %v3053, %v3054
    %v3089 = vadd.f32 %v3088, %v3055
    %v3090 = vadd.f32 %v3089, %v3056
    %3091 = vadd.xlane.f32.xlu0 %v3090
    %v3092 = vpop.xlane.xlu0 %3091
    %v3093 = vadd.f32 %v3057, %v3058
    %v3094 = vadd.f32 %v3093, %v3059
    %v3095 = vadd.f32 %v3094, %v3060
    %3096 = vadd.xlane.f32.xlu0 %v3095
    %v3097 = vpop.xlane.xlu0 %3096
    %v3098 = vadd.f32 %v3061, %v3062
    %v3099 = vadd.f32 %v3098, %v3063
    %v3100 = vadd.f32 %v3099, %v3064
    %3101 = vadd.xlane.f32.xlu0 %v3100
    %v3102 = vpop.xlane.xlu0 %3101
    %v3103 = vadd.f32 %v3065, %v3066
    %v3104 = vadd.f32 %v3103, %v3067
    %v3105 = vadd.f32 %v3104, %v3068
    %3106 = vadd.xlane.f32.xlu0 %v3105
    %v3107 = vpop.xlane.xlu0 %3106
    %v3108 = vadd.f32 %v3069, %v3070
    %v3109 = vadd.f32 %v3108, %v3071
    %v3110 = vadd.f32 %v3109, %v3072
    %3111 = vadd.xlane.f32.xlu0 %v3110
    %v3112 = vpop.xlane.xlu0 %3111
    %v3113 = vadd.f32 %v2550, %v3077
    %v3114 = vadd.f32 %v2551, %v3082
    %v3115 = vadd.f32 %v2552, %v3087
    %v3116 = vadd.f32 %v2553, %v3092
    %v3117 = vadd.f32 %v2554, %v3097
    %v3118 = vadd.f32 %v2555, %v3102
    %v3119 = vadd.f32 %v2556, %v3107
    %v3120 = vadd.f32 %v2557, %v3112
    %v3121 = vmul.f32 %v3033, 0.0006377551
    %v3122 = vmul.f32 %v3034, 0.0006377551
    %v3123 = vmul.f32 %v3035, 0.0006377551
    %v3124 = vmul.f32 %v3036, 0.0006377551
    %v3125 = vmul.f32 %v3037, 0.0006377551
    %v3126 = vmul.f32 %v3038, 0.0006377551
    %v3127 = vmul.f32 %v3039, 0.0006377551
    %v3128 = vmul.f32 %v3040, 0.0006377551
    %v3129 = vmul.f32 %v3113, 0.0006377551
    %v3130 = vmul.f32 %v3114, 0.0006377551
    %v3131 = vmul.f32 %v3115, 0.0006377551
    %v3132 = vmul.f32 %v3116, 0.0006377551
    %v3133 = vmul.f32 %v3117, 0.0006377551
    %v3134 = vmul.f32 %v3118, 0.0006377551
    %v3135 = vmul.f32 %v3119, 0.0006377551
    %v3136 = vmul.f32 %v3120, 0.0006377551
    %v3137 = vmul.f32 %v3121, %v3121
    %v3138 = vmul.f32 %v3122, %v3122
    %v3139 = vmul.f32 %v3123, %v3123
    %v3140 = vmul.f32 %v3124, %v3124
    %v3141 = vmul.f32 %v3125, %v3125
    %v3142 = vmul.f32 %v3126, %v3126
    %v3143 = vmul.f32 %v3127, %v3127
    %v3144 = vmul.f32 %v3128, %v3128
    %v3145 = vsub.f32 %v3129, %v3137
    %v3146 = vsub.f32 %v3130, %v3138
    %v3147 = vsub.f32 %v3131, %v3139
    %v3148 = vsub.f32 %v3132, %v3140
    %v3149 = vsub.f32 %v3133, %v3141
    %v3150 = vsub.f32 %v3134, %v3142
    %v3151 = vsub.f32 %v3135, %v3143
    %v3152 = vsub.f32 %v3136, %v3144
    %v3153 = vadd.f32 %v3145, 1e-05
    %v3154 = vadd.f32 %v3146, 1e-05
    %v3155 = vadd.f32 %v3147, 1e-05
    %v3156 = vadd.f32 %v3148, 1e-05
    %v3157 = vadd.f32 %v3149, 1e-05
    %v3158 = vadd.f32 %v3150, 1e-05
    %v3159 = vadd.f32 %v3151, 1e-05
    %v3160 = vadd.f32 %v3152, 1e-05
    %v3161 = vrsqrt.pop %v3153
    %v3162 = vrsqrt.pop %v3154
    %v3163 = vrsqrt.pop %v3155
    %v3164 = vrsqrt.pop %v3156
    %v3165 = vrsqrt.pop %v3157
    %v3166 = vrsqrt.pop %v3158
    %v3167 = vrsqrt.pop %v3159
    %v3168 = vrsqrt.pop %v3160
    %v3169 = vld [vmem:[%s8] sm:$0xff]
    %v3170 = vld [vmem:[%s8 + $0x8] sm:$0xff]
    %v3171 = vld [vmem:[%s8 + $0x10] sm:$0xff]
    %v3172 = vld [vmem:[%s8 + $0x18] sm:$0xff]
    %v3173 = vld [vmem:[%s8 + $0x20] sm:$0xff]
    %v3174 = vld [vmem:[%s8 + $0x28] sm:$0xff]
    %v3175 = vld [vmem:[%s8 + $0x30] sm:$0xff]
    %v3176 = vld [vmem:[%s8 + $0x38] sm:$0xff]
    %v3177 = vmul.f32 %v3161, %v3169
    %v3178 = vmul.f32 %v3162, %v3170
    %v3179 = vmul.f32 %v3163, %v3171
    %v3180 = vmul.f32 %v3164, %v3172
    %v3181 = vmul.f32 %v3165, %v3173
    %v3182 = vmul.f32 %v3166, %v3174
    %v3183 = vmul.f32 %v3167, %v3175
    %v3184 = vmul.f32 %v3168, %v3176
    %v3185 = vld [vmem:[%s9] sm:$0xff]
    %v3186 = vld [vmem:[%s9 + $0x8] sm:$0xff]
    %v3187 = vld [vmem:[%s9 + $0x10] sm:$0xff]
    %v3188 = vld [vmem:[%s9 + $0x18] sm:$0xff]
    %v3189 = vld [vmem:[%s9 + $0x20] sm:$0xff]
    %v3190 = vld [vmem:[%s9 + $0x28] sm:$0xff]
    %v3191 = vld [vmem:[%s9 + $0x30] sm:$0xff]
    %v3192 = vld [vmem:[%s9 + $0x38] sm:$0xff]
    %v3193 = vmul.f32 %v3121, %v3177
    %v3194 = vmul.f32 %v3122, %v3178
    %v3195 = vmul.f32 %v3123, %v3179
    %v3196 = vmul.f32 %v3124, %v3180
    %v3197 = vmul.f32 %v3125, %v3181
    %v3198 = vmul.f32 %v3126, %v3182
    %v3199 = vmul.f32 %v3127, %v3183
    %v3200 = vmul.f32 %v3128, %v3184
    %v3201 = vsub.f32 %v3185, %v3193
    %v3202 = vsub.f32 %v3186, %v3194
    %v3203 = vsub.f32 %v3187, %v3195
    %v3204 = vsub.f32 %v3188, %v3196
    %v3205 = vsub.f32 %v3189, %v3197
    %v3206 = vsub.f32 %v3190, %v3198
    %v3207 = vsub.f32 %v3191, %v3199
    %v3208 = vsub.f32 %v3192, %v3200
    %v3209 = vld [vmem:[#allocation3] sm:$0xff]
    %v3210 = vld [vmem:[#allocation3 + $0x8] sm:$0xff]
    %v3211 = vld [vmem:[#allocation3 + $0x10] sm:$0xff]
    %v3212 = vld [vmem:[#allocation3 + $0x18] sm:$0xff]
    %v3213 = vld [vmem:[#allocation3 + $0x20] sm:$0xff]
    %v3214 = vld [vmem:[#allocation3 + $0x28] sm:$0xff]
    %v3215 = vld [vmem:[#allocation3 + $0x30] sm:$0xff]
    %v3216 = vld [vmem:[#allocation3 + $0x38] sm:$0xff]
    %v3217 = vld [vmem:[#allocation3 + $0x40] sm:$0xff]
    %v3218 = vld [vmem:[#allocation3 + $0x48] sm:$0xff]
    %v3219 = vld [vmem:[#allocation3 + $0x50] sm:$0xff]
    %v3220 = vld [vmem:[#allocation3 + $0x58] sm:$0xff]
    %v3221 = vld [vmem:[#allocation3 + $0x60] sm:$0xff]
    %v3222 = vld [vmem:[#allocation3 + $0x68] sm:$0xff]
    %v3223 = vld [vmem:[#allocation3 + $0x70] sm:$0xff]
    %v3224 = vld [vmem:[#allocation3 + $0x78] sm:$0xff]
    %v3225 = vld [vmem:[#allocation3 + $0x80] sm:$0xff]
    %v3226 = vld [vmem:[#allocation3 + $0x88] sm:$0xff]
    %v3227 = vld [vmem:[#allocation3 + $0x90] sm:$0xff]
    %v3228 = vld [vmem:[#allocation3 + $0x98] sm:$0xff]
    %v3229 = vld [vmem:[#allocation3 + $0xa0] sm:$0xff]
    %v3230 = vld [vmem:[#allocation3 + $0xa8] sm:$0xff]
    %v3231 = vld [vmem:[#allocation3 + $0xb0] sm:$0xff]
    %v3232 = vld [vmem:[#allocation3 + $0xb8] sm:$0xff]
    %v3233 = vld [vmem:[#allocation3 + $0xc0] sm:$0xff]
    %v3234 = vld [vmem:[#allocation3 + $0xc8] sm:$0xff]
    %v3235 = vld [vmem:[#allocation3 + $0xd0] sm:$0xff]
    %v3236 = vld [vmem:[#allocation3 + $0xd8] sm:$0xff]
    %v3237 = vld [vmem:[#allocation3 + $0xe0] sm:$0xff]
    %v3238 = vld [vmem:[#allocation3 + $0xe8] sm:$0xff]
    %v3239 = vld [vmem:[#allocation3 + $0xf0] sm:$0xff]
    %v3240 = vld [vmem:[#allocation3 + $0xf8] sm:$0xff]
    %3242 = vset.pattern.permute.xlu0 0
    %3243 = vperm.xlu0 %3242, %v3177
    %v3244 = vpop.permute.xlu0 %3243
    %3247 = vset.pattern.permute.xlu0 0
    %3248 = vperm.xlu0 %3247, %v3178
    %v3249 = vpop.permute.xlu0 %3248
    %3252 = vset.pattern.permute.xlu0 0
    %3253 = vperm.xlu0 %3252, %v3179
    %v3254 = vpop.permute.xlu0 %3253
    %3257 = vset.pattern.permute.xlu0 0
    %3258 = vperm.xlu0 %3257, %v3180
    %v3259 = vpop.permute.xlu0 %3258
    %3262 = vset.pattern.permute.xlu0 0
    %3263 = vperm.xlu0 %3262, %v3181
    %v3264 = vpop.permute.xlu0 %3263
    %3267 = vset.pattern.permute.xlu0 0
    %3268 = vperm.xlu0 %3267, %v3182
    %v3269 = vpop.permute.xlu0 %3268
    %3272 = vset.pattern.permute.xlu0 0
    %3273 = vperm.xlu0 %3272, %v3183
    %v3274 = vpop.permute.xlu0 %3273
    %3277 = vset.pattern.permute.xlu0 0
    %3278 = vperm.xlu0 %3277, %v3184
    %v3279 = vpop.permute.xlu0 %3278
    %v3281 = vmul.f32 %v3209, %v3244
    %v3282 = vmul.f32 %v3210, %v3244
    %v3283 = vmul.f32 %v3211, %v3244
    %v3284 = vmul.f32 %v3212, %v3244
    %v3285 = vmul.f32 %v3213, %v3249
    %v3286 = vmul.f32 %v3214, %v3249
    %v3287 = vmul.f32 %v3215, %v3249
    %v3288 = vmul.f32 %v3216, %v3249
    %v3289 = vmul.f32 %v3217, %v3254
    %v3290 = vmul.f32 %v3218, %v3254
    %v3291 = vmul.f32 %v3219, %v3254
    %v3292 = vmul.f32 %v3220, %v3254
    %v3293 = vmul.f32 %v3221, %v3259
    %v3294 = vmul.f32 %v3222, %v3259
    %v3295 = vmul.f32 %v3223, %v3259
    %v3296 = vmul.f32 %v3224, %v3259
    %v3297 = vmul.f32 %v3225, %v3264
    %v3298 = vmul.f32 %v3226, %v3264
    %v3299 = vmul.f32 %v3227, %v3264
    %v3300 = vmul.f32 %v3228, %v3264
    %v3301 = vmul.f32 %v3229, %v3269
    %v3302 = vmul.f32 %v3230, %v3269
    %v3303 = vmul.f32 %v3231, %v3269
    %v3304 = vmul.f32 %v3232, %v3269
    %v3305 = vmul.f32 %v3233, %v3274
    %v3306 = vmul.f32 %v3234, %v3274
    %v3307 = vmul.f32 %v3235, %v3274
    %v3308 = vmul.f32 %v3236, %v3274
    %v3309 = vmul.f32 %v3237, %v3279
    %v3310 = vmul.f32 %v3238, %v3279
    %v3311 = vmul.f32 %v3239, %v3279
    %v3312 = vmul.f32 %v3240, %v3279
    %3314 = vset.pattern.permute.xlu0 0
    %3315 = vperm.xlu0 %3314, %v3201
    %v3316 = vpop.permute.xlu0 %3315
    %3319 = vset.pattern.permute.xlu0 0
    %3320 = vperm.xlu0 %3319, %v3202
    %v3321 = vpop.permute.xlu0 %3320
    %3324 = vset.pattern.permute.xlu0 0
    %3325 = vperm.xlu0 %3324, %v3203
    %v3326 = vpop.permute.xlu0 %3325
    %3329 = vset.pattern.permute.xlu0 0
    %3330 = vperm.xlu0 %3329, %v3204
    %v3331 = vpop.permute.xlu0 %3330
    %3334 = vset.pattern.permute.xlu0 0
    %3335 = vperm.xlu0 %3334, %v3205
    %v3336 = vpop.permute.xlu0 %3335
    %3339 = vset.pattern.permute.xlu0 0
    %3340 = vperm.xlu0 %3339, %v3206
    %v3341 = vpop.permute.xlu0 %3340
    %3344 = vset.pattern.permute.xlu0 0
    %3345 = vperm.xlu0 %3344, %v3207
    %v3346 = vpop.permute.xlu0 %3345
    %3349 = vset.pattern.permute.xlu0 0
    %3350 = vperm.xlu0 %3349, %v3208
    %v3351 = vpop.permute.xlu0 %3350
    %v3353 = vadd.f32 %v3281, %v3316
    %v3354 = vadd.f32 %v3282, %v3316
    %v3355 = vadd.f32 %v3283, %v3316
    %v3356 = vadd.f32 %v3284, %v3316
    %v3357 = vadd.f32 %v3285, %v3321
    %v3358 = vadd.f32 %v3286, %v3321
    %v3359 = vadd.f32 %v3287, %v3321
    %v3360 = vadd.f32 %v3288, %v3321
    %v3361 = vadd.f32 %v3289, %v3326
    %v3362 = vadd.f32 %v3290, %v3326
    %v3363 = vadd.f32 %v3291, %v3326
    %v3364 = vadd.f32 %v3292, %v3326
    %v3365 = vadd.f32 %v3293, %v3331
    %v3366 = vadd.f32 %v3294, %v3331
    %v3367 = vadd.f32 %v3295, %v3331
    %v3368 = vadd.f32 %v3296, %v3331
    %v3369 = vadd.f32 %v3297, %v3336
    %v3370 = vadd.f32 %v3298, %v3336
    %v3371 = vadd.f32 %v3299, %v3336
    %v3372 = vadd.f32 %v3300, %v3336
    %v3373 = vadd.f32 %v3301, %v3341
    %v3374 = vadd.f32 %v3302, %v3341
    %v3375 = vadd.f32 %v3303, %v3341
    %v3376 = vadd.f32 %v3304, %v3341
    %v3377 = vadd.f32 %v3305, %v3346
    %v3378 = vadd.f32 %v3306, %v3346
    %v3379 = vadd.f32 %v3307, %v3346
    %v3380 = vadd.f32 %v3308, %v3346
    %v3381 = vadd.f32 %v3309, %v3351
    %v3382 = vadd.f32 %v3310, %v3351
    %v3383 = vadd.f32 %v3311, %v3351
    %v3384 = vadd.f32 %v3312, %v3351
    %v3385 = vsel %vm1236, %v3353, 0.0
    %v3386 = vsel %vm1237, %v3354, 0.0
    %v3387 = vsel %vm1238, %v3355, 0.0
    %v3388 = vsel %vm1239, %v3356, 0.0
    %v3389 = vsel %vm1236, %v3357, 0.0
    %v3390 = vsel %vm1237, %v3358, 0.0
    %v3391 = vsel %vm1238, %v3359, 0.0
    %v3392 = vsel %vm1239, %v3360, 0.0
    %v3393 = vsel %vm1236, %v3361, 0.0
    %v3394 = vsel %vm1237, %v3362, 0.0
    %v3395 = vsel %vm1238, %v3363, 0.0
    %v3396 = vsel %vm1239, %v3364, 0.0
    %v3397 = vsel %vm1236, %v3365, 0.0
    %v3398 = vsel %vm1237, %v3366, 0.0
    %v3399 = vsel %vm1238, %v3367, 0.0
    %v3400 = vsel %vm1239, %v3368, 0.0
    %v3401 = vsel %vm1236, %v3369, 0.0
    %v3402 = vsel %vm1237, %v3370, 0.0
    %v3403 = vsel %vm1238, %v3371, 0.0
    %v3404 = vsel %vm1239, %v3372, 0.0
    %v3405 = vsel %vm1236, %v3373, 0.0
    %v3406 = vsel %vm1237, %v3374, 0.0
    %v3407 = vsel %vm1238, %v3375, 0.0
    %v3408 = vsel %vm1239, %v3376, 0.0
    %v3409 = vsel %vm1236, %v3377, 0.0
    %v3410 = vsel %vm1237, %v3378, 0.0
    %v3411 = vsel %vm1238, %v3379, 0.0
    %v3412 = vsel %vm1239, %v3380, 0.0
    %v3413 = vsel %vm1236, %v3381, 0.0
    %v3414 = vsel %vm1237, %v3382, 0.0
    %v3415 = vsel %vm1238, %v3383, 0.0
    %v3416 = vsel %vm1239, %v3384, 0.0
    %v3417 = vld [vmem:[%s10] sm:$0xff]
    %v3418 = vld [vmem:[%s10 + $0x8] sm:$0x1]
    %v3420 = vsel %vm949, %v3417, 0
    %v3423 = vsel %vm949, %v3418, 0
    %3425 = vmatprep.subr.mxu0 %v3386
    %3426 = vmatpush1.msra.mxu0 %v3385
    %3427 = vmatprep.subr.mxu0 %v3390
    %3428 = vmatpush1.msra.mxu0 %v3389
    %3429 = vmatprep.subr.mxu0 %v3394
    %3430 = vmatpush1.msra.mxu0 %v3393
    %3431 = vmatprep.subr.mxu0 %v3398
    %3432 = vmatpush1.msra.mxu0 %v3397
    %3433 = vmatprep.subr.mxu0 %v3402
    %3434 = vmatpush1.msra.mxu0 %v3401
    %3435 = vmatprep.subr.mxu0 %v3406
    %3436 = vmatpush1.msra.mxu0 %v3405
    %3437 = vmatprep.subr.mxu0 %v3410
    %3438 = vmatpush1.msra.mxu0 %v3409
    %3439 = vmatprep.subr.mxu0 %v3414
    %3440 = vmatpush1.msra.mxu0 %v3413
    %3441 = vmatprep.subr.mxu0 0.0
    %3442 = vmatpush1.msra.mxu0 0.0
    %3443 = vmatprep.subr.mxu0 0.0
    %3444 = vmatpush1.msra.mxu0 0.0
    %3445 = vmatprep.subr.mxu0 0.0
    %3446 = vmatpush1.msra.mxu0 0.0
    %3447 = vmatprep.subr.mxu0 0.0
    %3448 = vmatpush1.msra.mxu0 0.0
    %3449 = vmatprep.subr.mxu0 0.0
    %3450 = vmatpush1.msra.mxu0 0.0
    %3451 = vmatprep.subr.mxu0 0.0
    %3452 = vmatpush1.msra.mxu0 0.0
    %3453 = vmatprep.subr.mxu0 0.0
    %3454 = vmatpush1.msra.mxu0 0.0
    %3455 = vmatprep.subr.mxu0 0.0
    %3456 = vmatpush1.msra.mxu0 0.0
    %3457 = vmatprep.subr.mxu0 0.0
    %3458 = vmatpush1.msra.mxu0 0.0
    %3459 = vmatprep.subr.mxu0 0.0
    %3460 = vmatpush1.msra.mxu0 0.0
    %3461 = vmatprep.subr.mxu0 0.0
    %3462 = vmatpush1.msra.mxu0 0.0
    %3463 = vmatprep.subr.mxu0 0.0
    %3464 = vmatpush1.msra.mxu0 0.0
    %3465 = vmatprep.subr.mxu0 0.0
    %3466 = vmatpush1.msra.mxu0 0.0
    %3467 = vmatprep.subr.mxu0 0.0
    %3468 = vmatpush1.msra.mxu0 0.0
    %3469 = vmatprep.subr.mxu0 0.0
    %3470 = vmatpush1.msra.mxu0 0.0
    %3471 = vmatprep.subr.mxu0 0.0
    %3472 = vmatpush1.msra.mxu0 0.0
    %3473 = vmatprep.subr.mxu0 0.0
    %3474 = vmatpush1.msra.mxu0 0.0
    %3475 = vmatprep.subr.mxu0 0.0
    %3476 = vmatpush1.msra.mxu0 0.0
    %3477 = vmatprep.subr.mxu0 0.0
    %3478 = vmatpush1.msra.mxu0 0.0
    %3479 = vmatprep.subr.mxu0 0.0
    %3480 = vmatpush1.msra.mxu0 0.0
    %3481 = vmatprep.subr.mxu0 0.0
    %3482 = vmatpush1.msra.mxu0 0.0
    %3483 = vmatprep.subr.mxu0 0.0
    %3484 = vmatpush1.msra.mxu0 0.0
    %3485 = vmatprep.subr.mxu0 0.0
    %3486 = vmatpush1.msra.mxu0 0.0
    %3487 = vmatprep.subr.mxu0 0.0
    %3488 = vmatpush1.msra.mxu0 0.0
    %3489 = vmatprep.mubr.f32.mxu0 0.0
    %3490 = vmatmul.mubr.f32.gmra.mrb[0].mxu0 %v3420
    %v3491 = vpop.f32.mrb[0].mxu0
    %v3492 = vadd.f32 0.0, %v3491
    %v3493 = vpop.f32.mrb[0].mxu0
    %v3494 = vadd.f32 0.0, %v3493
    %3495 = vmatprep.mubr.f32.mxu0 0.0
    %3496 = vmatmul.mubr.f32.gmra.mrb[0].mxu0 %v3423
    %v3497 = vpop.f32.mrb[0].mxu0
    %v3498 = vadd.f32 0.0, %v3497
    %v3499 = vpop.f32.mrb[0].mxu0
    %v3500 = vadd.f32 0.0, %v3499
    %3501 = vdwg.mxu0
    %3502 = vmatprep.subr.mxu0 %v3388
    %3503 = vmatpush1.msra.mxu0 %v3387
    %3504 = vmatprep.subr.mxu0 %v3392
    %3505 = vmatpush1.msra.mxu0 %v3391
    %3506 = vmatprep.subr.mxu0 %v3396
    %3507 = vmatpush1.msra.mxu0 %v3395
    %3508 = vmatprep.subr.mxu0 %v3400
    %3509 = vmatpush1.msra.mxu0 %v3399
    %3510 = vmatprep.subr.mxu0 %v3404
    %3511 = vmatpush1.msra.mxu0 %v3403
    %3512 = vmatprep.subr.mxu0 %v3408
    %3513 = vmatpush1.msra.mxu0 %v3407
    %3514 = vmatprep.subr.mxu0 %v3412
    %3515 = vmatpush1.msra.mxu0 %v3411
    %3516 = vmatprep.subr.mxu0 %v3416
    %3517 = vmatpush1.msra.mxu0 %v3415
    %3518 = vmatprep.subr.mxu0 0.0
    %3519 = vmatpush1.msra.mxu0 0.0
    %3520 = vmatprep.subr.mxu0 0.0
    %3521 = vmatpush1.msra.mxu0 0.0
    %3522 = vmatprep.subr.mxu0 0.0
    %3523 = vmatpush1.msra.mxu0 0.0
    %3524 = vmatprep.subr.mxu0 0.0
    %3525 = vmatpush1.msra.mxu0 0.0
    %3526 = vmatprep.subr.mxu0 0.0
    %3527 = vmatpush1.msra.mxu0 0.0
    %3528 = vmatprep.subr.mxu0 0.0
    %3529 = vmatpush1.msra.mxu0 0.0
    %3530 = vmatprep.subr.mxu0 0.0
    %3531 = vmatpush1.msra.mxu0 0.0
    %3532 = vmatprep.subr.mxu0 0.0
    %3533 = vmatpush1.msra.mxu0 0.0
    %3534 = vmatprep.subr.mxu0 0.0
    %3535 = vmatpush1.msra.mxu0 0.0
    %3536 = vmatprep.subr.mxu0 0.0
    %3537 = vmatpush1.msra.mxu0 0.0
    %3538 = vmatprep.subr.mxu0 0.0
    %3539 = vmatpush1.msra.mxu0 0.0
    %3540 = vmatprep.subr.mxu0 0.0
    %3541 = vmatpush1.msra.mxu0 0.0
    %3542 = vmatprep.subr.mxu0 0.0
    %3543 = vmatpush1.msra.mxu0 0.0
    %3544 = vmatprep.subr.mxu0 0.0
    %3545 = vmatpush1.msra.mxu0 0.0
    %3546 = vmatprep.subr.mxu0 0.0
    %3547 = vmatpush1.msra.mxu0 0.0
    %3548 = vmatprep.subr.mxu0 0.0
    %3549 = vmatpush1.msra.mxu0 0.0
    %3550 = vmatprep.subr.mxu0 0.0
    %3551 = vmatpush1.msra.mxu0 0.0
    %3552 = vmatprep.subr.mxu0 0.0
    %3553 = vmatpush1.msra.mxu0 0.0
    %3554 = vmatprep.subr.mxu0 0.0
    %3555 = vmatpush1.msra.mxu0 0.0
    %3556 = vmatprep.subr.mxu0 0.0
    %3557 = vmatpush1.msra.mxu0 0.0
    %3558 = vmatprep.subr.mxu0 0.0
    %3559 = vmatpush1.msra.mxu0 0.0
    %3560 = vmatprep.subr.mxu0 0.0
    %3561 = vmatpush1.msra.mxu0 0.0
    %3562 = vmatprep.subr.mxu0 0.0
    %3563 = vmatpush1.msra.mxu0 0.0
    %3564 = vmatprep.subr.mxu0 0.0
    %3565 = vmatpush1.msra.mxu0 0.0
    %3566 = vmatprep.mubr.f32.mxu0 0.0
    %3567 = vmatmul.mubr.f32.gmra.mrb[0].mxu0 %v3420
    %v3568 = vpop.f32.mrb[0].mxu0
    %v3569 = vadd.f32 0.0, %v3568
    %v3570 = vpop.f32.mrb[0].mxu0
    %v3571 = vadd.f32 0.0, %v3570
    %3572 = vmatprep.mubr.f32.mxu0 0.0
    %3573 = vmatmul.mubr.f32.gmra.mrb[0].mxu0 %v3423
    %v3574 = vpop.f32.mrb[0].mxu0
    %v3575 = vadd.f32 0.0, %v3574
    %v3576 = vpop.f32.mrb[0].mxu0
    %v3577 = vadd.f32 0.0, %v3576
    %3578 = vdwg.mxu0
    %v3583 = vrot.slane %v3492, 2
    %v3584 = vrot.slane %v3494, 2
    %v3585 = vrot.slane %v3569, 2
    %v3586 = vrot.slane %v3571, 2
    %3591 = vrot.lane.b32.xlu0 %v3583, 127
    %v3592 = vpop.permute.xlu0 %3591
    %3593 = vrot.lane.b32.xlu0 %v3584, 127
    %v3594 = vpop.permute.xlu0 %3593
    %3595 = vrot.lane.b32.xlu0 %v3585, 127
    %v3596 = vpop.permute.xlu0 %3595
    %3597 = vrot.lane.b32.xlu0 %v3586, 127
    %v3598 = vpop.permute.xlu0 %3597
    %vm3599 = vcmp.lt.s32.totalorder %v64, 127
    %v3600 = vsel %vm3599, %v3596, %v3598
    %v3601 = vsel %vm3599, %v3594, %v3596
    %v3602 = vsel %vm3599, %v3592, %v3594
    %v3603 = vsel %vm3599, %v3598, %v3592
    %v3604 = vadd.f32 %v3492, %v3602
    %v3605 = vadd.f32 %v3494, %v3601
    %v3606 = vadd.f32 %v3569, %v3600
    %v3607 = vadd.f32 %v3571, %v3603
    %v3608 = vrot.slane %v3492, 5
    %v3609 = vrot.slane %v3494, 5
    %v3610 = vrot.slane %v3569, 5
    %v3611 = vrot.slane %v3571, 5
    %3616 = vrot.lane.b32.xlu0 %v3608, 127
    %v3617 = vpop.permute.xlu0 %3616
    %3618 = vrot.lane.b32.xlu0 %v3609, 127
    %v3619 = vpop.permute.xlu0 %3618
    %3620 = vrot.lane.b32.xlu0 %v3610, 127
    %v3621 = vpop.permute.xlu0 %3620
    %3622 = vrot.lane.b32.xlu0 %v3611, 127
    %v3623 = vpop.permute.xlu0 %3622
    %v3624 = vsel %vm3599, %v3621, %v3623
    %v3625 = vsel %vm3599, %v3619, %v3621
    %v3626 = vsel %vm3599, %v3617, %v3619
    %v3627 = vsel %vm3599, %v3623, %v3617
    %v3632 = vrot.slane %v3626, 5
    %v3633 = vrot.slane %v3625, 5
    %v3634 = vrot.slane %v3624, 5
    %v3635 = vrot.slane %v3627, 5
    %v3640 = vadd.f32 %v3492, %v3632
    %v3641 = vadd.f32 %v3494, %v3633
    %v3642 = vadd.f32 %v3569, %v3634
    %v3643 = vadd.f32 %v3571, %v3635
    %v3644 = vrot.slane %v3492, 6
    %v3645 = vrot.slane %v3494, 6
    %v3646 = vrot.slane %v3569, 6
    %v3647 = vrot.slane %v3571, 6
    %3652 = vrot.lane.b32.xlu0 %v3644, 112
    %v3653 = vpop.permute.xlu0 %3652
    %3654 = vrot.lane.b32.xlu0 %v3645, 112
    %v3655 = vpop.permute.xlu0 %3654
    %3656 = vrot.lane.b32.xlu0 %v3646, 112
    %v3657 = vpop.permute.xlu0 %3656
    %3658 = vrot.lane.b32.xlu0 %v3647, 112
    %v3659 = vpop.permute.xlu0 %3658
    %vm3660 = vcmp.lt.s32.totalorder %v64, 112
    %v3661 = vsel %vm3660, %v3657, %v3659
    %v3662 = vsel %vm3660, %v3655, %v3657
    %v3663 = vsel %vm3660, %v3653, %v3655
    %v3664 = vsel %vm3660, %v3659, %v3653
    %v3665 = vadd.f32 %v3604, %v3663
    %v3666 = vadd.f32 %v3605, %v3662
    %v3667 = vadd.f32 %v3606, %v3661
    %v3668 = vadd.f32 %v3607, %v3664
    %v3669 = vrot.slane %v3492, 7
    %v3670 = vrot.slane %v3494, 7
    %v3671 = vrot.slane %v3569, 7
    %v3672 = vrot.slane %v3571, 7
    %3677 = vrot.lane.b32.xlu0 %v3669, 112
    %v3678 = vpop.permute.xlu0 %3677
    %3679 = vrot.lane.b32.xlu0 %v3670, 112
    %v3680 = vpop.permute.xlu0 %3679
    %3681 = vrot.lane.b32.xlu0 %v3671, 112
    %v3682 = vpop.permute.xlu0 %3681
    %3683 = vrot.lane.b32.xlu0 %v3672, 112
    %v3684 = vpop.permute.xlu0 %3683
    %v3685 = vsel %vm3660, %v3682, %v3684
    %v3686 = vsel %vm3660, %v3680, %v3682
    %v3687 = vsel %vm3660, %v3678, %v3680
    %v3688 = vsel %vm3660, %v3684, %v3678
    %v3693 = vrot.slane %v3687, 7
    %v3694 = vrot.slane %v3686, 7
    %v3695 = vrot.slane %v3685, 7
    %v3696 = vrot.slane %v3688, 7
    %v3701 = vadd.f32 %v3492, %v3693
    %v3702 = vadd.f32 %v3494, %v3694
    %v3703 = vadd.f32 %v3569, %v3695
    %v3704 = vadd.f32 %v3571, %v3696
    %3705 = vrot.lane.b32.xlu0 %v3498, 111
    %v3706 = vpop.permute.xlu0 %3705
    %3707 = vrot.lane.b32.xlu0 %v3500, 111
    %v3708 = vpop.permute.xlu0 %3707
    %3709 = vrot.lane.b32.xlu0 %v3575, 111
    %v3710 = vpop.permute.xlu0 %3709
    %3711 = vrot.lane.b32.xlu0 %v3577, 111
    %v3712 = vpop.permute.xlu0 %3711
    %vm3713 = vcmp.lt.s32.totalorder %v64, 111
    %v3714 = vsel %vm3713, %v3710, %v3712
    %v3715 = vsel %vm3713, %v3708, %v3710
    %v3716 = vsel %vm3713, %v3706, %v3708
    %v3717 = vsel %vm3713, %v3712, %v3706
    %v3718 = vadd.f32 %v3665, %v3716
    %v3719 = vadd.f32 %v3666, %v3715
    %v3720 = vadd.f32 %v3667, %v3714
    %v3721 = vadd.f32 %v3668, %v3717
    %v3722 = vld [vmem:[#allocation3 + $0x100] sm:$0xff]
    %v3723 = vld [vmem:[#allocation3 + $0x108] sm:$0xff]
    %v3724 = vld [vmem:[#allocation3 + $0x110] sm:$0xff]
    %v3725 = vld [vmem:[#allocation3 + $0x118] sm:$0xff]
    %v3726 = vld [vmem:[#allocation3 + $0x120] sm:$0xff]
    %v3727 = vld [vmem:[#allocation3 + $0x128] sm:$0xff]
    %v3728 = vld [vmem:[#allocation3 + $0x130] sm:$0xff]
    %v3729 = vld [vmem:[#allocation3 + $0x138] sm:$0xff]
    %v3730 = vld [vmem:[#allocation3 + $0x140] sm:$0xff]
    %v3731 = vld [vmem:[#allocation3 + $0x148] sm:$0xff]
    %v3732 = vld [vmem:[#allocation3 + $0x150] sm:$0xff]
    %v3733 = vld [vmem:[#allocation3 + $0x158] sm:$0xff]
    %v3734 = vld [vmem:[#allocation3 + $0x160] sm:$0xff]
    %v3735 = vld [vmem:[#allocation3 + $0x168] sm:$0xff]
    %v3736 = vld [vmem:[#allocation3 + $0x170] sm:$0xff]
    %v3737 = vld [vmem:[#allocation3 + $0x178] sm:$0xff]
    %v3738 = vld [vmem:[#allocation3 + $0x180] sm:$0xff]
    %v3739 = vld [vmem:[#allocation3 + $0x188] sm:$0xff]
    %v3740 = vld [vmem:[#allocation3 + $0x190] sm:$0xff]
    %v3741 = vld [vmem:[#allocation3 + $0x198] sm:$0xff]
    %v3742 = vld [vmem:[#allocation3 + $0x1a0] sm:$0xff]
    %v3743 = vld [vmem:[#allocation3 + $0x1a8] sm:$0xff]
    %v3744 = vld [vmem:[#allocation3 + $0x1b0] sm:$0xff]
    %v3745 = vld [vmem:[#allocation3 + $0x1b8] sm:$0xff]
    %v3746 = vld [vmem:[#allocation3 + $0x1c0] sm:$0xff]
    %v3747 = vld [vmem:[#allocation3 + $0x1c8] sm:$0xff]
    %v3748 = vld [vmem:[#allocation3 + $0x1d0] sm:$0xff]
    %v3749 = vld [vmem:[#allocation3 + $0x1d8] sm:$0xff]
    %v3750 = vld [vmem:[#allocation3 + $0x1e0] sm:$0xff]
    %v3751 = vld [vmem:[#allocation3 + $0x1e8] sm:$0xff]
    %v3752 = vld [vmem:[#allocation3 + $0x1f0] sm:$0xff]
    %v3753 = vld [vmem:[#allocation3 + $0x1f8] sm:$0xff]
    %v3754 = vmul.f32 %v3722, %v3244
    %v3755 = vmul.f32 %v3723, %v3244
    %v3756 = vmul.f32 %v3724, %v3244
    %v3757 = vmul.f32 %v3725, %v3244
    %v3758 = vmul.f32 %v3726, %v3249
    %v3759 = vmul.f32 %v3727, %v3249
    %v3760 = vmul.f32 %v3728, %v3249
    %v3761 = vmul.f32 %v3729, %v3249
    %v3762 = vmul.f32 %v3730, %v3254
    %v3763 = vmul.f32 %v3731, %v3254
    %v3764 = vmul.f32 %v3732, %v3254
    %v3765 = vmul.f32 %v3733, %v3254
    %v3766 = vmul.f32 %v3734, %v3259
    %v3767 = vmul.f32 %v3735, %v3259
    %v3768 = vmul.f32 %v3736, %v3259
    %v3769 = vmul.f32 %v3737, %v3259
    %v3770 = vmul.f32 %v3738, %v3264
    %v3771 = vmul.f32 %v3739, %v3264
    %v3772 = vmul.f32 %v3740, %v3264
    %v3773 = vmul.f32 %v3741, %v3264
    %v3774 = vmul.f32 %v3742, %v3269
    %v3775 = vmul.f32 %v3743, %v3269
    %v3776 = vmul.f32 %v3744, %v3269
    %v3777 = vmul.f32 %v3745, %v3269
    %v3778 = vmul.f32 %v3746, %v3274
    %v3779 = vmul.f32 %v3747, %v3274
    %v3780 = vmul.f32 %v3748, %v3274
    %v3781 = vmul.f32 %v3749, %v3274
    %v3782 = vmul.f32 %v3750, %v3279
    %v3783 = vmul.f32 %v3751, %v3279
    %v3784 = vmul.f32 %v3752, %v3279
    %v3785 = vmul.f32 %v3753, %v3279
    %v3786 = vadd.f32 %v3754, %v3316
    %v3787 = vadd.f32 %v3755, %v3316
    %v3788 = vadd.f32 %v3756, %v3316
    %v3789 = vadd.f32 %v3757, %v3316
    %v3790 = vadd.f32 %v3758, %v3321
    %v3791 = vadd.f32 %v3759, %v3321
    %v3792 = vadd.f32 %v3760, %v3321
    %v3793 = vadd.f32 %v3761, %v3321
    %v3794 = vadd.f32 %v3762, %v3326
    %v3795 = vadd.f32 %v3763, %v3326
    %v3796 = vadd.f32 %v3764, %v3326
    %v3797 = vadd.f32 %v3765, %v3326
    %v3798 = vadd.f32 %v3766, %v3331
    %v3799 = vadd.f32 %v3767, %v3331
    %v3800 = vadd.f32 %v3768, %v3331
    %v3801 = vadd.f32 %v3769, %v3331
    %v3802 = vadd.f32 %v3770, %v3336
    %v3803 = vadd.f32 %v3771, %v3336
    %v3804 = vadd.f32 %v3772, %v3336
    %v3805 = vadd.f32 %v3773, %v3336
    %v3806 = vadd.f32 %v3774, %v3341
    %v3807 = vadd.f32 %v3775, %v3341
    %v3808 = vadd.f32 %v3776, %v3341
    %v3809 = vadd.f32 %v3777, %v3341
    %v3810 = vadd.f32 %v3778, %v3346
    %v3811 = vadd.f32 %v3779, %v3346
    %v3812 = vadd.f32 %v3780, %v3346
    %v3813 = vadd.f32 %v3781, %v3346
    %v3814 = vadd.f32 %v3782, %v3351
    %v3815 = vadd.f32 %v3783, %v3351
    %v3816 = vadd.f32 %v3784, %v3351
    %v3817 = vadd.f32 %v3785, %v3351
    %v3818 = vsel %vm1236, %v3786, 0.0
    %v3819 = vsel %vm1237, %v3787, 0.0
    %v3820 = vsel %vm1238, %v3788, 0.0
    %v3821 = vsel %vm1239, %v3789, 0.0
    %v3822 = vsel %vm1236, %v3790, 0.0
    %v3823 = vsel %vm1237, %v3791, 0.0
    %v3824 = vsel %vm1238, %v3792, 0.0
    %v3825 = vsel %vm1239, %v3793, 0.0
    %v3826 = vsel %vm1236, %v3794, 0.0
    %v3827 = vsel %vm1237, %v3795, 0.0
    %v3828 = vsel %vm1238, %v3796, 0.0
    %v3829 = vsel %vm1239, %v3797, 0.0
    %v3830 = vsel %vm1236, %v3798, 0.0
    %v3831 = vsel %vm1237, %v3799, 0.0
    %v3832 = vsel %vm1238, %v3800, 0.0
    %v3833 = vsel %vm1239, %v3801, 0.0
    %v3834 = vsel %vm1236, %v3802, 0.0
    %v3835 = vsel %vm1237, %v3803, 0.0
    %v3836 = vsel %vm1238, %v3804, 0.0
    %v3837 = vsel %vm1239, %v3805, 0.0
    %v3838 = vsel %vm1236, %v3806, 0.0
    %v3839 = vsel %vm1237, %v3807, 0.0
    %v3840 = vsel %vm1238, %v3808, 0.0
    %v3841 = vsel %vm1239, %v3809, 0.0
    %v3842 = vsel %vm1236, %v3810, 0.0
    %v3843 = vsel %vm1237, %v3811, 0.0
    %v3844 = vsel %vm1238, %v3812, 0.0
    %v3845 = vsel %vm1239, %v3813, 0.0
    %v3846 = vsel %vm1236, %v3814, 0.0
    %v3847 = vsel %vm1237, %v3815, 0.0
    %v3848 = vsel %vm1238, %v3816, 0.0
    %v3849 = vsel %vm1239, %v3817, 0.0
    %3850 = vmatprep.subr.mxu0 %v3819
    %3851 = vmatpush1.msra.mxu0 %v3818
    %3852 = vmatprep.subr.mxu0 %v3823
    %3853 = vmatpush1.msra.mxu0 %v3822
    %3854 = vmatprep.subr.mxu0 %v3827
    %3855 = vmatpush1.msra.mxu0 %v3826
    %3856 = vmatprep.subr.mxu0 %v3831
    %3857 = vmatpush1.msra.mxu0 %v3830
    %3858 = vmatprep.subr.mxu0 %v3835
    %3859 = vmatpush1.msra.mxu0 %v3834
    %3860 = vmatprep.subr.mxu0 %v3839
    %3861 = vmatpush1.msra.mxu0 %v3838
    %3862 = vmatprep.subr.mxu0 %v3843
    %3863 = vmatpush1.msra.mxu0 %v3842
    %3864 = vmatprep.subr.mxu0 %v3847
    %3865 = vmatpush1.msra.mxu0 %v3846
    %3866 = vmatprep.subr.mxu0 0.0
    %3867 = vmatpush1.msra.mxu0 0.0
    %3868 = vmatprep.subr.mxu0 0.0
    %3869 = vmatpush1.msra.mxu0 0.0
    %3870 = vmatprep.subr.mxu0 0.0
    %3871 = vmatpush1.msra.mxu0 0.0
    %3872 = vmatprep.subr.mxu0 0.0
    %3873 = vmatpush1.msra.mxu0 0.0
    %3874 = vmatprep.subr.mxu0 0.0
    %3875 = vmatpush1.msra.mxu0 0.0
    %3876 = vmatprep.subr.mxu0 0.0
    %3877 = vmatpush1.msra.mxu0 0.0
    %3878 = vmatprep.subr.mxu0 0.0
    %3879 = vmatpush1.msra.mxu0 0.0
    %3880 = vmatprep.subr.mxu0 0.0
    %3881 = vmatpush1.msra.mxu0 0.0
    %3882 = vmatprep.subr.mxu0 0.0
    %3883 = vmatpush1.msra.mxu0 0.0
    %3884 = vmatprep.subr.mxu0 0.0
    %3885 = vmatpush1.msra.mxu0 0.0
    %3886 = vmatprep.subr.mxu0 0.0
    %3887 = vmatpush1.msra.mxu0 0.0
    %3888 = vmatprep.subr.mxu0 0.0
    %3889 = vmatpush1.msra.mxu0 0.0
    %3890 = vmatprep.subr.mxu0 0.0
    %3891 = vmatpush1.msra.mxu0 0.0
    %3892 = vmatprep.subr.mxu0 0.0
    %3893 = vmatpush1.msra.mxu0 0.0
    %3894 = vmatprep.subr.mxu0 0.0
    %3895 = vmatpush1.msra.mxu0 0.0
    %3896 = vmatprep.subr.mxu0 0.0
    %3897 = vmatpush1.msra.mxu0 0.0
    %3898 = vmatprep.subr.mxu0 0.0
    %3899 = vmatpush1.msra.mxu0 0.0
    %3900 = vmatprep.subr.mxu0 0.0
    %3901 = vmatpush1.msra.mxu0 0.0
    %3902 = vmatprep.subr.mxu0 0.0
    %3903 = vmatpush1.msra.mxu0 0.0
    %3904 = vmatprep.subr.mxu0 0.0
    %3905 = vmatpush1.msra.mxu0 0.0
    %3906 = vmatprep.subr.mxu0 0.0
    %3907 = vmatpush1.msra.mxu0 0.0
    %3908 = vmatprep.subr.mxu0 0.0
    %3909 = vmatpush1.msra.mxu0 0.0
    %3910 = vmatprep.subr.mxu0 0.0
    %3911 = vmatpush1.msra.mxu0 0.0
    %3912 = vmatprep.subr.mxu0 0.0
    %3913 = vmatpush1.msra.mxu0 0.0
    %3914 = vmatprep.mubr.f32.mxu0 0.0
    %3915 = vmatmul.mubr.f32.gmra.mrb[0].mxu0 %v3420
    %v3916 = vpop.f32.mrb[0].mxu0
    %v3917 = vadd.f32 0.0, %v3916
    %v3918 = vpop.f32.mrb[0].mxu0
    %v3919 = vadd.f32 0.0, %v3918
    %3920 = vmatprep.mubr.f32.mxu0 0.0
    %3921 = vmatmul.mubr.f32.gmra.mrb[0].mxu0 %v3423
    %v3922 = vpop.f32.mrb[0].mxu0
    %v3923 = vadd.f32 0.0, %v3922
    %v3924 = vpop.f32.mrb[0].mxu0
    %v3925 = vadd.f32 0.0, %v3924
    %3926 = vdwg.mxu0
    %3927 = vmatprep.subr.mxu0 %v3821
    %3928 = vmatpush1.msra.mxu0 %v3820
    %3929 = vmatprep.subr.mxu0 %v3825
    %3930 = vmatpush1.msra.mxu0 %v3824
    %3931 = vmatprep.subr.mxu0 %v3829
    %3932 = vmatpush1.msra.mxu0 %v3828
    %3933 = vmatprep.subr.mxu0 %v3833
    %3934 = vmatpush1.msra.mxu0 %v3832
    %3935 = vmatprep.subr.mxu0 %v3837
    %3936 = vmatpush1.msra.mxu0 %v3836
    %3937 = vmatprep.subr.mxu0 %v3841
    %3938 = vmatpush1.msra.mxu0 %v3840
    %3939 = vmatprep.subr.mxu0 %v3845
    %3940 = vmatpush1.msra.mxu0 %v3844
    %3941 = vmatprep.subr.mxu0 %v3849
    %3942 = vmatpush1.msra.mxu0 %v3848
    %3943 = vmatprep.subr.mxu0 0.0
    %3944 = vmatpush1.msra.mxu0 0.0
    %3945 = vmatprep.subr.mxu0 0.0
    %3946 = vmatpush1.msra.mxu0 0.0
    %3947 = vmatprep.subr.mxu0 0.0
    %3948 = vmatpush1.msra.mxu0 0.0
    %3949 = vmatprep.subr.mxu0 0.0
    %3950 = vmatpush1.msra.mxu0 0.0
    %3951 = vmatprep.subr.mxu0 0.0
    %3952 = vmatpush1.msra.mxu0 0.0
    %3953 = vmatprep.subr.mxu0 0.0
    %3954 = vmatpush1.msra.mxu0 0.0
    %3955 = vmatprep.subr.mxu0 0.0
    %3956 = vmatpush1.msra.mxu0 0.0
    %3957 = vmatprep.subr.mxu0 0.0
    %3958 = vmatpush1.msra.mxu0 0.0
    %3959 = vmatprep.subr.mxu0 0.0
    %3960 = vmatpush1.msra.mxu0 0.0
    %3961 = vmatprep.subr.mxu0 0.0
    %3962 = vmatpush1.msra.mxu0 0.0
    %3963 = vmatprep.subr.mxu0 0.0
    %3964 = vmatpush1.msra.mxu0 0.0
    %3965 = vmatprep.subr.mxu0 0.0
    %3966 = vmatpush1.msra.mxu0 0.0
    %3967 = vmatprep.subr.mxu0 0.0
    %3968 = vmatpush1.msra.mxu0 0.0
    %3969 = vmatprep.subr.mxu0 0.0
    %3970 = vmatpush1.msra.mxu0 0.0
    %3971 = vmatprep.subr.mxu0 0.0
    %3972 = vmatpush1.msra.mxu0 0.0
    %3973 = vmatprep.subr.mxu0 0.0
    %3974 = vmatpush1.msra.mxu0 0.0
    %3975 = vmatprep.subr.mxu0 0.0
    %3976 = vmatpush1.msra.mxu0 0.0
    %3977 = vmatprep.subr.mxu0 0.0
    %3978 = vmatpush1.msra.mxu0 0.0
    %3979 = vmatprep.subr.mxu0 0.0
    %3980 = vmatpush1.msra.mxu0 0.0
    %3981 = vmatprep.subr.mxu0 0.0
    %3982 = vmatpush1.msra.mxu0 0.0
    %3983 = vmatprep.subr.mxu0 0.0
    %3984 = vmatpush1.msra.mxu0 0.0
    %3985 = vmatprep.subr.mxu0 0.0
    %3986 = vmatpush1.msra.mxu0 0.0
    %3987 = vmatprep.subr.mxu0 0.0
    %3988 = vmatpush1.msra.mxu0 0.0
    %3989 = vmatprep.subr.mxu0 0.0
    %3990 = vmatpush1.msra.mxu0 0.0
    %3991 = vmatprep.mubr.f32.mxu0 0.0
    %3992 = vmatmul.mubr.f32.gmra.mrb[0].mxu0 %v3420
    %v3993 = vpop.f32.mrb[0].mxu0
    %v3994 = vadd.f32 0.0, %v3993
    %v3995 = vpop.f32.mrb[0].mxu0
    %v3996 = vadd.f32 0.0, %v3995
    %3997 = vmatprep.mubr.f32.mxu0 0.0
    %3998 = vmatmul.mubr.f32.gmra.mrb[0].mxu0 %v3423
    %v3999 = vpop.f32.mrb[0].mxu0
    %v4000 = vadd.f32 0.0, %v3999
    %v4001 = vpop.f32.mrb[0].mxu0
    %v4002 = vadd.f32 0.0, %v4001
    %4003 = vdwg.mxu0
    %4004 = vrot.lane.b32.xlu0 %v3917, 1
    %v4005 = vpop.permute.xlu0 %4004
    %4006 = vrot.lane.b32.xlu0 %v3919, 1
    %v4007 = vpop.permute.xlu0 %4006
    %4008 = vrot.lane.b32.xlu0 %v3994, 1
    %v4009 = vpop.permute.xlu0 %4008
    %4010 = vrot.lane.b32.xlu0 %v3996, 1
    %v4011 = vpop.permute.xlu0 %4010
    %vm4012 = vcmp.lt.s32.totalorder %v64, 1
    %v4013 = vsel %vm4012, %v4009, %v4011
    %v4014 = vsel %vm4012, %v4007, %v4009
    %v4015 = vsel %vm4012, %v4005, %v4007
    %v4016 = vsel %vm4012, %v4011, %v4005
    %v4021 = vrot.slane %v4016, 7
    %v4022 = vrot.slane %v4015, 7
    %v4023 = vrot.slane %v4014, 7
    %v4024 = vrot.slane %v4013, 7
    %v4029 = vadd.f32 %v3701, %v4021
    %v4030 = vadd.f32 %v3702, %v4022
    %v4031 = vadd.f32 %v3703, %v4023
    %v4032 = vadd.f32 %v3704, %v4024
    %v4037 = vrot.slane %v3917, 1
    %v4038 = vrot.slane %v3919, 1
    %v4039 = vrot.slane %v3994, 1
    %v4040 = vrot.slane %v3996, 1
    %v4045 = vadd.f32 %v3718, %v4037
    %v4046 = vadd.f32 %v3719, %v4038
    %v4047 = vadd.f32 %v3720, %v4039
    %v4048 = vadd.f32 %v3721, %v4040
    %v4049 = vadd.f32 %v4029, %v4037
    %v4050 = vadd.f32 %v4030, %v4038
    %v4051 = vadd.f32 %v4031, %v4039
    %v4052 = vadd.f32 %v4032, %v4040
    %v4053 = vrot.slane %v3917, 3
    %v4054 = vrot.slane %v3919, 3
    %v4055 = vrot.slane %v3994, 3
    %v4056 = vrot.slane %v3996, 3
    %4061 = vrot.lane.b32.xlu0 %v4053, 1
    %v4062 = vpop.permute.xlu0 %4061
    %4063 = vrot.lane.b32.xlu0 %v4054, 1
    %v4064 = vpop.permute.xlu0 %4063
    %4065 = vrot.lane.b32.xlu0 %v4055, 1
    %v4066 = vpop.permute.xlu0 %4065
    %4067 = vrot.lane.b32.xlu0 %v4056, 1
    %v4068 = vpop.permute.xlu0 %4067
    %v4069 = vsel %vm4012, %v4066, %v4068
    %v4070 = vsel %vm4012, %v4064, %v4066
    %v4071 = vsel %vm4012, %v4062, %v4064
    %v4072 = vsel %vm4012, %v4068, %v4062
    %v4077 = vrot.slane %v4072, 4
    %v4078 = vrot.slane %v4071, 4
    %v4079 = vrot.slane %v4070, 4
    %v4080 = vrot.slane %v4069, 4
    %v4085 = vadd.f32 %v3492, %v4077
    %v4086 = vadd.f32 %v3494, %v4078
    %v4087 = vadd.f32 %v3569, %v4079
    %v4088 = vadd.f32 %v3571, %v4080
    %v4089 = vadd.f32 %v3640, %v4037
    %v4090 = vadd.f32 %v3641, %v4038
    %v4091 = vadd.f32 %v3642, %v4039
    %v4092 = vadd.f32 %v3643, %v4040
    %v4093 = vadd.f32 %v4085, %v4037
    %v4094 = vadd.f32 %v4086, %v4038
    %v4095 = vadd.f32 %v4087, %v4039
    %v4096 = vadd.f32 %v4088, %v4040
    %v4097 = vrot.slane %v3917, 6
    %v4098 = vrot.slane %v3919, 6
    %v4099 = vrot.slane %v3994, 6
    %v4100 = vrot.slane %v3996, 6
    %4105 = vrot.lane.b32.xlu0 %v4097, 113
    %v4106 = vpop.permute.xlu0 %4105
    %4107 = vrot.lane.b32.xlu0 %v4098, 113
    %v4108 = vpop.permute.xlu0 %4107
    %4109 = vrot.lane.b32.xlu0 %v4099, 113
    %v4110 = vpop.permute.xlu0 %4109
    %4111 = vrot.lane.b32.xlu0 %v4100, 113
    %v4112 = vpop.permute.xlu0 %4111
    %vm4113 = vcmp.lt.s32.totalorder %v64, 113
    %v4114 = vsel %vm4113, %v4110, %v4112
    %v4115 = vsel %vm4113, %v4108, %v4110
    %v4116 = vsel %vm4113, %v4106, %v4108
    %v4117 = vsel %vm4113, %v4112, %v4106
    %v4122 = vrot.slane %v4116, 7
    %v4123 = vrot.slane %v4115, 7
    %v4124 = vrot.slane %v4114, 7
    %v4125 = vrot.slane %v4117, 7
    %v4130 = vadd.f32 %v4049, %v4122
    %v4131 = vadd.f32 %v4050, %v4123
    %v4132 = vadd.f32 %v4051, %v4124
    %v4133 = vadd.f32 %v4052, %v4125
    %v4134 = vrot.slane %v3917, 7
    %v4135 = vrot.slane %v3919, 7
    %v4136 = vrot.slane %v3994, 7
    %v4137 = vrot.slane %v3996, 7
    %4142 = vrot.lane.b32.xlu0 %v4134, 112
    %v4143 = vpop.permute.xlu0 %4142
    %4144 = vrot.lane.b32.xlu0 %v4135, 112
    %v4145 = vpop.permute.xlu0 %4144
    %4146 = vrot.lane.b32.xlu0 %v4136, 112
    %v4147 = vpop.permute.xlu0 %4146
    %4148 = vrot.lane.b32.xlu0 %v4137, 112
    %v4149 = vpop.permute.xlu0 %4148
    %v4150 = vsel %vm3660, %v4147, %v4149
    %v4151 = vsel %vm3660, %v4145, %v4147
    %v4152 = vsel %vm3660, %v4143, %v4145
    %v4153 = vsel %vm3660, %v4149, %v4143
    %v4154 = vadd.f32 %v4045, %v4152
    %v4155 = vadd.f32 %v4046, %v4151
    %v4156 = vadd.f32 %v4047, %v4150
    %v4157 = vadd.f32 %v4048, %v4153
    %4158 = vrot.lane.b32.xlu0 %v3923, 112
    %v4159 = vpop.permute.xlu0 %4158
    %4160 = vrot.lane.b32.xlu0 %v3925, 112
    %v4161 = vpop.permute.xlu0 %4160
    %4162 = vrot.lane.b32.xlu0 %v4000, 112
    %v4163 = vpop.permute.xlu0 %4162
    %4164 = vrot.lane.b32.xlu0 %v4002, 112
    %v4165 = vpop.permute.xlu0 %4164
    %v4166 = vsel %vm3660, %v4163, %v4165
    %v4167 = vsel %vm3660, %v4161, %v4163
    %v4168 = vsel %vm3660, %v4159, %v4161
    %v4169 = vsel %vm3660, %v4165, %v4159
    %v4174 = vrot.slane %v4168, 7
    %v4175 = vrot.slane %v4167, 7
    %v4176 = vrot.slane %v4166, 7
    %v4177 = vrot.slane %v4169, 7
    %v4182 = vadd.f32 %v4130, %v4174
    %v4183 = vadd.f32 %v4131, %v4175
    %v4184 = vadd.f32 %v4132, %v4176
    %v4185 = vadd.f32 %v4133, %v4177
    %v4186 = vld [vmem:[#allocation3 + $0x200] sm:$0xff]
    %v4187 = vld [vmem:[#allocation3 + $0x208] sm:$0xff]
    %v4188 = vld [vmem:[#allocation3 + $0x210] sm:$0xff]
    %v4189 = vld [vmem:[#allocation3 + $0x218] sm:$0xff]
    %v4190 = vld [vmem:[#allocation3 + $0x220] sm:$0xff]
    %v4191 = vld [vmem:[#allocation3 + $0x228] sm:$0xff]
    %v4192 = vld [vmem:[#allocation3 + $0x230] sm:$0xff]
    %v4193 = vld [vmem:[#allocation3 + $0x238] sm:$0xff]
    %v4194 = vld [vmem:[#allocation3 + $0x240] sm:$0xff]
    %v4195 = vld [vmem:[#allocation3 + $0x248] sm:$0xff]
    %v4196 = vld [vmem:[#allocation3 + $0x250] sm:$0xff]
    %v4197 = vld [vmem:[#allocation3 + $0x258] sm:$0xff]
    %v4198 = vld [vmem:[#allocation3 + $0x260] sm:$0xff]
    %v4199 = vld [vmem:[#allocation3 + $0x268] sm:$0xff]
    %v4200 = vld [vmem:[#allocation3 + $0x270] sm:$0xff]
    %v4201 = vld [vmem:[#allocation3 + $0x278] sm:$0xff]
    %v4202 = vld [vmem:[#allocation3 + $0x280] sm:$0xff]
    %v4203 = vld [vmem:[#allocation3 + $0x288] sm:$0xff]
    %v4204 = vld [vmem:[#allocation3 + $0x290] sm:$0xff]
    %v4205 = vld [vmem:[#allocation3 + $0x298] sm:$0xff]
    %v4206 = vld [vmem:[#allocation3 + $0x2a0] sm:$0xff]
    %v4207 = vld [vmem:[#allocation3 + $0x2a8] sm:$0xff]
    %v4208 = vld [vmem:[#allocation3 + $0x2b0] sm:$0xff]
    %v4209 = vld [vmem:[#allocation3 + $0x2b8] sm:$0xff]
    %v4210 = vld [vmem:[#allocation3 + $0x2c0] sm:$0xff]
    %v4211 = vld [vmem:[#allocation3 + $0x2c8] sm:$0xff]
    %v4212 = vld [vmem:[#allocation3 + $0x2d0] sm:$0xff]
    %v4213 = vld [vmem:[#allocation3 + $0x2d8] sm:$0xff]
    %v4214 = vld [vmem:[#allocation3 + $0x2e0] sm:$0xff]
    %v4215 = vld [vmem:[#allocation3 + $0x2e8] sm:$0xff]
    %v4216 = vld [vmem:[#allocation3 + $0x2f0] sm:$0xff]
    %v4217 = vld [vmem:[#allocation3 + $0x2f8] sm:$0xff]
    %v4218 = vmul.f32 %v4186, %v3244
    %v4219 = vmul.f32 %v4187, %v3244
    %v4220 = vmul.f32 %v4188, %v3244
    %v4221 = vmul.f32 %v4189, %v3244
    %v4222 = vmul.f32 %v4190, %v3249
    %v4223 = vmul.f32 %v4191, %v3249
    %v4224 = vmul.f32 %v4192, %v3249
    %v4225 = vmul.f32 %v4193, %v3249
    %v4226 = vmul.f32 %v4194, %v3254
    %v4227 = vmul.f32 %v4195, %v3254
    %v4228 = vmul.f32 %v4196, %v3254
    %v4229 = vmul.f32 %v4197, %v3254
    %v4230 = vmul.f32 %v4198, %v3259
    %v4231 = vmul.f32 %v4199, %v3259
    %v4232 = vmul.f32 %v4200, %v3259
    %v4233 = vmul.f32 %v4201, %v3259
    %v4234 = vmul.f32 %v4202, %v3264
    %v4235 = vmul.f32 %v4203, %v3264
    %v4236 = vmul.f32 %v4204, %v3264
    %v4237 = vmul.f32 %v4205, %v3264
    %v4238 = vmul.f32 %v4206, %v3269
    %v4239 = vmul.f32 %v4207, %v3269
    %v4240 = vmul.f32 %v4208, %v3269
    %v4241 = vmul.f32 %v4209, %v3269
    %v4242 = vmul.f32 %v4210, %v3274
    %v4243 = vmul.f32 %v4211, %v3274
    %v4244 = vmul.f32 %v4212, %v3274
    %v4245 = vmul.f32 %v4213, %v3274
    %v4246 = vmul.f32 %v4214, %v3279
    %v4247 = vmul.f32 %v4215, %v3279
    %v4248 = vmul.f32 %v4216, %v3279
    %v4249 = vmul.f32 %v4217, %v3279
    %v4250 = vadd.f32 %v4218, %v3316
    %v4251 = vadd.f32 %v4219, %v3316
    %v4252 = vadd.f32 %v4220, %v3316
    %v4253 = vadd.f32 %v4221, %v3316
    %v4254 = vadd.f32 %v4222, %v3321
    %v4255 = vadd.f32 %v4223, %v3321
    %v4256 = vadd.f32 %v4224, %v3321
    %v4257 = vadd.f32 %v4225, %v3321
    %v4258 = vadd.f32 %v4226, %v3326
    %v4259 = vadd.f32 %v4227, %v3326
    %v4260 = vadd.f32 %v4228, %v3326
    %v4261 = vadd.f32 %v4229, %v3326
    %v4262 = vadd.f32 %v4230, %v3331
    %v4263 = vadd.f32 %v4231, %v3331
    %v4264 = vadd.f32 %v4232, %v3331
    %v4265 = vadd.f32 %v4233, %v3331
    %v4266 = vadd.f32 %v4234, %v3336
    %v4267 = vadd.f32 %v4235, %v3336
    %v4268 = vadd.f32 %v4236, %v3336
    %v4269 = vadd.f32 %v4237, %v3336
    %v4270 = vadd.f32 %v4238, %v3341
    %v4271 = vadd.f32 %v4239, %v3341
    %v4272 = vadd.f32 %v4240, %v3341
    %v4273 = vadd.f32 %v4241, %v3341
    %v4274 = vadd.f32 %v4242, %v3346
    %v4275 = vadd.f32 %v4243, %v3346
    %v4276 = vadd.f32 %v4244, %v3346
    %v4277 = vadd.f32 %v4245, %v3346
    %v4278 = vadd.f32 %v4246, %v3351
    %v4279 = vadd.f32 %v4247, %v3351
    %v4280 = vadd.f32 %v4248, %v3351
    %v4281 = vadd.f32 %v4249, %v3351
    %v4282 = vsel %vm1236, %v4250, 0.0
    %v4283 = vsel %vm1237, %v4251, 0.0
    %v4284 = vsel %vm1238, %v4252, 0.0
    %v4285 = vsel %vm1239, %v4253, 0.0
    %v4286 = vsel %vm1236, %v4254, 0.0
    %v4287 = vsel %vm1237, %v4255, 0.0
    %v4288 = vsel %vm1238, %v4256, 0.0
    %v4289 = vsel %vm1239, %v4257, 0.0
    %v4290 = vsel %vm1236, %v4258, 0.0
    %v4291 = vsel %vm1237, %v4259, 0.0
    %v4292 = vsel %vm1238, %v4260, 0.0
    %v4293 = vsel %vm1239, %v4261, 0.0
    %v4294 = vsel %vm1236, %v4262, 0.0
    %v4295 = vsel %vm1237, %v4263, 0.0
    %v4296 = vsel %vm1238, %v4264, 0.0
    %v4297 = vsel %vm1239, %v4265, 0.0
    %v4298 = vsel %vm1236, %v4266, 0.0
    %v4299 = vsel %vm1237, %v4267, 0.0
    %v4300 = vsel %vm1238, %v4268, 0.0
    %v4301 = vsel %vm1239, %v4269, 0.0
    %v4302 = vsel %vm1236, %v4270, 0.0
    %v4303 = vsel %vm1237, %v4271, 0.0
    %v4304 = vsel %vm1238, %v4272, 0.0
    %v4305 = vsel %vm1239, %v4273, 0.0
    %v4306 = vsel %vm1236, %v4274, 0.0
    %v4307 = vsel %vm1237, %v4275, 0.0
    %v4308 = vsel %vm1238, %v4276, 0.0
    %v4309 = vsel %vm1239, %v4277, 0.0
    %v4310 = vsel %vm1236, %v4278, 0.0
    %v4311 = vsel %vm1237, %v4279, 0.0
    %v4312 = vsel %vm1238, %v4280, 0.0
    %v4313 = vsel %vm1239, %v4281, 0.0
    %4314 = vmatprep.subr.mxu0 %v4283
    %4315 = vmatpush1.msra.mxu0 %v4282
    %4316 = vmatprep.subr.mxu0 %v4287
    %4317 = vmatpush1.msra.mxu0 %v4286
    %4318 = vmatprep.subr.mxu0 %v4291
    %4319 = vmatpush1.msra.mxu0 %v4290
    %4320 = vmatprep.subr.mxu0 %v4295
    %4321 = vmatpush1.msra.mxu0 %v4294
    %4322 = vmatprep.subr.mxu0 %v4299
    %4323 = vmatpush1.msra.mxu0 %v4298
    %4324 = vmatprep.subr.mxu0 %v4303
    %4325 = vmatpush1.msra.mxu0 %v4302
    %4326 = vmatprep.subr.mxu0 %v4307
    %4327 = vmatpush1.msra.mxu0 %v4306
    %4328 = vmatprep.subr.mxu0 %v4311
    %4329 = vmatpush1.msra.mxu0 %v4310
    %4330 = vmatprep.subr.mxu0 0.0
    %4331 = vmatpush1.msra.mxu0 0.0
    %4332 = vmatprep.subr.mxu0 0.0
    %4333 = vmatpush1.msra.mxu0 0.0
    %4334 = vmatprep.subr.mxu0 0.0
    %4335 = vmatpush1.msra.mxu0 0.0
    %4336 = vmatprep.subr.mxu0 0.0
    %4337 = vmatpush1.msra.mxu0 0.0
    %4338 = vmatprep.subr.mxu0 0.0
    %4339 = vmatpush1.msra.mxu0 0.0
    %4340 = vmatprep.subr.mxu0 0.0
    %4341 = vmatpush1.msra.mxu0 0.0
    %4342 = vmatprep.subr.mxu0 0.0
    %4343 = vmatpush1.msra.mxu0 0.0
    %4344 = vmatprep.subr.mxu0 0.0
    %4345 = vmatpush1.msra.mxu0 0.0
    %4346 = vmatprep.subr.mxu0 0.0
    %4347 = vmatpush1.msra.mxu0 0.0
    %4348 = vmatprep.subr.mxu0 0.0
    %4349 = vmatpush1.msra.mxu0 0.0
    %4350 = vmatprep.subr.mxu0 0.0
    %4351 = vmatpush1.msra.mxu0 0.0
    %4352 = vmatprep.subr.mxu0 0.0
    %4353 = vmatpush1.msra.mxu0 0.0
    %4354 = vmatprep.subr.mxu0 0.0
    %4355 = vmatpush1.msra.mxu0 0.0
    %4356 = vmatprep.subr.mxu0 0.0
    %4357 = vmatpush1.msra.mxu0 0.0
    %4358 = vmatprep.subr.mxu0 0.0
    %4359 = vmatpush1.msra.mxu0 0.0
    %4360 = vmatprep.subr.mxu0 0.0
    %4361 = vmatpush1.msra.mxu0 0.0
    %4362 = vmatprep.subr.mxu0 0.0
    %4363 = vmatpush1.msra.mxu0 0.0
    %4364 = vmatprep.subr.mxu0 0.0
    %4365 = vmatpush1.msra.mxu0 0.0
    %4366 = vmatprep.subr.mxu0 0.0
    %4367 = vmatpush1.msra.mxu0 0.0
    %4368 = vmatprep.subr.mxu0 0.0
    %4369 = vmatpush1.msra.mxu0 0.0
    %4370 = vmatprep.subr.mxu0 0.0
    %4371 = vmatpush1.msra.mxu0 0.0
    %4372 = vmatprep.subr.mxu0 0.0
    %4373 = vmatpush1.msra.mxu0 0.0
    %4374 = vmatprep.subr.mxu0 0.0
    %4375 = vmatpush1.msra.mxu0 0.0
    %4376 = vmatprep.subr.mxu0 0.0
    %4377 = vmatpush1.msra.mxu0 0.0
    %4378 = vmatprep.mubr.f32.mxu0 0.0
    %4379 = vmatmul.mubr.f32.gmra.mrb[0].mxu0 %v3420
    %v4380 = vpop.f32.mrb[0].mxu0
    %v4381 = vadd.f32 0.0, %v4380
    %v4382 = vpop.f32.mrb[0].mxu0
    %v4383 = vadd.f32 0.0, %v4382
    %4384 = vmatprep.mubr.f32.mxu0 0.0
    %4385 = vmatmul.mubr.f32.gmra.mrb[0].mxu0 %v3423
    %v4386 = vpop.f32.mrb[0].mxu0
    %v4387 = vadd.f32 0.0, %v4386
    %v4388 = vpop.f32.mrb[0].mxu0
    %v4389 = vadd.f32 0.0, %v4388
    %4390 = vdwg.mxu0
    %4391 = vmatprep.subr.mxu0 %v4285
    %4392 = vmatpush1.msra.mxu0 %v4284
    %4393 = vmatprep.subr.mxu0 %v4289
    %4394 = vmatpush1.msra.mxu0 %v4288
    %4395 = vmatprep.subr.mxu0 %v4293
    %4396 = vmatpush1.msra.mxu0 %v4292
    %4397 = vmatprep.subr.mxu0 %v4297
    %4398 = vmatpush1.msra.mxu0 %v4296
    %4399 = vmatprep.subr.mxu0 %v4301
    %4400 = vmatpush1.msra.mxu0 %v4300
    %4401 = vmatprep.subr.mxu0 %v4305
    %4402 = vmatpush1.msra.mxu0 %v4304
    %4403 = vmatprep.subr.mxu0 %v4309
    %4404 = vmatpush1.msra.mxu0 %v4308
    %4405 = vmatprep.subr.mxu0 %v4313
    %4406 = vmatpush1.msra.mxu0 %v4312
    %4407 = vmatprep.subr.mxu0 0.0
    %4408 = vmatpush1.msra.mxu0 0.0
    %4409 = vmatprep.subr.mxu0 0.0
    %4410 = vmatpush1.msra.mxu0 0.0
    %4411 = vmatprep.subr.mxu0 0.0
    %4412 = vmatpush1.msra.mxu0 0.0
    %4413 = vmatprep.subr.mxu0 0.0
    %4414 = vmatpush1.msra.mxu0 0.0
    %4415 = vmatprep.subr.mxu0 0.0
    %4416 = vmatpush1.msra.mxu0 0.0
    %4417 = vmatprep.subr.mxu0 0.0
    %4418 = vmatpush1.msra.mxu0 0.0
    %4419 = vmatprep.subr.mxu0 0.0
    %4420 = vmatpush1.msra.mxu0 0.0
    %4421 = vmatprep.subr.mxu0 0.0
    %4422 = vmatpush1.msra.mxu0 0.0
    %4423 = vmatprep.subr.mxu0 0.0
    %4424 = vmatpush1.msra.mxu0 0.0
    %4425 = vmatprep.subr.mxu0 0.0
    %4426 = vmatpush1.msra.mxu0 0.0
    %4427 = vmatprep.subr.mxu0 0.0
    %4428 = vmatpush1.msra.mxu0 0.0
    %4429 = vmatprep.subr.mxu0 0.0
    %4430 = vmatpush1.msra.mxu0 0.0
    %4431 = vmatprep.subr.mxu0 0.0
    %4432 = vmatpush1.msra.mxu0 0.0
    %4433 = vmatprep.subr.mxu0 0.0
    %4434 = vmatpush1.msra.mxu0 0.0
    %4435 = vmatprep.subr.mxu0 0.0
    %4436 = vmatpush1.msra.mxu0 0.0
    %4437 = vmatprep.subr.mxu0 0.0
    %4438 = vmatpush1.msra.mxu0 0.0
    %4439 = vmatprep.subr.mxu0 0.0
    %4440 = vmatpush1.msra.mxu0 0.0
    %4441 = vmatprep.subr.mxu0 0.0
    %4442 = vmatpush1.msra.mxu0 0.0
    %4443 = vmatprep.subr.mxu0 0.0
    %4444 = vmatpush1.msra.mxu0 0.0
    %4445 = vmatprep.subr.mxu0 0.0
    %4446 = vmatpush1.msra.mxu0 0.0
    %4447 = vmatprep.subr.mxu0 0.0
    %4448 = vmatpush1.msra.mxu0 0.0
    %4449 = vmatprep.subr.mxu0 0.0
    %4450 = vmatpush1.msra.mxu0 0.0
    %4451 = vmatprep.subr.mxu0 0.0
    %4452 = vmatpush1.msra.mxu0 0.0
    %4453 = vmatprep.subr.mxu0 0.0
    %4454 = vmatpush1.msra.mxu0 0.0
    %4455 = vmatprep.mubr.f32.mxu0 0.0
    %4456 = vmatmul.mubr.f32.gmra.mrb[0].mxu0 %v3420
    %v4457 = vpop.f32.mrb[0].mxu0
    %v4458 = vadd.f32 0.0, %v4457
    %v4459 = vpop.f32.mrb[0].mxu0
    %v4460 = vadd.f32 0.0, %v4459
    %4461 = vmatprep.mubr.f32.mxu0 0.0
    %4462 = vmatmul.mubr.f32.gmra.mrb[0].mxu0 %v3423
    %v4463 = vpop.f32.mrb[0].mxu0
    %v4464 = vadd.f32 0.0, %v4463
    %v4465 = vpop.f32.mrb[0].mxu0
    %v4466 = vadd.f32 0.0, %v4465
    %4467 = vdwg.mxu0
    %4468 = vrot.lane.b32.xlu0 %v4381, 16
    %v4469 = vpop.permute.xlu0 %4468
    %4470 = vrot.lane.b32.xlu0 %v4383, 16
    %v4471 = vpop.permute.xlu0 %4470
    %4472 = vrot.lane.b32.xlu0 %v4458, 16
    %v4473 = vpop.permute.xlu0 %4472
    %4474 = vrot.lane.b32.xlu0 %v4460, 16
    %v4475 = vpop.permute.xlu0 %4474
    %vm4476 = vcmp.lt.s32.totalorder %v64, 16
    %v4477 = vsel %vm4476, %v4473, %v4475
    %v4478 = vsel %vm4476, %v4471, %v4473
    %v4479 = vsel %vm4476, %v4469, %v4471
    %v4480 = vsel %vm4476, %v4475, %v4469
    %v4485 = vrot.slane %v4480, 5
    %v4486 = vrot.slane %v4479, 5
    %v4487 = vrot.slane %v4478, 5
    %v4488 = vrot.slane %v4477, 5
    %v4493 = vadd.f32 %v4089, %v4485
    %v4494 = vadd.f32 %v4090, %v4486
    %v4495 = vadd.f32 %v4091, %v4487
    %v4496 = vadd.f32 %v4092, %v4488
    %v4501 = vrot.slane %v4381, 1
    %v4502 = vrot.slane %v4383, 1
    %v4503 = vrot.slane %v4458, 1
    %v4504 = vrot.slane %v4460, 1
    %4509 = vrot.lane.b32.xlu0 %v4501, 16
    %v4510 = vpop.permute.xlu0 %4509
    %4511 = vrot.lane.b32.xlu0 %v4502, 16
    %v4512 = vpop.permute.xlu0 %4511
    %4513 = vrot.lane.b32.xlu0 %v4503, 16
    %v4514 = vpop.permute.xlu0 %4513
    %4515 = vrot.lane.b32.xlu0 %v4504, 16
    %v4516 = vpop.permute.xlu0 %4515
    %v4517 = vsel %vm4476, %v4514, %v4516
    %v4518 = vsel %vm4476, %v4512, %v4514
    %v4519 = vsel %vm4476, %v4510, %v4512
    %v4520 = vsel %vm4476, %v4516, %v4510
    %v4525 = vrot.slane %v4520, 4
    %v4526 = vrot.slane %v4519, 4
    %v4527 = vrot.slane %v4518, 4
    %v4528 = vrot.slane %v4517, 4
    %v4533 = vadd.f32 %v4093, %v4525
    %v4534 = vadd.f32 %v4094, %v4526
    %v4535 = vadd.f32 %v4095, %v4527
    %v4536 = vadd.f32 %v4096, %v4528
    %v4537 = vrot.slane %v4381, 2
    %v4538 = vrot.slane %v4383, 2
    %v4539 = vrot.slane %v4458, 2
    %v4540 = vrot.slane %v4460, 2
    %4545 = vrot.lane.b32.xlu0 %v4537, 15
    %v4546 = vpop.permute.xlu0 %4545
    %4547 = vrot.lane.b32.xlu0 %v4538, 15
    %v4548 = vpop.permute.xlu0 %4547
    %4549 = vrot.lane.b32.xlu0 %v4539, 15
    %v4550 = vpop.permute.xlu0 %4549
    %4551 = vrot.lane.b32.xlu0 %v4540, 15
    %v4552 = vpop.permute.xlu0 %4551
    %vm4553 = vcmp.lt.s32.totalorder %v64, 15
    %v4554 = vsel %vm4553, %v4550, %v4552
    %v4555 = vsel %vm4553, %v4548, %v4550
    %v4556 = vsel %vm4553, %v4546, %v4548
    %v4557 = vsel %vm4553, %v4552, %v4546
    %v4562 = vrot.slane %v4557, 5
    %v4563 = vrot.slane %v4556, 5
    %v4564 = vrot.slane %v4555, 5
    %v4565 = vrot.slane %v4554, 5
    %v4570 = vadd.f32 %v4493, %v4562
    %v4571 = vadd.f32 %v4494, %v4563
    %v4572 = vadd.f32 %v4495, %v4564
    %v4573 = vadd.f32 %v4496, %v4565
    %v4574 = vrot.slane %v4381, 3
    %v4575 = vrot.slane %v4383, 3
    %v4576 = vrot.slane %v4458, 3
    %v4577 = vrot.slane %v4460, 3
    %v4582 = vadd.f32 %v4154, %v4574
    %v4583 = vadd.f32 %v4155, %v4575
    %v4584 = vadd.f32 %v4156, %v4576
    %v4585 = vadd.f32 %v4157, %v4577
    %v4586 = vadd.f32 %v4182, %v4574
    %v4587 = vadd.f32 %v4183, %v4575
    %v4588 = vadd.f32 %v4184, %v4576
    %v4589 = vadd.f32 %v4185, %v4577
    %v4590 = vrot.slane %v4381, 5
    %v4591 = vrot.slane %v4383, 5
    %v4592 = vrot.slane %v4458, 5
    %v4593 = vrot.slane %v4460, 5
    %4598 = vrot.lane.b32.xlu0 %v4590, 127
    %v4599 = vpop.permute.xlu0 %4598
    %4600 = vrot.lane.b32.xlu0 %v4591, 127
    %v4601 = vpop.permute.xlu0 %4600
    %4602 = vrot.lane.b32.xlu0 %v4592, 127
    %v4603 = vpop.permute.xlu0 %4602
    %4604 = vrot.lane.b32.xlu0 %v4593, 127
    %v4605 = vpop.permute.xlu0 %4604
    %v4606 = vsel %vm3599, %v4603, %v4605
    %v4607 = vsel %vm3599, %v4601, %v4603
    %v4608 = vsel %vm3599, %v4599, %v4601
    %v4609 = vsel %vm3599, %v4605, %v4599
    %v4610 = vadd.f32 %v4582, %v4608
    %v4611 = vadd.f32 %v4583, %v4607
    %v4612 = vadd.f32 %v4584, %v4606
    %v4613 = vadd.f32 %v4585, %v4609
    %v4614 = vadd.f32 %v4570, %v4574
    %v4615 = vadd.f32 %v4571, %v4575
    %v4616 = vadd.f32 %v4572, %v4576
    %v4617 = vadd.f32 %v4573, %v4577
    %v4618 = vadd.f32 %v4533, %v4574
    %v4619 = vadd.f32 %v4534, %v4575
    %v4620 = vadd.f32 %v4535, %v4576
    %v4621 = vadd.f32 %v4536, %v4577
    %4622 = vrot.lane.b32.xlu0 %v4387, 127
    %v4623 = vpop.permute.xlu0 %4622
    %4624 = vrot.lane.b32.xlu0 %v4389, 127
    %v4625 = vpop.permute.xlu0 %4624
    %4626 = vrot.lane.b32.xlu0 %v4464, 127
    %v4627 = vpop.permute.xlu0 %4626
    %4628 = vrot.lane.b32.xlu0 %v4466, 127
    %v4629 = vpop.permute.xlu0 %4628
    %v4630 = vsel %vm3599, %v4627, %v4629
    %v4631 = vsel %vm3599, %v4625, %v4627
    %v4632 = vsel %vm3599, %v4623, %v4625
    %v4633 = vsel %vm3599, %v4629, %v4623
    %v4638 = vrot.slane %v4632, 5
    %v4639 = vrot.slane %v4631, 5
    %v4640 = vrot.slane %v4630, 5
    %v4641 = vrot.slane %v4633, 5
    %v4646 = vadd.f32 %v4614, %v4638
    %v4647 = vadd.f32 %v4615, %v4639
    %v4648 = vadd.f32 %v4616, %v4640
    %v4649 = vadd.f32 %v4617, %v4641
    %v4650 = vld [vmem:[#allocation3 + $0x300] sm:$0xff]
    %v4651 = vld [vmem:[#allocation3 + $0x308] sm:$0xff]
    %v4652 = vld [vmem:[#allocation3 + $0x310] sm:$0xff]
    %v4653 = vld [vmem:[#allocation3 + $0x318] sm:$0xff]
    %v4654 = vld [vmem:[#allocation3 + $0x320] sm:$0xff]
    %v4655 = vld [vmem:[#allocation3 + $0x328] sm:$0xff]
    %v4656 = vld [vmem:[#allocation3 + $0x330] sm:$0xff]
    %v4657 = vld [vmem:[#allocation3 + $0x338] sm:$0xff]
    %v4658 = vld [vmem:[#allocation3 + $0x340] sm:$0xff]
    %v4659 = vld [vmem:[#allocation3 + $0x348] sm:$0xff]
    %v4660 = vld [vmem:[#allocation3 + $0x350] sm:$0xff]
    %v4661 = vld [vmem:[#allocation3 + $0x358] sm:$0xff]
    %v4662 = vld [vmem:[#allocation3 + $0x360] sm:$0xff]
    %v4663 = vld [vmem:[#allocation3 + $0x368] sm:$0xff]
    %v4664 = vld [vmem:[#allocation3 + $0x370] sm:$0xff]
    %v4665 = vld [vmem:[#allocation3 + $0x378] sm:$0xff]
    %v4666 = vld [vmem:[#allocation3 + $0x380] sm:$0xff]
    %v4667 = vld [vmem:[#allocation3 + $0x388] sm:$0xff]
    %v4668 = vld [vmem:[#allocation3 + $0x390] sm:$0xff]
    %v4669 = vld [vmem:[#allocation3 + $0x398] sm:$0xff]
    %v4670 = vld [vmem:[#allocation3 + $0x3a0] sm:$0xff]
    %v4671 = vld [vmem:[#allocation3 + $0x3a8] sm:$0xff]
    %v4672 = vld [vmem:[#allocation3 + $0x3b0] sm:$0xff]
    %v4673 = vld [vmem:[#allocation3 + $0x3b8] sm:$0xff]
    %v4674 = vld [vmem:[#allocation3 + $0x3c0] sm:$0xff]
    %v4675 = vld [vmem:[#allocation3 + $0x3c8] sm:$0xff]
    %v4676 = vld [vmem:[#allocation3 + $0x3d0] sm:$0xff]
    %v4677 = vld [vmem:[#allocation3 + $0x3d8] sm:$0xff]
    %v4678 = vld [vmem:[#allocation3 + $0x3e0] sm:$0xff]
    %v4679 = vld [vmem:[#allocation3 + $0x3e8] sm:$0xff]
    %v4680 = vld [vmem:[#allocation3 + $0x3f0] sm:$0xff]
    %v4681 = vld [vmem:[#allocation3 + $0x3f8] sm:$0xff]
    %v4682 = vmul.f32 %v4650, %v3244
    %v4683 = vmul.f32 %v4651, %v3244
    %v4684 = vmul.f32 %v4652, %v3244
    %v4685 = vmul.f32 %v4653, %v3244
    %v4686 = vmul.f32 %v4654, %v3249
    %v4687 = vmul.f32 %v4655, %v3249
    %v4688 = vmul.f32 %v4656, %v3249
    %v4689 = vmul.f32 %v4657, %v3249
    %v4690 = vmul.f32 %v4658, %v3254
    %v4691 = vmul.f32 %v4659, %v3254
    %v4692 = vmul.f32 %v4660, %v3254
    %v4693 = vmul.f32 %v4661, %v3254
    %v4694 = vmul.f32 %v4662, %v3259
    %v4695 = vmul.f32 %v4663, %v3259
    %v4696 = vmul.f32 %v4664, %v3259
    %v4697 = vmul.f32 %v4665, %v3259
    %v4698 = vmul.f32 %v4666, %v3264
    %v4699 = vmul.f32 %v4667, %v3264
    %v4700 = vmul.f32 %v4668, %v3264
    %v4701 = vmul.f32 %v4669, %v3264
    %v4702 = vmul.f32 %v4670, %v3269
    %v4703 = vmul.f32 %v4671, %v3269
    %v4704 = vmul.f32 %v4672, %v3269
    %v4705 = vmul.f32 %v4673, %v3269
    %v4706 = vmul.f32 %v4674, %v3274
    %v4707 = vmul.f32 %v4675, %v3274
    %v4708 = vmul.f32 %v4676, %v3274
    %v4709 = vmul.f32 %v4677, %v3274
    %v4710 = vmul.f32 %v4678, %v3279
    %v4711 = vmul.f32 %v4679, %v3279
    %v4712 = vmul.f32 %v4680, %v3279
    %v4713 = vmul.f32 %v4681, %v3279
    %v4714 = vadd.f32 %v4682, %v3316
    %v4715 = vadd.f32 %v4683, %v3316
    %v4716 = vadd.f32 %v4684, %v3316
    %v4717 = vadd.f32 %v4685, %v3316
    %v4718 = vadd.f32 %v4686, %v3321
    %v4719 = vadd.f32 %v4687, %v3321
    %v4720 = vadd.f32 %v4688, %v3321
    %v4721 = vadd.f32 %v4689, %v3321
    %v4722 = vadd.f32 %v4690, %v3326
    %v4723 = vadd.f32 %v4691, %v3326
    %v4724 = vadd.f32 %v4692, %v3326
    %v4725 = vadd.f32 %v4693, %v3326
    %v4726 = vadd.f32 %v4694, %v3331
    %v4727 = vadd.f32 %v4695, %v3331
    %v4728 = vadd.f32 %v4696, %v3331
    %v4729 = vadd.f32 %v4697, %v3331
    %v4730 = vadd.f32 %v4698, %v3336
    %v4731 = vadd.f32 %v4699, %v3336
    %v4732 = vadd.f32 %v4700, %v3336
    %v4733 = vadd.f32 %v4701, %v3336
    %v4734 = vadd.f32 %v4702, %v3341
    %v4735 = vadd.f32 %v4703, %v3341
    %v4736 = vadd.f32 %v4704, %v3341
    %v4737 = vadd.f32 %v4705, %v3341
    %v4738 = vadd.f32 %v4706, %v3346
    %v4739 = vadd.f32 %v4707, %v3346
    %v4740 = vadd.f32 %v4708, %v3346
    %v4741 = vadd.f32 %v4709, %v3346
    %v4742 = vadd.f32 %v4710, %v3351
    %v4743 = vadd.f32 %v4711, %v3351
    %v4744 = vadd.f32 %v4712, %v3351
    %v4745 = vadd.f32 %v4713, %v3351
    %v4746 = vsel %vm1236, %v4714, 0.0
    %v4747 = vsel %vm1237, %v4715, 0.0
    %v4748 = vsel %vm1238, %v4716, 0.0
    %v4749 = vsel %vm1239, %v4717, 0.0
    %v4750 = vsel %vm1236, %v4718, 0.0
    %v4751 = vsel %vm1237, %v4719, 0.0
    %v4752 = vsel %vm1238, %v4720, 0.0
    %v4753 = vsel %vm1239, %v4721, 0.0
    %v4754 = vsel %vm1236, %v4722, 0.0
    %v4755 = vsel %vm1237, %v4723, 0.0
    %v4756 = vsel %vm1238, %v4724, 0.0
    %v4757 = vsel %vm1239, %v4725, 0.0
    %v4758 = vsel %vm1236, %v4726, 0.0
    %v4759 = vsel %vm1237, %v4727, 0.0
    %v4760 = vsel %vm1238, %v4728, 0.0
    %v4761 = vsel %vm1239, %v4729, 0.0
    %v4762 = vsel %vm1236, %v4730, 0.0
    %v4763 = vsel %vm1237, %v4731, 0.0
    %v4764 = vsel %vm1238, %v4732, 0.0
    %v4765 = vsel %vm1239, %v4733, 0.0
    %v4766 = vsel %vm1236, %v4734, 0.0
    %v4767 = vsel %vm1237, %v4735, 0.0
    %v4768 = vsel %vm1238, %v4736, 0.0
    %v4769 = vsel %vm1239, %v4737, 0.0
    %v4770 = vsel %vm1236, %v4738, 0.0
    %v4771 = vsel %vm1237, %v4739, 0.0
    %v4772 = vsel %vm1238, %v4740, 0.0
    %v4773 = vsel %vm1239, %v4741, 0.0
    %v4774 = vsel %vm1236, %v4742, 0.0
    %v4775 = vsel %vm1237, %v4743, 0.0
    %v4776 = vsel %vm1238, %v4744, 0.0
    %v4777 = vsel %vm1239, %v4745, 0.0
    %4778 = vmatprep.subr.mxu0 %v4747
    %4779 = vmatpush1.msra.mxu0 %v4746
    %4780 = vmatprep.subr.mxu0 %v4751
    %4781 = vmatpush1.msra.mxu0 %v4750
    %4782 = vmatprep.subr.mxu0 %v4755
    %4783 = vmatpush1.msra.mxu0 %v4754
    %4784 = vmatprep.subr.mxu0 %v4759
    %4785 = vmatpush1.msra.mxu0 %v4758
    %4786 = vmatprep.subr.mxu0 %v4763
    %4787 = vmatpush1.msra.mxu0 %v4762
    %4788 = vmatprep.subr.mxu0 %v4767
    %4789 = vmatpush1.msra.mxu0 %v4766
    %4790 = vmatprep.subr.mxu0 %v4771
    %4791 = vmatpush1.msra.mxu0 %v4770
    %4792 = vmatprep.subr.mxu0 %v4775
    %4793 = vmatpush1.msra.mxu0 %v4774
    %4794 = vmatprep.subr.mxu0 0.0
    %4795 = vmatpush1.msra.mxu0 0.0
    %4796 = vmatprep.subr.mxu0 0.0
    %4797 = vmatpush1.msra.mxu0 0.0
    %4798 = vmatprep.subr.mxu0 0.0
    %4799 = vmatpush1.msra.mxu0 0.0
    %4800 = vmatprep.subr.mxu0 0.0
    %4801 = vmatpush1.msra.mxu0 0.0
    %4802 = vmatprep.subr.mxu0 0.0
    %4803 = vmatpush1.msra.mxu0 0.0
    %4804 = vmatprep.subr.mxu0 0.0
    %4805 = vmatpush1.msra.mxu0 0.0
    %4806 = vmatprep.subr.mxu0 0.0
    %4807 = vmatpush1.msra.mxu0 0.0
    %4808 = vmatprep.subr.mxu0 0.0
    %4809 = vmatpush1.msra.mxu0 0.0
    %4810 = vmatprep.subr.mxu0 0.0
    %4811 = vmatpush1.msra.mxu0 0.0
    %4812 = vmatprep.subr.mxu0 0.0
    %4813 = vmatpush1.msra.mxu0 0.0
    %4814 = vmatprep.subr.mxu0 0.0
    %4815 = vmatpush1.msra.mxu0 0.0
    %4816 = vmatprep.subr.mxu0 0.0
    %4817 = vmatpush1.msra.mxu0 0.0
    %4818 = vmatprep.subr.mxu0 0.0
    %4819 = vmatpush1.msra.mxu0 0.0
    %4820 = vmatprep.subr.mxu0 0.0
    %4821 = vmatpush1.msra.mxu0 0.0
    %4822 = vmatprep.subr.mxu0 0.0
    %4823 = vmatpush1.msra.mxu0 0.0
    %4824 = vmatprep.subr.mxu0 0.0
    %4825 = vmatpush1.msra.mxu0 0.0
    %4826 = vmatprep.subr.mxu0 0.0
    %4827 = vmatpush1.msra.mxu0 0.0
    %4828 = vmatprep.subr.mxu0 0.0
    %4829 = vmatpush1.msra.mxu0 0.0
    %4830 = vmatprep.subr.mxu0 0.0
    %4831 = vmatpush1.msra.mxu0 0.0
    %4832 = vmatprep.subr.mxu0 0.0
    %4833 = vmatpush1.msra.mxu0 0.0
    %4834 = vmatprep.subr.mxu0 0.0
    %4835 = vmatpush1.msra.mxu0 0.0
    %4836 = vmatprep.subr.mxu0 0.0
    %4837 = vmatpush1.msra.mxu0 0.0
    %4838 = vmatprep.subr.mxu0 0.0
    %4839 = vmatpush1.msra.mxu0 0.0
    %4840 = vmatprep.subr.mxu0 0.0
    %4841 = vmatpush1.msra.mxu0 0.0
    %4842 = vmatprep.mubr.f32.mxu0 0.0
    %4843 = vmatmul.mubr.f32.gmra.mrb[0].mxu0 %v3420
    %v4844 = vpop.f32.mrb[0].mxu0
    %v4845 = vadd.f32 0.0, %v4844
    %v4846 = vpop.f32.mrb[0].mxu0
    %v4847 = vadd.f32 0.0, %v4846
    %4848 = vmatprep.mubr.f32.mxu0 0.0
    %4849 = vmatmul.mubr.f32.gmra.mrb[0].mxu0 %v3423
    %v4850 = vpop.f32.mrb[0].mxu0
    %v4851 = vadd.f32 0.0, %v4850
    %v4852 = vpop.f32.mrb[0].mxu0
    %v4853 = vadd.f32 0.0, %v4852
    %4854 = vdwg.mxu0
    %4855 = vmatprep.subr.mxu0 %v4749
    %4856 = vmatpush1.msra.mxu0 %v4748
    %4857 = vmatprep.subr.mxu0 %v4753
    %4858 = vmatpush1.msra.mxu0 %v4752
    %4859 = vmatprep.subr.mxu0 %v4757
    %4860 = vmatpush1.msra.mxu0 %v4756
    %4861 = vmatprep.subr.mxu0 %v4761
    %4862 = vmatpush1.msra.mxu0 %v4760
    %4863 = vmatprep.subr.mxu0 %v4765
    %4864 = vmatpush1.msra.mxu0 %v4764
    %4865 = vmatprep.subr.mxu0 %v4769
    %4866 = vmatpush1.msra.mxu0 %v4768
    %4867 = vmatprep.subr.mxu0 %v4773
    %4868 = vmatpush1.msra.mxu0 %v4772
    %4869 = vmatprep.subr.mxu0 %v4777
    %4870 = vmatpush1.msra.mxu0 %v4776
    %4871 = vmatprep.subr.mxu0 0.0
    %4872 = vmatpush1.msra.mxu0 0.0
    %4873 = vmatprep.subr.mxu0 0.0
    %4874 = vmatpush1.msra.mxu0 0.0
    %4875 = vmatprep.subr.mxu0 0.0
    %4876 = vmatpush1.msra.mxu0 0.0
    %4877 = vmatprep.subr.mxu0 0.0
    %4878 = vmatpush1.msra.mxu0 0.0
    %4879 = vmatprep.subr.mxu0 0.0
    %4880 = vmatpush1.msra.mxu0 0.0
    %4881 = vmatprep.subr.mxu0 0.0
    %4882 = vmatpush1.msra.mxu0 0.0
    %4883 = vmatprep.subr.mxu0 0.0
    %4884 = vmatpush1.msra.mxu0 0.0
    %4885 = vmatprep.subr.mxu0 0.0
    %4886 = vmatpush1.msra.mxu0 0.0
    %4887 = vmatprep.subr.mxu0 0.0
    %4888 = vmatpush1.msra.mxu0 0.0
    %4889 = vmatprep.subr.mxu0 0.0
    %4890 = vmatpush1.msra.mxu0 0.0
    %4891 = vmatprep.subr.mxu0 0.0
    %4892 = vmatpush1.msra.mxu0 0.0
    %4893 = vmatprep.subr.mxu0 0.0
    %4894 = vmatpush1.msra.mxu0 0.0
    %4895 = vmatprep.subr.mxu0 0.0
    %4896 = vmatpush1.msra.mxu0 0.0
    %4897 = vmatprep.subr.mxu0 0.0
    %4898 = vmatpush1.msra.mxu0 0.0
    %4899 = vmatprep.subr.mxu0 0.0
    %4900 = vmatpush1.msra.mxu0 0.0
    %4901 = vmatprep.subr.mxu0 0.0
    %4902 = vmatpush1.msra.mxu0 0.0
    %4903 = vmatprep.subr.mxu0 0.0
    %4904 = vmatpush1.msra.mxu0 0.0
    %4905 = vmatprep.subr.mxu0 0.0
    %4906 = vmatpush1.msra.mxu0 0.0
    %4907 = vmatprep.subr.mxu0 0.0
    %4908 = vmatpush1.msra.mxu0 0.0
    %4909 = vmatprep.subr.mxu0 0.0
    %4910 = vmatpush1.msra.mxu0 0.0
    %4911 = vmatprep.subr.mxu0 0.0
    %4912 = vmatpush1.msra.mxu0 0.0
    %4913 = vmatprep.subr.mxu0 0.0
    %4914 = vmatpush1.msra.mxu0 0.0
    %4915 = vmatprep.subr.mxu0 0.0
    %4916 = vmatpush1.msra.mxu0 0.0
    %4917 = vmatprep.subr.mxu0 0.0
    %4918 = vmatpush1.msra.mxu0 0.0
    %4919 = vmatprep.mubr.f32.mxu0 0.0
    %4920 = vmatmul.mubr.f32.gmra.mrb[0].mxu0 %v3420
    %v4921 = vpop.f32.mrb[0].mxu0
    %v4922 = vadd.f32 0.0, %v4921
    %v4923 = vpop.f32.mrb[0].mxu0
    %v4924 = vadd.f32 0.0, %v4923
    %4925 = vmatprep.mubr.f32.mxu0 0.0
    %4926 = vmatmul.mubr.f32.gmra.mrb[0].mxu0 %v3423
    %v4927 = vpop.f32.mrb[0].mxu0
    %v4928 = vadd.f32 0.0, %v4927
    %v4929 = vpop.f32.mrb[0].mxu0
    %v4930 = vadd.f32 0.0, %v4929
    %4931 = vdwg.mxu0
    %4932 = vrot.lane.b32.xlu0 %v4845, 17
    %v4933 = vpop.permute.xlu0 %4932
    %4934 = vrot.lane.b32.xlu0 %v4847, 17
    %v4935 = vpop.permute.xlu0 %4934
    %4936 = vrot.lane.b32.xlu0 %v4922, 17
    %v4937 = vpop.permute.xlu0 %4936
    %4938 = vrot.lane.b32.xlu0 %v4924, 17
    %v4939 = vpop.permute.xlu0 %4938
    %vm4940 = vcmp.lt.s32.totalorder %v64, 17
    %v4941 = vsel %vm4940, %v4937, %v4939
    %v4942 = vsel %vm4940, %v4935, %v4937
    %v4943 = vsel %vm4940, %v4933, %v4935
    %v4944 = vsel %vm4940, %v4939, %v4933
    %v4949 = vrot.slane %v4944, 4
    %v4950 = vrot.slane %v4943, 4
    %v4951 = vrot.slane %v4942, 4
    %v4952 = vrot.slane %v4941, 4
    %v4957 = vadd.f32 %v4618, %v4949
    %v4958 = vadd.f32 %v4619, %v4950
    %v4959 = vadd.f32 %v4620, %v4951
    %v4960 = vadd.f32 %v4621, %v4952
    %v4965 = vrot.slane %v4845, 1
    %v4966 = vrot.slane %v4847, 1
    %v4967 = vrot.slane %v4922, 1
    %v4968 = vrot.slane %v4924, 1
    %4973 = vrot.lane.b32.xlu0 %v4965, 16
    %v4974 = vpop.permute.xlu0 %4973
    %4975 = vrot.lane.b32.xlu0 %v4966, 16
    %v4976 = vpop.permute.xlu0 %4975
    %4977 = vrot.lane.b32.xlu0 %v4967, 16
    %v4978 = vpop.permute.xlu0 %4977
    %4979 = vrot.lane.b32.xlu0 %v4968, 16
    %v4980 = vpop.permute.xlu0 %4979
    %v4981 = vsel %vm4476, %v4978, %v4980
    %v4982 = vsel %vm4476, %v4976, %v4978
    %v4983 = vsel %vm4476, %v4974, %v4976
    %v4984 = vsel %vm4476, %v4980, %v4974
    %v4989 = vrot.slane %v4984, 5
    %v4990 = vrot.slane %v4983, 5
    %v4991 = vrot.slane %v4982, 5
    %v4992 = vrot.slane %v4981, 5
    %v4997 = vadd.f32 %v4646, %v4989
    %v4998 = vadd.f32 %v4647, %v4990
    %v4999 = vadd.f32 %v4648, %v4991
    %v5000 = vadd.f32 %v4649, %v4992
    %v5001 = vrot.slane %v4845, 2
    %v5002 = vrot.slane %v4847, 2
    %v5003 = vrot.slane %v4922, 2
    %v5004 = vrot.slane %v4924, 2
    %5009 = vrot.lane.b32.xlu0 %v5001, 16
    %v5010 = vpop.permute.xlu0 %5009
    %5011 = vrot.lane.b32.xlu0 %v5002, 16
    %v5012 = vpop.permute.xlu0 %5011
    %5013 = vrot.lane.b32.xlu0 %v5003, 16
    %v5014 = vpop.permute.xlu0 %5013
    %5015 = vrot.lane.b32.xlu0 %v5004, 16
    %v5016 = vpop.permute.xlu0 %5015
    %v5017 = vsel %vm4476, %v5014, %v5016
    %v5018 = vsel %vm4476, %v5012, %v5014
    %v5019 = vsel %vm4476, %v5010, %v5012
    %v5020 = vsel %vm4476, %v5016, %v5010
    %v5025 = vrot.slane %v5020, 4
    %v5026 = vrot.slane %v5019, 4
    %v5027 = vrot.slane %v5018, 4
    %v5028 = vrot.slane %v5017, 4
    %v5033 = vadd.f32 %v4957, %v5025
    %v5034 = vadd.f32 %v4958, %v5026
    %v5035 = vadd.f32 %v4959, %v5027
    %v5036 = vadd.f32 %v4960, %v5028
    %v5037 = vrot.slane %v4845, 3
    %v5038 = vrot.slane %v4847, 3
    %v5039 = vrot.slane %v4922, 3
    %v5040 = vrot.slane %v4924, 3
    %5045 = vrot.lane.b32.xlu0 %v5037, 1
    %v5046 = vpop.permute.xlu0 %5045
    %5047 = vrot.lane.b32.xlu0 %v5038, 1
    %v5048 = vpop.permute.xlu0 %5047
    %5049 = vrot.lane.b32.xlu0 %v5039, 1
    %v5050 = vpop.permute.xlu0 %5049
    %5051 = vrot.lane.b32.xlu0 %v5040, 1
    %v5052 = vpop.permute.xlu0 %5051
    %v5053 = vsel %vm4012, %v5050, %v5052
    %v5054 = vsel %vm4012, %v5048, %v5050
    %v5055 = vsel %vm4012, %v5046, %v5048
    %v5056 = vsel %vm4012, %v5052, %v5046
    %v5061 = vrot.slane %v5056, 7
    %v5062 = vrot.slane %v5055, 7
    %v5063 = vrot.slane %v5054, 7
    %v5064 = vrot.slane %v5053, 7
    %v5069 = vadd.f32 %v4586, %v5061
    %v5070 = vadd.f32 %v4587, %v5062
    %v5071 = vadd.f32 %v4588, %v5063
    %v5072 = vadd.f32 %v4589, %v5064
    %v5073 = vrot.slane %v4845, 4
    %v5074 = vrot.slane %v4847, 4
    %v5075 = vrot.slane %v4922, 4
    %v5076 = vrot.slane %v4924, 4
    %v5081 = vadd.f32 %v4610, %v5073
    %v5082 = vadd.f32 %v4611, %v5074
    %v5083 = vadd.f32 %v4612, %v5075
    %v5084 = vadd.f32 %v4613, %v5076
    %v5085 = vadd.f32 %v5069, %v5073
    %v5086 = vadd.f32 %v5070, %v5074
    %v5087 = vadd.f32 %v5071, %v5075
    %v5088 = vadd.f32 %v5072, %v5076
    %v5089 = vrot.slane %v4845, 6
    %v5090 = vrot.slane %v4847, 6
    %v5091 = vrot.slane %v4922, 6
    %v5092 = vrot.slane %v4924, 6
    %5097 = vrot.lane.b32.xlu0 %v5089, 1
    %v5098 = vpop.permute.xlu0 %5097
    %5099 = vrot.lane.b32.xlu0 %v5090, 1
    %v5100 = vpop.permute.xlu0 %5099
    %5101 = vrot.lane.b32.xlu0 %v5091, 1
    %v5102 = vpop.permute.xlu0 %5101
    %5103 = vrot.lane.b32.xlu0 %v5092, 1
    %v5104 = vpop.permute.xlu0 %5103
    %v5105 = vsel %vm4012, %v5102, %v5104
    %v5106 = vsel %vm4012, %v5100, %v5102
    %v5107 = vsel %vm4012, %v5098, %v5100
    %v5108 = vsel %vm4012, %v5104, %v5098
    %v5113 = vrot.slane %v5108, 4
    %v5114 = vrot.slane %v5107, 4
    %v5115 = vrot.slane %v5106, 4
    %v5116 = vrot.slane %v5105, 4
    %v5121 = vadd.f32 %v5033, %v5113
    %v5122 = vadd.f32 %v5034, %v5114
    %v5123 = vadd.f32 %v5035, %v5115
    %v5124 = vadd.f32 %v5036, %v5116
    %v5125 = vadd.f32 %v4997, %v5073
    %v5126 = vadd.f32 %v4998, %v5074
    %v5127 = vadd.f32 %v4999, %v5075
    %v5128 = vadd.f32 %v5000, %v5076
    %v5133 = vrot.slane %v4851, 4
    %v5134 = vrot.slane %v4853, 4
    %v5135 = vrot.slane %v4928, 4
    %v5136 = vrot.slane %v4930, 4
    %v5141 = vadd.f32 %v5121, %v5133
    %v5142 = vadd.f32 %v5122, %v5134
    %v5143 = vadd.f32 %v5123, %v5135
    %v5144 = vadd.f32 %v5124, %v5136
    %s5145 = sld [smem:[#allocation6]]
    %v5146 = vstv %s5145
    %v5147 = vadd.f32 %v5141, %v5146
    %v5148 = vadd.f32 %v5142, %v5146
    %v5149 = vadd.f32 %v5143, %v5146
    %v5150 = vadd.f32 %v5144, %v5146
    %v5151 = vmax.f32 %v5147, 0.0
    %v5152 = vmax.f32 %v5148, 0.0
    %v5153 = vmax.f32 %v5149, 0.0
    %v5154 = vmax.f32 %v5150, 0.0
    %v5155 = vsel %vm104, %v5151, 0.0
    %v5156 = vsel %vm105, %v5152, 0.0
    %v5157 = vsel %vm106, %v5153, 0.0
    %v5158 = vsel %vm107, %v5154, 0.0
    %v5163 = vrot.slane %v5155, 4
    %v5164 = vrot.slane %v5156, 4
    %v5165 = vrot.slane %v5157, 4
    %v5166 = vrot.slane %v5158, 4
    %vm5171 = vcmask 1040384
    %v5172 = vsel %vm5171, %v5163, 0.0
    %v5173 = vsel %vm5171, %v5164, 0.0
    %v5174 = vadd.f32 %v5172, %v5173
    %v5175 = vsel %vm5171, %v5165, 0.0
    %v5176 = vadd.f32 %v5174, %v5175
    %v5177 = vsel %vm5171, %v5166, 0.0
    %v5178 = vadd.f32 %v5176, %v5177
    %5179 = vadd.xlane.f32.xlu0 %v5178
    %v5180 = vpop.xlane.xlu0 %5179
    %v5181 = vrot.slane %v5180, 4
    %v5182 = vadd.f32 %v5180, %v5181
    %v5183 = vrot.slane %v5182, 2
    %v5184 = vadd.f32 %v5182, %v5183
    %v5185 = vrot.slane %v5184, 1
    %v5186 = vadd.f32 %v5184, %v5185
    %s5187 = vtos %v5186
    %s5188 = sadd.f32 %s5187, 0.0
    %v5189 = vmul.f32 %v5155, %v5155
    %v5190 = vmul.f32 %v5156, %v5156
    %v5191 = vmul.f32 %v5157, %v5157
    %v5192 = vmul.f32 %v5158, %v5158
    %v5197 = vrot.slane %v5189, 4
    %v5198 = vrot.slane %v5190, 4
    %v5199 = vrot.slane %v5191, 4
    %v5200 = vrot.slane %v5192, 4
    %v5205 = vsel %vm5171, %v5197, 0.0
    %v5206 = vsel %vm5171, %v5198, 0.0
    %v5207 = vadd.f32 %v5205, %v5206
    %v5208 = vsel %vm5171, %v5199, 0.0
    %v5209 = vadd.f32 %v5207, %v5208
    %v5210 = vsel %vm5171, %v5200, 0.0
    %v5211 = vadd.f32 %v5209, %v5210
    %5212 = vadd.xlane.f32.xlu0 %v5211
    %v5213 = vpop.xlane.xlu0 %5212
    %v5214 = vrot.slane %v5213, 4
    %v5215 = vadd.f32 %v5213, %v5214
    %v5216 = vrot.slane %v5215, 2
    %v5217 = vadd.f32 %v5215, %v5216
    %v5218 = vrot.slane %v5217, 1
    %v5219 = vadd.f32 %v5217, %v5218
    %s5220 = vtos %v5219
    %s5221 = sadd.f32 %s5220, 0.0
    %v5222 = vadd.f32 %v5125, %v5146
    %v5223 = vadd.f32 %v5126, %v5146
    %v5224 = vadd.f32 %v5127, %v5146
    %v5225 = vadd.f32 %v5128, %v5146
    %v5226 = vmax.f32 %v5222, 0.0
    %v5227 = vmax.f32 %v5223, 0.0
    %v5228 = vmax.f32 %v5224, 0.0
    %v5229 = vmax.f32 %v5225, 0.0
    %v5230 = vsel %vm104, %v5226, 0.0
    %v5231 = vsel %vm105, %v5227, 0.0
    %v5232 = vsel %vm106, %v5228, 0.0
    %v5233 = vsel %vm107, %v5229, 0.0
    %v5238 = vrot.slane %v5230, 3
    %v5239 = vrot.slane %v5231, 3
    %v5240 = vrot.slane %v5232, 3
    %v5241 = vrot.slane %v5233, 3
    %v5246 = vsel %vm5171, %v5238, 0.0
    %v5247 = vsel %vm5171, %v5239, 0.0
    %v5248 = vadd.f32 %v5246, %v5247
    %v5249 = vsel %vm5171, %v5240, 0.0
    %v5250 = vadd.f32 %v5248, %v5249
    %v5251 = vsel %vm5171, %v5241, 0.0
    %v5252 = vadd.f32 %v5250, %v5251
    %5253 = vadd.xlane.f32.xlu0 %v5252
    %v5254 = vpop.xlane.xlu0 %5253
    %v5255 = vrot.slane %v5254, 4
    %v5256 = vadd.f32 %v5254, %v5255
    %v5257 = vrot.slane %v5256, 2
    %v5258 = vadd.f32 %v5256, %v5257
    %v5259 = vrot.slane %v5258, 1
    %v5260 = vadd.f32 %v5258, %v5259
    %s5261 = vtos %v5260
    %s5262 = sadd.f32 %s5188, %s5261
    %v5263 = vmul.f32 %v5230, %v5230
    %v5264 = vmul.f32 %v5231, %v5231
    %v5265 = vmul.f32 %v5232, %v5232
    %v5266 = vmul.f32 %v5233, %v5233
    %v5271 = vrot.slane %v5263, 3
    %v5272 = vrot.slane %v5264, 3
    %v5273 = vrot.slane %v5265, 3
    %v5274 = vrot.slane %v5266, 3
    %v5279 = vsel %vm5171, %v5271, 0.0
    %v5280 = vsel %vm5171, %v5272, 0.0
    %v5281 = vadd.f32 %v5279, %v5280
    %v5282 = vsel %vm5171, %v5273, 0.0
    %v5283 = vadd.f32 %v5281, %v5282
    %v5284 = vsel %vm5171, %v5274, 0.0
    %v5285 = vadd.f32 %v5283, %v5284
    %5286 = vadd.xlane.f32.xlu0 %v5285
    %v5287 = vpop.xlane.xlu0 %5286
    %v5288 = vrot.slane %v5287, 4
    %v5289 = vadd.f32 %v5287, %v5288
    %v5290 = vrot.slane %v5289, 2
    %v5291 = vadd.f32 %v5289, %v5290
    %v5292 = vrot.slane %v5291, 1
    %v5293 = vadd.f32 %v5291, %v5292
    %s5294 = vtos %v5293
    %s5295 = sadd.f32 %s5221, %s5294
    %v5296 = vadd.f32 %v5085, %v5146
    %v5297 = vadd.f32 %v5086, %v5146
    %v5298 = vadd.f32 %v5087, %v5146
    %v5299 = vadd.f32 %v5088, %v5146
    %v5300 = vmax.f32 %v5296, 0.0
    %v5301 = vmax.f32 %v5297, 0.0
    %v5302 = vmax.f32 %v5298, 0.0
    %v5303 = vmax.f32 %v5299, 0.0
    %v5304 = vsel %vm104, %v5300, 0.0
    %v5305 = vsel %vm105, %v5301, 0.0
    %v5306 = vsel %vm106, %v5302, 0.0
    %v5307 = vsel %vm107, %v5303, 0.0
    %v5312 = vrot.slane %v5304, 1
    %v5313 = vrot.slane %v5305, 1
    %v5314 = vrot.slane %v5306, 1
    %v5315 = vrot.slane %v5307, 1
    %v5320 = vsel %vm5171, %v5312, 0.0
    %v5321 = vsel %vm5171, %v5313, 0.0
    %v5322 = vadd.f32 %v5320, %v5321
    %v5323 = vsel %vm5171, %v5314, 0.0
    %v5324 = vadd.f32 %v5322, %v5323
    %v5325 = vsel %vm5171, %v5315, 0.0
    %v5326 = vadd.f32 %v5324, %v5325
    %5327 = vadd.xlane.f32.xlu0 %v5326
    %v5328 = vpop.xlane.xlu0 %5327
    %v5329 = vrot.slane %v5328, 4
    %v5330 = vadd.f32 %v5328, %v5329
    %v5331 = vrot.slane %v5330, 2
    %v5332 = vadd.f32 %v5330, %v5331
    %v5333 = vrot.slane %v5332, 1
    %v5334 = vadd.f32 %v5332, %v5333
    %s5335 = vtos %v5334
    %s5336 = sadd.f32 %s5262, %s5335
    %v5337 = vmul.f32 %v5304, %v5304
    %v5338 = vmul.f32 %v5305, %v5305
    %v5339 = vmul.f32 %v5306, %v5306
    %v5340 = vmul.f32 %v5307, %v5307
    %v5345 = vrot.slane %v5337, 1
    %v5346 = vrot.slane %v5338, 1
    %v5347 = vrot.slane %v5339, 1
    %v5348 = vrot.slane %v5340, 1
    %v5353 = vsel %vm5171, %v5345, 0.0
    %v5354 = vsel %vm5171, %v5346, 0.0
    %v5355 = vadd.f32 %v5353, %v5354
    %v5356 = vsel %vm5171, %v5347, 0.0
    %v5357 = vadd.f32 %v5355, %v5356
    %v5358 = vsel %vm5171, %v5348, 0.0
    %v5359 = vadd.f32 %v5357, %v5358
    %5360 = vadd.xlane.f32.xlu0 %v5359
    %v5361 = vpop.xlane.xlu0 %5360
    %v5362 = vrot.slane %v5361, 4
    %v5363 = vadd.f32 %v5361, %v5362
    %v5364 = vrot.slane %v5363, 2
    %v5365 = vadd.f32 %v5363, %v5364
    %v5366 = vrot.slane %v5365, 1
    %v5367 = vadd.f32 %v5365, %v5366
    %s5368 = vtos %v5367
    %s5369 = sadd.f32 %s5295, %s5368
    %v5370 = vadd.f32 %v5081, %v5146
    %v5371 = vadd.f32 %v5082, %v5146
    %v5372 = vadd.f32 %v5083, %v5146
    %v5373 = vadd.f32 %v5084, %v5146
    %v5374 = vmax.f32 %v5370, 0.0
    %v5375 = vmax.f32 %v5371, 0.0
    %v5376 = vmax.f32 %v5372, 0.0
    %v5377 = vmax.f32 %v5373, 0.0
    %v5378 = vsel %vm104, %v5374, 0.0
    %v5379 = vsel %vm105, %v5375, 0.0
    %v5380 = vsel %vm106, %v5376, 0.0
    %v5381 = vsel %vm107, %v5377, 0.0
    %v5382 = vsel %vm5171, %v5378, 0.0
    %v5383 = vsel %vm5171, %v5379, 0.0
    %v5384 = vadd.f32 %v5382, %v5383
    %v5385 = vsel %vm5171, %v5380, 0.0
    %v5386 = vadd.f32 %v5384, %v5385
    %v5387 = vsel %vm5171, %v5381, 0.0
    %v5388 = vadd.f32 %v5386, %v5387
    %5389 = vadd.xlane.f32.xlu0 %v5388
    %v5390 = vpop.xlane.xlu0 %5389
    %v5391 = vrot.slane %v5390, 4
    %v5392 = vadd.f32 %v5390, %v5391
    %v5393 = vrot.slane %v5392, 2
    %v5394 = vadd.f32 %v5392, %v5393
    %v5395 = vrot.slane %v5394, 1
    %v5396 = vadd.f32 %v5394, %v5395
    %s5397 = vtos %v5396
    %s5398 = sadd.f32 %s5336, %s5397
    %v5399 = vmul.f32 %v5378, %v5378
    %v5400 = vmul.f32 %v5379, %v5379
    %v5401 = vmul.f32 %v5380, %v5380
    %v5402 = vmul.f32 %v5381, %v5381
    %v5403 = vsel %vm5171, %v5399, 0.0
    %v5404 = vsel %vm5171, %v5400, 0.0
    %v5405 = vadd.f32 %v5403, %v5404
    %v5406 = vsel %vm5171, %v5401, 0.0
    %v5407 = vadd.f32 %v5405, %v5406
    %v5408 = vsel %vm5171, %v5402, 0.0
    %v5409 = vadd.f32 %v5407, %v5408
    %5410 = vadd.xlane.f32.xlu0 %v5409
    %v5411 = vpop.xlane.xlu0 %5410
    %v5412 = vrot.slane %v5411, 4
    %v5413 = vadd.f32 %v5411, %v5412
    %v5414 = vrot.slane %v5413, 2
    %v5415 = vadd.f32 %v5413, %v5414
    %v5416 = vrot.slane %v5415, 1
    %v5417 = vadd.f32 %v5415, %v5416
    %s5418 = vtos %v5417
    %s5419 = sadd.f32 %s5369, %s5418
    %s5420 = smul.f32 %s5398, 0.0006377551
    %s5421 = smul.f32 %s5419, 0.0006377551
    %s5422 = smul.f32 %s5420, %s5420
    %s5423 = ssub.f32 %s5421, %s5422
    %s5424 = sadd.f32 %s5423, 1e-05
    %v5425 = vstv %s5424
    %v5426 = vrsqrt.pop %v5425
    %s5427 = vtos %v5426
    %s5428 = sld [smem:[#allocation6 + $0x1]]
    %s5429 = smul.f32 %s5427, %s5428
    %s5430 = sld [smem:[#allocation6 + $0x2]]
    %s5431 = smul.f32 %s5420, %s5429
    %s5432 = ssub.f32 %s5430, %s5431
    %v5433 = vstv %s5429
    %v5434 = vmul.f32 %v5151, %v5433
    %v5435 = vmul.f32 %v5152, %v5433
    %v5436 = vmul.f32 %v5153, %v5433
    %v5437 = vmul.f32 %v5154, %v5433
    %v5438 = vstv %s5432
    %v5439 = vadd.f32 %v5434, %v5438
    %v5440 = vadd.f32 %v5435, %v5438
    %v5441 = vadd.f32 %v5436, %v5438
    %v5442 = vadd.f32 %v5437, %v5438
    %v5443 = vsub.f32 0.0, %v5439
    %v5444 = vsub.f32 0.0, %v5440
    %v5445 = vsub.f32 0.0, %v5441
    %v5446 = vsub.f32 0.0, %v5442
    %v5447 = vmul.f32 %v5443, 1.442695
    %v5448 = vpow.pop %v5447
    %v5449 = vmul.f32 %v5444, 1.442695
    %v5450 = vpow.pop %v5449
    %v5451 = vmul.f32 %v5445, 1.442695
    %v5452 = vpow.pop %v5451
    %v5453 = vmul.f32 %v5446, 1.442695
    %v5454 = vpow.pop %v5453
    %v5455 = vadd.f32 %v5448, 1.0
    %v5456 = vadd.f32 %v5450, 1.0
    %v5457 = vadd.f32 %v5452, 1.0
    %v5458 = vadd.f32 %v5454, 1.0
    %v5459 = vrcp.pop %v5455
    %v5460 = vmul.f32 1.0, %v5459
    %v5461 = vrcp.pop %v5456
    %v5462 = vmul.f32 1.0, %v5461
    %v5463 = vrcp.pop %v5457
    %v5464 = vmul.f32 1.0, %v5463
    %v5465 = vrcp.pop %v5458
    %v5466 = vmul.f32 1.0, %v5465
    %v5467 = vmul.f32 %v5226, %v5433
    %v5468 = vmul.f32 %v5227, %v5433
    %v5469 = vmul.f32 %v5228, %v5433
    %v5470 = vmul.f32 %v5229, %v5433
    %v5471 = vadd.f32 %v5467, %v5438
    %v5472 = vadd.f32 %v5468, %v5438
    %v5473 = vadd.f32 %v5469, %v5438
    %v5474 = vadd.f32 %v5470, %v5438
    %v5475 = vsub.f32 0.0, %v5471
    %v5476 = vsub.f32 0.0, %v5472
    %v5477 = vsub.f32 0.0, %v5473
    %v5478 = vsub.f32 0.0, %v5474
    %v5479 = vmul.f32 %v5475, 1.442695
    %v5480 = vpow.pop %v5479
    %v5481 = vmul.f32 %v5476, 1.442695
    %v5482 = vpow.pop %v5481
    %v5483 = vmul.f32 %v5477, 1.442695
    %v5484 = vpow.pop %v5483
    %v5485 = vmul.f32 %v5478, 1.442695
    %v5486 = vpow.pop %v5485
    %v5487 = vadd.f32 %v5480, 1.0
    %v5488 = vadd.f32 %v5482, 1.0
    %v5489 = vadd.f32 %v5484, 1.0
    %v5490 = vadd.f32 %v5486, 1.0
    %v5491 = vrcp.pop %v5487
    %v5492 = vmul.f32 1.0, %v5491
    %v5493 = vrcp.pop %v5488
    %v5494 = vmul.f32 1.0, %v5493
    %v5495 = vrcp.pop %v5489
    %v5496 = vmul.f32 1.0, %v5495
    %v5497 = vrcp.pop %v5490
    %v5498 = vmul.f32 1.0, %v5497
    %v5499 = vmul.f32 %v5300, %v5433
    %v5500 = vmul.f32 %v5301, %v5433
    %v5501 = vmul.f32 %v5302, %v5433
    %v5502 = vmul.f32 %v5303, %v5433
    %v5503 = vadd.f32 %v5499, %v5438
    %v5504 = vadd.f32 %v5500, %v5438
    %v5505 = vadd.f32 %v5501, %v5438
    %v5506 = vadd.f32 %v5502, %v5438
    %v5507 = vsub.f32 0.0, %v5503
    %v5508 = vsub.f32 0.0, %v5504
    %v5509 = vsub.f32 0.0, %v5505
    %v5510 = vsub.f32 0.0, %v5506
    %v5511 = vmul.f32 %v5507, 1.442695
    %v5512 = vpow.pop %v5511
    %v5513 = vmul.f32 %v5508, 1.442695
    %v5514 = vpow.pop %v5513
    %v5515 = vmul.f32 %v5509, 1.442695
    %v5516 = vpow.pop %v5515
    %v5517 = vmul.f32 %v5510, 1.442695
    %v5518 = vpow.pop %v5517
    %v5519 = vadd.f32 %v5512, 1.0
    %v5520 = vadd.f32 %v5514, 1.0
    %v5521 = vadd.f32 %v5516, 1.0
    %v5522 = vadd.f32 %v5518, 1.0
    %v5523 = vrcp.pop %v5519
    %v5524 = vmul.f32 1.0, %v5523
    %v5525 = vrcp.pop %v5520
    %v5526 = vmul.f32 1.0, %v5525
    %v5527 = vrcp.pop %v5521
    %v5528 = vmul.f32 1.0, %v5527
    %v5529 = vrcp.pop %v5522
    %v5530 = vmul.f32 1.0, %v5529
    %v5531 = vmul.f32 %v5374, %v5433
    %v5532 = vmul.f32 %v5375, %v5433
    %v5533 = vmul.f32 %v5376, %v5433
    %v5534 = vmul.f32 %v5377, %v5433
    %v5535 = vadd.f32 %v5531, %v5438
    %v5536 = vadd.f32 %v5532, %v5438
    %v5537 = vadd.f32 %v5533, %v5438
    %v5538 = vadd.f32 %v5534, %v5438
    %v5539 = vsub.f32 0.0, %v5535
    %v5540 = vsub.f32 0.0, %v5536
    %v5541 = vsub.f32 0.0, %v5537
    %v5542 = vsub.f32 0.0, %v5538
    %v5543 = vmul.f32 %v5539, 1.442695
    %v5544 = vpow.pop %v5543
    %v5545 = vmul.f32 %v5540, 1.442695
    %v5546 = vpow.pop %v5545
    %v5547 = vmul.f32 %v5541, 1.442695
    %v5548 = vpow.pop %v5547
    %v5549 = vmul.f32 %v5542, 1.442695
    %v5550 = vpow.pop %v5549
    %v5551 = vadd.f32 %v5544, 1.0
    %v5552 = vadd.f32 %v5546, 1.0
    %v5553 = vadd.f32 %v5548, 1.0
    %v5554 = vadd.f32 %v5550, 1.0
    %v5555 = vrcp.pop %v5551
    %v5556 = vmul.f32 1.0, %v5555
    %v5557 = vrcp.pop %v5552
    %v5558 = vmul.f32 1.0, %v5557
    %v5559 = vrcp.pop %v5553
    %v5560 = vmul.f32 1.0, %v5559
    %v5561 = vrcp.pop %v5554
    %v5562 = vmul.f32 1.0, %v5561
    %v5567 = vrot.slane %v5460, 4
    %v5568 = vrot.slane %v5462, 4
    %v5569 = vrot.slane %v5464, 4
    %v5570 = vrot.slane %v5466, 4
    %v5579 = vrot.slane %v5492, 2
    %v5580 = vrot.slane %v5494, 2
    %v5581 = vrot.slane %v5496, 2
    %v5582 = vrot.slane %v5498, 2
    %v5591 = vrot.slane %v5524, 7
    %v5592 = vrot.slane %v5526, 7
    %v5593 = vrot.slane %v5528, 7
    %v5594 = vrot.slane %v5530, 7
    %v5603 = vrot.slane %v5556, 5
    %v5604 = vrot.slane %v5558, 5
    %v5605 = vrot.slane %v5560, 5
    %v5606 = vrot.slane %v5562, 5
    %v5611 = vsel %vm5171, %v5567, %v5579
    %v5612 = vsel %vm5171, %v5568, %v5580
    %v5613 = vsel %vm5171, %v5569, %v5581
    %v5614 = vsel %vm5171, %v5570, %v5582
    %vm5615 = vcmask 1041408
    %v5616 = vsel %vm5615, %v5611, %v5591
    %v5617 = vsel %vm5615, %v5612, %v5592
    %v5618 = vsel %vm5615, %v5613, %v5593
    %v5619 = vsel %vm5615, %v5614, %v5594
    %vm5620 = vcmask 1042432
    %v5621 = vsel %vm5620, %v5616, %v5603
    %v5622 = vsel %vm5620, %v5617, %v5604
    %v5623 = vsel %vm5620, %v5618, %v5605
    %v5624 = vsel %vm5620, %v5619, %v5606
    %v5629 = vcombine.low %v5621, %v5622
    %v5630 = vcombine.low %v5623, %v5624
    %5633 = vst [vmem:[%s11] sm:$0xff] %v5629
    %5634 = vst [vmem:[%s11 + $0x8] sm:$0xff] %v5630
    // Predicated region
    $region54: #{decoder_forward.1} parent=1 // pred_check
      _
    $region55: #{decoder_forward.1} parent=1 // pred_check_branch
      %5636 = sbr.rel (0) target = $region57
    $region56: #{decoder_forward.1} parent=1 // pred_region
      _
    $region57: #{decoder_forward.1} parent=1 // pred_fallthru
      _
    // Predicated region
    $region58: #{decoder_forward.1} parent=1 // pred_check
      _
    $region59: #{decoder_forward.1} parent=1 // pred_check_branch
      %5638 = sbr.rel (0) target = $region61
    $region60: #{decoder_forward.1} parent=1 // pred_region
      _
    $region61: #{decoder_forward.1} parent=1 // pred_fallthru
      _
    %5639 = vsyncpa [#allocation5], 1
    %5640 = vsyncpa [#allocation7], 1

</llo_original>
